<compile_context>
chip_gen: v5e
topology: v5e:2x2
jax: 0.10.0
libtpu: 0.0.40
codegen_flags: <defaults>
</compile_context>

<pallas_src>
import functools

import jax
import jax.numpy as jnp
from jax.experimental import pallas as pl
from jax.experimental.pallas import tpu as pltpu

F32 = jnp.float32
EPS = 1e-5


def _round_up(a, b):
    return (a + b - 1) // b * b


# ----------------------------------------------------------------------------------
# Pallas kernels
# ----------------------------------------------------------------------------------
def _stats_kernel(xf_ref, ssum_ref, ssq_ref):
    """Per-image, per-channel sum / sum-of-squares over the lane (spatial) axis."""
    x = xf_ref[0]                                        # (C, LIN) lane-dense
    ssum_ref[0] = jnp.sum(x, axis=1, keepdims=True)
    ssq_ref[0] = jnp.sum(x * x, axis=1, keepdims=True)


def _bn_relu_conv_kernel(xf_ref, sc_ref, sh_ref, w_ref, b_ref, im_ref, *rest,
                         w2, l_out, cin, with_add):
    """Fused BN(scale/shift) + ReLU + 3x3 conv (+bias, +optional residual) per image.

    xf_ref : (1, Cin, LIN)  spatially zero-padded, flattened input (lane dense)
    sc_ref : (Cin, 1)       BN scale = gamma * rsqrt(var + eps)
    sh_ref : (Cin, 1)       BN shift = beta - mean * scale
    w_ref  : (Cout, 9*Cin)  conv weight, tap-major / channel-minor columns
    b_ref  : (Cout, 1)      conv bias
    im_ref : (1, LIN)       interior mask (1 inside the image, 0 on the pad border)
    rest   : [add_ref], out_ref, ssum_ref, ssq_ref, col_ref (VMEM scratch)
    """
    if with_add:
        add_ref, out_ref, ssum_ref, ssq_ref, col_ref = rest
    else:
        out_ref, ssum_ref, ssq_ref, col_ref = rest

    x = xf_ref[0]                                        # (Cin, LIN)
    # normalize + affine + ReLU; the mask re-zeroes the conv's zero-pad border
    # (which would otherwise become relu(shift) after the affine).
    y = jnp.maximum(x * sc_ref[...] + sh_ref[...], 0.0) * im_ref[...]

    # in-VMEM im2col: each 3x3 tap is a contiguous lane-shifted window of y.
    for t in range(9):
        off = (t // 3) * w2 + (t % 3)
        col_ref[t * cin:(t + 1) * cin, :] = y[:, off:off + l_out]

    acc = jnp.dot(w_ref[...], col_ref[...], preferred_element_type=jnp.float32)
    acc = acc + b_ref[...]                               # (Cout, l_out)

    # per-channel sums of the conv output over *valid* columns, so the next BN
    # needs no extra pass over this activation.
    vm = im_ref[:, w2 + 1:w2 + 1 + l_out]                # valid-output-column mask
    av = acc * vm
    ssum_ref[0] = jnp.sum(av, axis=1, keepdims=True)
    ssq_ref[0] = jnp.sum(av * av, axis=1, keepdims=True)

    if with_add:
        acc = acc + add_ref[0]                           # fused residual add
    out_ref[0] = acc


# ----------------------------------------------------------------------------------
# pallas_call wrappers
# ----------------------------------------------------------------------------------
def channel_stats(xf):
    n, c, lin = xf.shape
    ssum, ssq = pl.pallas_call(
        _stats_kernel,
        out_shape=(jax.ShapeDtypeStruct((n, c, 1), F32),
                   jax.ShapeDtypeStruct((n, c, 1), F32)),
        grid_spec=pltpu.PrefetchScalarGridSpec(
            num_scalar_prefetch=0,
            grid=(n,),
            in_specs=[pl.BlockSpec((1, c, lin), lambda i: (i, 0, 0))],
            out_specs=(pl.BlockSpec((1, c, 1), lambda i: (i, 0, 0)),
                       pl.BlockSpec((1, c, 1), lambda i: (i, 0, 0))),
        ),
        compiler_params=pltpu.CompilerParams(dimension_semantics=("parallel",)),
    )(xf)
    return ssum, ssq


def bn_relu_conv(xf, scale, shift, wmat, bias, imask, *, height, width, add=None):
    n, cin, lin = xf.shape
    cout, k = wmat.shape
    w2 = width + 2
    l_out = height * w2

    kern = functools.partial(_bn_relu_conv_kernel, w2=w2, l_out=l_out, cin=cin,
                             with_add=add is not None)
    in_specs = [
        pl.BlockSpec((1, cin, lin), lambda i: (i, 0, 0)),
        pl.BlockSpec((cin, 1), lambda i: (0, 0)),
        pl.BlockSpec((cin, 1), lambda i: (0, 0)),
        pl.BlockSpec((cout, k), lambda i: (0, 0)),
        pl.BlockSpec((cout, 1), lambda i: (0, 0)),
        pl.BlockSpec((1, lin), lambda i: (0, 0)),
    ]
    args = [xf, scale, shift, wmat, bias, imask]
    if add is not None:
        in_specs.append(pl.BlockSpec((1, cout, l_out), lambda i: (i, 0, 0)))
        args.append(add)

    out, ssum, ssq = pl.pallas_call(
        kern,
        out_shape=(jax.ShapeDtypeStruct((n, cout, l_out), F32),
                   jax.ShapeDtypeStruct((n, cout, 1), F32),
                   jax.ShapeDtypeStruct((n, cout, 1), F32)),
        grid_spec=pltpu.PrefetchScalarGridSpec(
            num_scalar_prefetch=0,
            grid=(n,),
            in_specs=in_specs,
            out_specs=(pl.BlockSpec((1, cout, l_out), lambda i: (i, 0, 0)),
                       pl.BlockSpec((1, cout, 1), lambda i: (i, 0, 0)),
                       pl.BlockSpec((1, cout, 1), lambda i: (i, 0, 0))),
            scratch_shapes=[pltpu.VMEM((k, l_out), F32)],
        ),
        compiler_params=pltpu.CompilerParams(
            dimension_semantics=("parallel",),
            vmem_limit_bytes=32 * 1024 * 1024),
    )(*args)
    return out, ssum, ssq


# ----------------------------------------------------------------------------------
# layout / BN glue (cheap JAX-side reshapes, no big materialized intermediates)
# ----------------------------------------------------------------------------------
def padded_flat_len(height, width):
    # enough lanes so that every tap slice (offset <= 2*(W+2)+2) stays in bounds
    return _round_up((height + 2) * (width + 2) + 2, 128)


def to_padded_flat(x, lin):
    n, c, h, w = x.shape
    xp = jnp.pad(x, ((0, 0), (0, 0), (1, 1), (1, 1)))
    xf = xp.reshape(n, c, (h + 2) * (w + 2))
    return jnp.pad(xf, ((0, 0), (0, 0), (0, lin - xf.shape[-1])))


def raw_out_to_padded_flat(o_raw, height, width, lin):
    n, c, _ = o_raw.shape
    o = o_raw.reshape(n, c, height, width + 2)[:, :, :, :width]
    return to_padded_flat(o, lin)


def interior_mask(height, width, lin):
    w2 = width + 2
    r = jnp.arange(height + 2)[:, None]
    s = jnp.arange(w2)[None, :]
    m = ((r >= 1) & (r <= height) & (s >= 1) & (s <= width)).astype(F32)
    m = m.reshape(1, (height + 2) * w2)
    return jnp.pad(m, ((0, 0), (0, lin - m.shape[-1])))


def conv_w_to_mat(w):
    co, ci, kh, kw = w.shape
    return jnp.transpose(w, (0, 2, 3, 1)).reshape(co, kh * kw * ci)


def finalize_stats(ssum, ssq, count):
    s = jnp.sum(ssum[:, :, 0], axis=0)
    q = jnp.sum(ssq[:, :, 0], axis=0)
    mean = s / count
    var = jnp.maximum(q / count - mean * mean, 0.0)      # clamp: cancellation guard
    return mean, var


def bn_scale_shift(mean, var, gamma, beta):
    scale = gamma * jax.lax.rsqrt(var + EPS)
    shift = beta - mean * scale
    return scale[:, None].astype(F32), shift[:, None].astype(F32)


# ----------------------------------------------------------------------------------
# ResBlock_1 forward
# ----------------------------------------------------------------------------------
def resblock1_forward(params, x):
    n, cin, h, w = x.shape
    cout = params["w1"].shape[0]
    lin = padded_flat_len(h, w)
    w2 = w + 2

    imask = interior_mask(h, w, lin)
    xf = to_padded_flat(x.astype(F32), lin)

    # batch stats of x, shared by both BatchNorm(in_ch) branches (the zero spatial
    # pad contributes nothing to the sums, so the padded view is reduced directly).
    sx, qx = channel_stats(xf)
    mean_x, var_x = finalize_stats(sx, qx, n * h * w)
    sc1, sh1 = bn_scale_shift(mean_x, var_x, params["bn1_g"], params["bn1_b"])
    scs, shs = bn_scale_shift(mean_x, var_x, params["bnsc_g"], params["bnsc_b"])

    w1m = conv_w_to_mat(params["w1"])
    w2m = conv_w_to_mat(params["w2"])
    w3m = conv_w_to_mat(params["w3"])

    # main branch stage 1: conv1(relu(bn1(x)))   (+ fused stats of its output)
    h1_raw, s1, q1 = bn_relu_conv(xf, sc1, sh1, w1m, params["b1"][:, None], imask,
                                  height=h, width=w)
    mean_h, var_h = finalize_stats(s1, q1, n * h * w)
    sc2, sh2 = bn_scale_shift(mean_h, var_h, params["bn2_g"], params["bn2_b"])

    # main branch stage 2: conv2(relu(bn2(h1)))
    h1f = raw_out_to_padded_flat(h1_raw, h, w, lin)
    h2_raw, _, _ = bn_relu_conv(h1f, sc2, sh2, w2m, params["b2"][:, None], imask,
                                height=h, width=w)

    # shortcut: conv3(relu(bn_sc(x))) + main  (residual add fused in the kernel)
    out_raw, _, _ = bn_relu_conv(xf, scs, shs, w3m, params["b3"][:, None], imask,
                                 height=h, width=w, add=h2_raw)

    return out_raw.reshape(n, cout, h, w2)[:, :, :, :w]


# ----------------------------------------------------------------------------------
# pure-JAX reference (PyTorch semantics) for validation
# ----------------------------------------------------------------------------------
def reference_forward(params, x):
    def bn(h, g, b):
        m = jnp.mean(h, axis=(0, 2, 3), keepdims=True)
        v = jnp.var(h, axis=(0, 2, 3), keepdims=True)
        return (h - m) * jax.lax.rsqrt(v + EPS) * g.reshape(1, -1, 1, 1) \
            + b.reshape(1, -1, 1, 1)

    def conv(h, wt, b):
        y = jax.lax.conv_general_dilated(
            h, wt, window_strides=(1, 1), padding=((1, 1), (1, 1)),
            dimension_numbers=("NCHW", "OIHW", "NCHW"))
        return y + b.reshape(1, -1, 1, 1)

    h = conv(jnp.maximum(bn(x, params["bn1_g"], params["bn1_b"]), 0.0),
             params["w1"], params["b1"])
    h = conv(jnp.maximum(bn(h, params["bn2_g"], params["bn2_b"]), 0.0),
             params["w2"], params["b2"])
    s = conv(jnp.maximum(bn(x, params["bnsc_g"], params["bnsc_b"]), 0.0),
             params["w3"], params["b3"])
    return h + s


# ----------------------------------------------------------------------------------
if __name__ == "__main__":
    N, IN_CH, OUT_CH, H, W = 2, 16, 32, 16, 16

    key = jax.random.PRNGKey(0)
    ks = jax.random.split(key, 13)

    def xavier(k, co, ci):
        bound = (6.0 / (9 * ci + 9 * co)) ** 0.5
        return jax.random.uniform(k, (co, ci, 3, 3), F32, -bound, bound)

    params = {
        "w1": xavier(ks[0], OUT_CH, IN_CH),
        "b1": 0.05 * jax.random.normal(ks[1], (OUT_CH,), F32),
        "w2": xavier(ks[2], OUT_CH, OUT_CH),
        "b2": 0.05 * jax.random.normal(ks[3], (OUT_CH,), F32),
        "w3": xavier(ks[4], OUT_CH, IN_CH),
        "b3": 0.05 * jax.random.normal(ks[5], (OUT_CH,), F32),
        "bn1_g": 1.0 + 0.1 * jax.random.normal(ks[6], (IN_CH,), F32),
        "bn1_b": 0.1 * jax.random.normal(ks[7], (IN_CH,), F32),
        "bn2_g": 1.0 + 0.1 * jax.random.normal(ks[8], (OUT_CH,), F32),
        "bn2_b": 0.1 * jax.random.normal(ks[9], (OUT_CH,), F32),
        "bnsc_g": 1.0 + 0.1 * jax.random.normal(ks[10], (IN_CH,), F32),
        "bnsc_b": 0.1 * jax.random.normal(ks[11], (IN_CH,), F32),
    }
    x = jax.random.normal(ks[12], (N, IN_CH, H, W), F32)

    fwd = jax.jit(resblock1_forward)
    out = jax.block_until_ready(fwd(params, x))

    assert out.shape == (N, OUT_CH, H, W), out.shape
    assert bool(jnp.all(jnp.isfinite(out)))

    ref = reference_forward(params, x)
    err = float(jnp.max(jnp.abs(out - ref)))
    assert err < 5e-3, f"max |pallas - reference| = {err}"
    print("KERNEL_OK")
</pallas_src>

<mosaic_0001>
module attributes {stable_mosaic.version = 11 : i64} {
  func.func @_stats_kernel(%arg0: i32, %arg1: memref<1x16x384xf32, #tpu.memory_space<vmem>>, %arg2: memref<1x16x1xf32, #tpu.memory_space<vmem>>, %arg3: memref<1x16x1xf32, #tpu.memory_space<vmem>>) attributes {dimension_semantics = [#tpu.dimension_semantics<parallel>], iteration_bounds = array<i64: 2>, scalar_prefetch = 0 : i64, scratch_operands = 0 : i64, tpu.core_type = #tpu.core_type<tc>, window_params = [{transform_indices = @transform_0, window_bounds = array<i64: 1, 16, 384>}, {transform_indices = @transform_1, window_bounds = array<i64: 1, 16, 1>}, {transform_indices = @transform_2, window_bounds = array<i64: 1, 16, 1>}]} {
    %c0 = arith.constant 0 : index
    %c0_0 = arith.constant 0 : index
    %c0_1 = arith.constant 0 : index
    %0 = vector.load %arg1[%c0, %c0_0, %c0_1] : memref<1x16x384xf32, #tpu.memory_space<vmem>>, vector<1x16x384xf32>
    %1 = vector.shape_cast %0 : vector<1x16x384xf32> to vector<16x384xf32>
    %cst = arith.constant dense<0.000000e+00> : vector<16xf32>
    %2 = vector.multi_reduction <add>, %1, %cst [1] : vector<16x384xf32> to vector<16xf32>
    %3 = vector.shape_cast %2 : vector<16xf32> to vector<16x1xf32>
    %c0_2 = arith.constant 0 : index
    %c0_3 = arith.constant 0 : index
    %c0_4 = arith.constant 0 : index
    %4 = vector.load %arg2[%c0_2, %c0_3, %c0_4] : memref<1x16x1xf32, #tpu.memory_space<vmem>>, vector<1x16x1xf32>
    %5 = vector.shape_cast %4 : vector<1x16x1xf32> to vector<16x1xf32>
    %6 = vector.shape_cast %3 : vector<16x1xf32> to vector<1x16x1xf32>
    tpu.vector_store %arg2[%c0_2, %c0_3, %c0_4], %6 {strides = array<i32>} : memref<1x16x1xf32, #tpu.memory_space<vmem>>, vector<1x16x1xf32>,
    %7 = arith.mulf %1, %1 : vector<16x384xf32>
    %cst_5 = arith.constant dense<0.000000e+00> : vector<16xf32>
    %8 = vector.multi_reduction <add>, %7, %cst_5 [1] : vector<16x384xf32> to vector<16xf32>
    %9 = vector.shape_cast %8 : vector<16xf32> to vector<16x1xf32>
    %c0_6 = arith.constant 0 : index
    %c0_7 = arith.constant 0 : index
    %c0_8 = arith.constant 0 : index
    %10 = vector.load %arg3[%c0_6, %c0_7, %c0_8] : memref<1x16x1xf32, #tpu.memory_space<vmem>>, vector<1x16x1xf32>
    %11 = vector.shape_cast %10 : vector<1x16x1xf32> to vector<16x1xf32>
    %12 = vector.shape_cast %9 : vector<16x1xf32> to vector<1x16x1xf32>
    tpu.vector_store %arg3[%c0_6, %c0_7, %c0_8], %12 {strides = array<i32>} : memref<1x16x1xf32, #tpu.memory_space<vmem>>, vector<1x16x1xf32>,
    return
  }
  func.func @transform_0(%arg0: i32) -> (i32, i32, i32) {
    %c0_i32 = arith.constant 0 : i32
    %c0_i32_0 = arith.constant 0 : i32
    %c0_i32_1 = arith.constant 0 : i32
    return %arg0, %c0_i32, %c0_i32_0 : i32, i32, i32
  }
  func.func @transform_1(%arg0: i32) -> (i32, i32, i32) {
    %c0_i32 = arith.constant 0 : i32
    %c0_i32_0 = arith.constant 0 : i32
    %c0_i32_1 = arith.constant 0 : i32
    return %arg0, %c0_i32, %c0_i32_0 : i32, i32, i32
  }
  func.func @transform_2(%arg0: i32) -> (i32, i32, i32) {
    %c0_i32 = arith.constant 0 : i32
    %c0_i32_0 = arith.constant 0 : i32
    %c0_i32_1 = arith.constant 0 : i32
    return %arg0, %c0_i32, %c0_i32_0 : i32, i32, i32
  }
}

module attributes {stable_mosaic.version = 11 : i64} {
  func.func @_bn_relu_conv_kernel(%arg0: i32, %arg1: memref<1x16x384xf32, #tpu.memory_space<vmem>>, %arg2: memref<16x1xf32, #tpu.memory_space<vmem>>, %arg3: memref<16x1xf32, #tpu.memory_space<vmem>>, %arg4: memref<32x144xf32, #tpu.memory_space<vmem>>, %arg5: memref<32x1xf32, #tpu.memory_space<vmem>>, %arg6: memref<1x384xf32, #tpu.memory_space<vmem>>, %arg7: memref<1x32x288xf32, #tpu.memory_space<vmem>>, %arg8: memref<1x32x1xf32, #tpu.memory_space<vmem>>, %arg9: memref<1x32x1xf32, #tpu.memory_space<vmem>>, %arg10: memref<144x288xf32, #tpu.memory_space<vmem>>) attributes {dimension_semantics = [#tpu.dimension_semantics<parallel>], iteration_bounds = array<i64: 2>, scalar_prefetch = 0 : i64, scratch_operands = 1 : i64, tpu.core_type = #tpu.core_type<tc>, window_params = [{transform_indices = @transform_0, window_bounds = array<i64: 1, 16, 384>}, {pipeline_mode = #tpu.pipeline_mode<synchronous>, transform_indices = @transform_1, window_bounds = array<i64: 16, 1>}, {pipeline_mode = #tpu.pipeline_mode<synchronous>, transform_indices = @transform_2, window_bounds = array<i64: 16, 1>}, {pipeline_mode = #tpu.pipeline_mode<synchronous>, transform_indices = @transform_3, window_bounds = array<i64: 32, 144>}, {pipeline_mode = #tpu.pipeline_mode<synchronous>, transform_indices = @transform_4, window_bounds = array<i64: 32, 1>}, {pipeline_mode = #tpu.pipeline_mode<synchronous>, transform_indices = @transform_5, window_bounds = array<i64: 1, 384>}, {transform_indices = @transform_6, window_bounds = array<i64: 1, 32, 288>}, {transform_indices = @transform_7, window_bounds = array<i64: 1, 32, 1>}, {transform_indices = @transform_8, window_bounds = array<i64: 1, 32, 1>}]} {
    %c0 = arith.constant 0 : index
    %c0_0 = arith.constant 0 : index
    %c0_1 = arith.constant 0 : index
    %0 = vector.load %arg1[%c0, %c0_0, %c0_1] : memref<1x16x384xf32, #tpu.memory_space<vmem>>, vector<1x16x384xf32>
    %1 = vector.shape_cast %0 : vector<1x16x384xf32> to vector<16x384xf32>
    %c0_2 = arith.constant 0 : index
    %c0_3 = arith.constant 0 : index
    %2 = vector.load %arg2[%c0_2, %c0_3] : memref<16x1xf32, #tpu.memory_space<vmem>>, vector<16x1xf32>
    %3 = vector.broadcast %2 : vector<16x1xf32> to vector<16x384xf32>
    %4 = arith.mulf %1, %3 : vector<16x384xf32>
    %c0_4 = arith.constant 0 : index
    %c0_5 = arith.constant 0 : index
    %5 = vector.load %arg3[%c0_4, %c0_5] : memref<16x1xf32, #tpu.memory_space<vmem>>, vector<16x1xf32>
    %6 = vector.broadcast %5 : vector<16x1xf32> to vector<16x384xf32>
    %7 = arith.addf %4, %6 : vector<16x384xf32>
    %cst = arith.constant 0.000000e+00 : f32
    %8 = vector.broadcast %cst : f32 to vector<16x384xf32>
    %9 = arith.maximumf %7, %8 : vector<16x384xf32>
    %c0_6 = arith.constant 0 : index
    %c0_7 = arith.constant 0 : index
    %10 = vector.load %arg6[%c0_6, %c0_7] : memref<1x384xf32, #tpu.memory_space<vmem>>, vector<1x384xf32>
    %11 = vector.broadcast %10 : vector<1x384xf32> to vector<16x384xf32>
    %12 = arith.mulf %9, %11 : vector<16x384xf32>
    %13 = vector.extract_strided_slice %12 {offsets = [0, 0], sizes = [16, 288], strides = [1, 1]} : vector<16x384xf32> to vector<16x288xf32>
    %c0_8 = arith.constant 0 : index
    %c0_9 = arith.constant 0 : index
    %14 = vector.load %arg10[%c0_8, %c0_9] : memref<144x288xf32, #tpu.memory_space<vmem>>, vector<16x288xf32>
    tpu.vector_store %arg10[%c0_8, %c0_9], %13 {strides = array<i32>} : memref<144x288xf32, #tpu.memory_space<vmem>>, vector<16x288xf32>,
    %15 = vector.extract_strided_slice %12 {offsets = [0, 1], sizes = [16, 288], strides = [1, 1]} : vector<16x384xf32> to vector<16x288xf32>
    %c16 = arith.constant 16 : index
    %c0_10 = arith.constant 0 : index
    %16 = vector.load %arg10[%c16, %c0_10] : memref<144x288xf32, #tpu.memory_space<vmem>>, vector<16x288xf32>
    tpu.vector_store %arg10[%c16, %c0_10], %15 {strides = array<i32>} : memref<144x288xf32, #tpu.memory_space<vmem>>, vector<16x288xf32>,
    %17 = vector.extract_strided_slice %12 {offsets = [0, 2], sizes = [16, 288], strides = [1, 1]} : vector<16x384xf32> to vector<16x288xf32>
    %c32 = arith.constant 32 : index
    %c0_11 = arith.constant 0 : index
    %18 = vector.load %arg10[%c32, %c0_11] : memref<144x288xf32, #tpu.memory_space<vmem>>, vector<16x288xf32>
    tpu.vector_store %arg10[%c32, %c0_11], %17 {strides = array<i32>} : memref<144x288xf32, #tpu.memory_space<vmem>>, vector<16x288xf32>,
    %19 = vector.extract_strided_slice %12 {offsets = [0, 18], sizes = [16, 288], strides = [1, 1]} : vector<16x384xf32> to vector<16x288xf32>
    %c48 = arith.constant 48 : index
    %c0_12 = arith.constant 0 : index
    %20 = vector.load %arg10[%c48, %c0_12] : memref<144x288xf32, #tpu.memory_space<vmem>>, vector<16x288xf32>
    tpu.vector_store %arg10[%c48, %c0_12], %19 {strides = array<i32>} : memref<144x288xf32, #tpu.memory_space<vmem>>, vector<16x288xf32>,
    %21 = vector.extract_strided_slice %12 {offsets = [0, 19], sizes = [16, 288], strides = [1, 1]} : vector<16x384xf32> to vector<16x288xf32>
    %c64 = arith.constant 64 : index
    %c0_13 = arith.constant 0 : index
    %22 = vector.load %arg10[%c64, %c0_13] : memref<144x288xf32, #tpu.memory_space<vmem>>, vector<16x288xf32>
    tpu.vector_store %arg10[%c64, %c0_13], %21 {strides = array<i32>} : memref<144x288xf32, #tpu.memory_space<vmem>>, vector<16x288xf32>,
    %23 = vector.extract_strided_slice %12 {offsets = [0, 20], sizes = [16, 288], strides = [1, 1]} : vector<16x384xf32> to vector<16x288xf32>
    %c80 = arith.constant 80 : index
    %c0_14 = arith.constant 0 : index
    %24 = vector.load %arg10[%c80, %c0_14] : memref<144x288xf32, #tpu.memory_space<vmem>>, vector<16x288xf32>
    tpu.vector_store %arg10[%c80, %c0_14], %23 {strides = array<i32>} : memref<144x288xf32, #tpu.memory_space<vmem>>, vector<16x288xf32>,
    %25 = vector.extract_strided_slice %12 {offsets = [0, 36], sizes = [16, 288], strides = [1, 1]} : vector<16x384xf32> to vector<16x288xf32>
    %c96 = arith.constant 96 : index
    %c0_15 = arith.constant 0 : index
    %26 = vector.load %arg10[%c96, %c0_15] : memref<144x288xf32, #tpu.memory_space<vmem>>, vector<16x288xf32>
    tpu.vector_store %arg10[%c96, %c0_15], %25 {strides = array<i32>} : memref<144x288xf32, #tpu.memory_space<vmem>>, vector<16x288xf32>,
    %27 = vector.extract_strided_slice %12 {offsets = [0, 37], sizes = [16, 288], strides = [1, 1]} : vector<16x384xf32> to vector<16x288xf32>
    %c112 = arith.constant 112 : index
    %c0_16 = arith.constant 0 : index
    %28 = vector.load %arg10[%c112, %c0_16] : memref<144x288xf32, #tpu.memory_space<vmem>>, vector<16x288xf32>
    tpu.vector_store %arg10[%c112, %c0_16], %27 {strides = array<i32>} : memref<144x288xf32, #tpu.memory_space<vmem>>, vector<16x288xf32>,
    %29 = vector.extract_strided_slice %12 {offsets = [0, 38], sizes = [16, 288], strides = [1, 1]} : vector<16x384xf32> to vector<16x288xf32>
    %c128 = arith.constant 128 : index
    %c0_17 = arith.constant 0 : index
    %30 = vector.load %arg10[%c128, %c0_17] : memref<144x288xf32, #tpu.memory_space<vmem>>, vector<16x288xf32>
    tpu.vector_store %arg10[%c128, %c0_17], %29 {strides = array<i32>} : memref<144x288xf32, #tpu.memory_space<vmem>>, vector<16x288xf32>,
    %c0_18 = arith.constant 0 : index
    %c0_19 = arith.constant 0 : index
    %31 = vector.load %arg4[%c0_18, %c0_19] : memref<32x144xf32, #tpu.memory_space<vmem>>, vector<32x144xf32>
    %c0_20 = arith.constant 0 : index
    %c0_21 = arith.constant 0 : index
    %32 = vector.load %arg10[%c0_20, %c0_21] : memref<144x288xf32, #tpu.memory_space<vmem>>, vector<144x288xf32>
    %cst_22 = arith.constant dense<0.000000e+00> : vector<32x288xf32>
    %33 = tpu.matmul %31, %32, %cst_22 {dimension_numbers = #tpu.dot_dimension_numbers<[1], [0], [0], [1], [0, 0, 1, 1], [], []>} : vector<32x144xf32>, vector<144x288xf32>, vector<32x288xf32> -> vector<32x288xf32>
    %c0_23 = arith.constant 0 : index
    %c0_24 = arith.constant 0 : index
    %34 = vector.load %arg5[%c0_23, %c0_24] : memref<32x1xf32, #tpu.memory_space<vmem>>, vector<32x1xf32>
    %35 = vector.broadcast %34 : vector<32x1xf32> to vector<32x288xf32>
    %36 = arith.addf %33, %35 : vector<32x288xf32>
    %c0_25 = arith.constant 0 : index
    %c19 = arith.constant 19 : index
    %37 = vector.load %arg6[%c0_25, %c19] : memref<1x384xf32, #tpu.memory_space<vmem>>, vector<1x288xf32>
    %38 = vector.broadcast %37 : vector<1x288xf32> to vector<32x288xf32>
    %39 = arith.mulf %36, %38 : vector<32x288xf32>
    %cst_26 = arith.constant dense<0.000000e+00> : vector<32xf32>
    %40 = vector.multi_reduction <add>, %39, %cst_26 [1] : vector<32x288xf32> to vector<32xf32>
    %41 = vector.shape_cast %40 : vector<32xf32> to vector<32x1xf32>
    %c0_27 = arith.constant 0 : index
    %c0_28 = arith.constant 0 : index
    %c0_29 = arith.constant 0 : index
    %42 = vector.load %arg8[%c0_27, %c0_28, %c0_29] : memref<1x32x1xf32, #tpu.memory_space<vmem>>, vector<1x32x1xf32>
    %43 = vector.shape_cast %42 : vector<1x32x1xf32> to vector<32x1xf32>
    %44 = vector.shape_cast %41 : vector<32x1xf32> to vector<1x32x1xf32>
    tpu.vector_store %arg8[%c0_27, %c0_28, %c0_29], %44 {strides = array<i32>} : memref<1x32x1xf32, #tpu.memory_space<vmem>>, vector<1x32x1xf32>,
    %45 = arith.mulf %39, %39 : vector<32x288xf32>
    %cst_30 = arith.constant dense<0.000000e+00> : vector<32xf32>
    %46 = vector.multi_reduction <add>, %45, %cst_30 [1] : vector<32x288xf32> to vector<32xf32>
    %47 = vector.shape_cast %46 : vector<32xf32> to vector<32x1xf32>
    %c0_31 = arith.constant 0 : index
    %c0_32 = arith.constant 0 : index
    %c0_33 = arith.constant 0 : index
    %48 = vector.load %arg9[%c0_31, %c0_32, %c0_33] : memref<1x32x1xf32, #tpu.memory_space<vmem>>, vector<1x32x1xf32>
    %49 = vector.shape_cast %48 : vector<1x32x1xf32> to vector<32x1xf32>
    %50 = vector.shape_cast %47 : vector<32x1xf32> to vector<1x32x1xf32>
    tpu.vector_store %arg9[%c0_31, %c0_32, %c0_33], %50 {strides = array<i32>} : memref<1x32x1xf32, #tpu.memory_space<vmem>>, vector<1x32x1xf32>,
    %c0_34 = arith.constant 0 : index
    %c0_35 = arith.constant 0 : index
    %c0_36 = arith.constant 0 : index
    %51 = vector.load %arg7[%c0_34, %c0_35, %c0_36] : memref<1x32x288xf32, #tpu.memory_space<vmem>>, vector<1x32x288xf32>
    %52 = vector.shape_cast %51 : vector<1x32x288xf32> to vector<32x288xf32>
    %53 = vector.shape_cast %36 : vector<32x288xf32> to vector<1x32x288xf32>
    tpu.vector_store %arg7[%c0_34, %c0_35, %c0_36], %53 {strides = array<i32>} : memref<1x32x288xf32, #tpu.memory_space<vmem>>, vector<1x32x288xf32>,
    return
  }
  func.func @transform_0(%arg0: i32) -> (i32, i32, i32) {
    %c0_i32 = arith.constant 0 : i32
    %c0_i32_0 = arith.constant 0 : i32
    %c0_i32_1 = arith.constant 0 : i32
    return %arg0, %c0_i32, %c0_i32_0 : i32, i32, i32
  }
  func.func @transform_1(%arg0: i32) -> (i32, i32) {
    %c0_i32 = arith.constant 0 : i32
    %c0_i32_0 = arith.constant 0 : i32
    %c0_i32_1 = arith.constant 0 : i32
    return %c0_i32, %c0_i32_0 : i32, i32
  }
  func.func @transform_2(%arg0: i32) -> (i32, i32) {
    %c0_i32 = arith.constant 0 : i32
    %c0_i32_0 = arith.constant 0 : i32
    %c0_i32_1 = arith.constant 0 : i32
    return %c0_i32, %c0_i32_0 : i32, i32
  }
  func.func @transform_3(%arg0: i32) -> (i32, i32) {
    %c0_i32 = arith.constant 0 : i32
    %c0_i32_0 = arith.constant 0 : i32
    %c0_i32_1 = arith.constant 0 : i32
    return %c0_i32, %c0_i32_0 : i32, i32
  }
  func.func @transform_4(%arg0: i32) -> (i32, i32) {
    %c0_i32 = arith.constant 0 : i32
    %c0_i32_0 = arith.constant 0 : i32
    %c0_i32_1 = arith.constant 0 : i32
    return %c0_i32, %c0_i32_0 : i32, i32
  }
  func.func @transform_5(%arg0: i32) -> (i32, i32) {
    %c0_i32 = arith.constant 0 : i32
    %c0_i32_0 = arith.constant 0 : i32
    %c0_i32_1 = arith.constant 0 : i32
    return %c0_i32, %c0_i32_0 : i32, i32
  }
  func.func @transform_6(%arg0: i32) -> (i32, i32, i32) {
    %c0_i32 = arith.constant 0 : i32
    %c0_i32_0 = arith.constant 0 : i32
    %c0_i32_1 = arith.constant 0 : i32
    return %arg0, %c0_i32, %c0_i32_0 : i32, i32, i32
  }
  func.func @transform_7(%arg0: i32) -> (i32, i32, i32) {
    %c0_i32 = arith.constant 0 : i32
    %c0_i32_0 = arith.constant 0 : i32
    %c0_i32_1 = arith.constant 0 : i32
    return %arg0, %c0_i32, %c0_i32_0 : i32, i32, i32
  }
  func.func @transform_8(%arg0: i32) -> (i32, i32, i32) {
    %c0_i32 = arith.constant 0 : i32
    %c0_i32_0 = arith.constant 0 : i32
    %c0_i32_1 = arith.constant 0 : i32
    return %arg0, %c0_i32, %c0_i32_0 : i32, i32, i32
  }
}

module attributes {stable_mosaic.version = 11 : i64} {
  func.func @_bn_relu_conv_kernel(%arg0: i32, %arg1: memref<1x32x384xf32, #tpu.memory_space<vmem>>, %arg2: memref<32x1xf32, #tpu.memory_space<vmem>>, %arg3: memref<32x1xf32, #tpu.memory_space<vmem>>, %arg4: memref<32x288xf32, #tpu.memory_space<vmem>>, %arg5: memref<32x1xf32, #tpu.memory_space<vmem>>, %arg6: memref<1x384xf32, #tpu.memory_space<vmem>>, %arg7: memref<1x32x288xf32, #tpu.memory_space<vmem>>, %arg8: memref<1x32x1xf32, #tpu.memory_space<vmem>>, %arg9: memref<1x32x1xf32, #tpu.memory_space<vmem>>, %arg10: memref<288x288xf32, #tpu.memory_space<vmem>>) attributes {dimension_semantics = [#tpu.dimension_semantics<parallel>], iteration_bounds = array<i64: 2>, scalar_prefetch = 0 : i64, scratch_operands = 1 : i64, tpu.core_type = #tpu.core_type<tc>, window_params = [{transform_indices = @transform_0, window_bounds = array<i64: 1, 32, 384>}, {pipeline_mode = #tpu.pipeline_mode<synchronous>, transform_indices = @transform_1, window_bounds = array<i64: 32, 1>}, {pipeline_mode = #tpu.pipeline_mode<synchronous>, transform_indices = @transform_2, window_bounds = array<i64: 32, 1>}, {pipeline_mode = #tpu.pipeline_mode<synchronous>, transform_indices = @transform_3, window_bounds = array<i64: 32, 288>}, {pipeline_mode = #tpu.pipeline_mode<synchronous>, transform_indices = @transform_4, window_bounds = array<i64: 32, 1>}, {pipeline_mode = #tpu.pipeline_mode<synchronous>, transform_indices = @transform_5, window_bounds = array<i64: 1, 384>}, {transform_indices = @transform_6, window_bounds = array<i64: 1, 32, 288>}, {transform_indices = @transform_7, window_bounds = array<i64: 1, 32, 1>}, {transform_indices = @transform_8, window_bounds = array<i64: 1, 32, 1>}]} {
    %c0 = arith.constant 0 : index
    %c0_0 = arith.constant 0 : index
    %c0_1 = arith.constant 0 : index
    %0 = vector.load %arg1[%c0, %c0_0, %c0_1] : memref<1x32x384xf32, #tpu.memory_space<vmem>>, vector<1x32x384xf32>
    %1 = vector.shape_cast %0 : vector<1x32x384xf32> to vector<32x384xf32>
    %c0_2 = arith.constant 0 : index
    %c0_3 = arith.constant 0 : index
    %2 = vector.load %arg2[%c0_2, %c0_3] : memref<32x1xf32, #tpu.memory_space<vmem>>, vector<32x1xf32>
    %3 = vector.broadcast %2 : vector<32x1xf32> to vector<32x384xf32>
    %4 = arith.mulf %1, %3 : vector<32x384xf32>
    %c0_4 = arith.constant 0 : index
    %c0_5 = arith.constant 0 : index
    %5 = vector.load %arg3[%c0_4, %c0_5] : memref<32x1xf32, #tpu.memory_space<vmem>>, vector<32x1xf32>
    %6 = vector.broadcast %5 : vector<32x1xf32> to vector<32x384xf32>
    %7 = arith.addf %4, %6 : vector<32x384xf32>
    %cst = arith.constant 0.000000e+00 : f32
    %8 = vector.broadcast %cst : f32 to vector<32x384xf32>
    %9 = arith.maximumf %7, %8 : vector<32x384xf32>
    %c0_6 = arith.constant 0 : index
    %c0_7 = arith.constant 0 : index
    %10 = vector.load %arg6[%c0_6, %c0_7] : memref<1x384xf32, #tpu.memory_space<vmem>>, vector<1x384xf32>
    %11 = vector.broadcast %10 : vector<1x384xf32> to vector<32x384xf32>
    %12 = arith.mulf %9, %11 : vector<32x384xf32>
    %13 = vector.extract_strided_slice %12 {offsets = [0, 0], sizes = [32, 288], strides = [1, 1]} : vector<32x384xf32> to vector<32x288xf32>
    %c0_8 = arith.constant 0 : index
    %c0_9 = arith.constant 0 : index
    %14 = vector.load %arg10[%c0_8, %c0_9] : memref<288x288xf32, #tpu.memory_space<vmem>>, vector<32x288xf32>
    tpu.vector_store %arg10[%c0_8, %c0_9], %13 {strides = array<i32>} : memref<288x288xf32, #tpu.memory_space<vmem>>, vector<32x288xf32>,
    %15 = vector.extract_strided_slice %12 {offsets = [0, 1], sizes = [32, 288], strides = [1, 1]} : vector<32x384xf32> to vector<32x288xf32>
    %c32 = arith.constant 32 : index
    %c0_10 = arith.constant 0 : index
    %16 = vector.load %arg10[%c32, %c0_10] : memref<288x288xf32, #tpu.memory_space<vmem>>, vector<32x288xf32>
    tpu.vector_store %arg10[%c32, %c0_10], %15 {strides = array<i32>} : memref<288x288xf32, #tpu.memory_space<vmem>>, vector<32x288xf32>,
    %17 = vector.extract_strided_slice %12 {offsets = [0, 2], sizes = [32, 288], strides = [1, 1]} : vector<32x384xf32> to vector<32x288xf32>
    %c64 = arith.constant 64 : index
    %c0_11 = arith.constant 0 : index
    %18 = vector.load %arg10[%c64, %c0_11] : memref<288x288xf32, #tpu.memory_space<vmem>>, vector<32x288xf32>
    tpu.vector_store %arg10[%c64, %c0_11], %17 {strides = array<i32>} : memref<288x288xf32, #tpu.memory_space<vmem>>, vector<32x288xf32>,
    %19 = vector.extract_strided_slice %12 {offsets = [0, 18], sizes = [32, 288], strides = [1, 1]} : vector<32x384xf32> to vector<32x288xf32>
    %c96 = arith.constant 96 : index
    %c0_12 = arith.constant 0 : index
    %20 = vector.load %arg10[%c96, %c0_12] : memref<288x288xf32, #tpu.memory_space<vmem>>, vector<32x288xf32>
    tpu.vector_store %arg10[%c96, %c0_12], %19 {strides = array<i32>} : memref<288x288xf32, #tpu.memory_space<vmem>>, vector<32x288xf32>,
    %21 = vector.extract_strided_slice %12 {offsets = [0, 19], sizes = [32, 288], strides = [1, 1]} : vector<32x384xf32> to vector<32x288xf32>
    %c128 = arith.constant 128 : index
    %c0_13 = arith.constant 0 : index
    %22 = vector.load %arg10[%c128, %c0_13] : memref<288x288xf32, #tpu.memory_space<vmem>>, vector<32x288xf32>
    tpu.vector_store %arg10[%c128, %c0_13], %21 {strides = array<i32>} : memref<288x288xf32, #tpu.memory_space<vmem>>, vector<32x288xf32>,
    %23 = vector.extract_strided_slice %12 {offsets = [0, 20], sizes = [32, 288], strides = [1, 1]} : vector<32x384xf32> to vector<32x288xf32>
    %c160 = arith.constant 160 : index
    %c0_14 = arith.constant 0 : index
    %24 = vector.load %arg10[%c160, %c0_14] : memref<288x288xf32, #tpu.memory_space<vmem>>, vector<32x288xf32>
    tpu.vector_store %arg10[%c160, %c0_14], %23 {strides = array<i32>} : memref<288x288xf32, #tpu.memory_space<vmem>>, vector<32x288xf32>,
    %25 = vector.extract_strided_slice %12 {offsets = [0, 36], sizes = [32, 288], strides = [1, 1]} : vector<32x384xf32> to vector<32x288xf32>
    %c192 = arith.constant 192 : index
    %c0_15 = arith.constant 0 : index
    %26 = vector.load %arg10[%c192, %c0_15] : memref<288x288xf32, #tpu.memory_space<vmem>>, vector<32x288xf32>
    tpu.vector_store %arg10[%c192, %c0_15], %25 {strides = array<i32>} : memref<288x288xf32, #tpu.memory_space<vmem>>, vector<32x288xf32>,
    %27 = vector.extract_strided_slice %12 {offsets = [0, 37], sizes = [32, 288], strides = [1, 1]} : vector<32x384xf32> to vector<32x288xf32>
    %c224 = arith.constant 224 : index
    %c0_16 = arith.constant 0 : index
    %28 = vector.load %arg10[%c224, %c0_16] : memref<288x288xf32, #tpu.memory_space<vmem>>, vector<32x288xf32>
    tpu.vector_store %arg10[%c224, %c0_16], %27 {strides = array<i32>} : memref<288x288xf32, #tpu.memory_space<vmem>>, vector<32x288xf32>,
    %29 = vector.extract_strided_slice %12 {offsets = [0, 38], sizes = [32, 288], strides = [1, 1]} : vector<32x384xf32> to vector<32x288xf32>
    %c256 = arith.constant 256 : index
    %c0_17 = arith.constant 0 : index
    %30 = vector.load %arg10[%c256, %c0_17] : memref<288x288xf32, #tpu.memory_space<vmem>>, vector<32x288xf32>
    tpu.vector_store %arg10[%c256, %c0_17], %29 {strides = array<i32>} : memref<288x288xf32, #tpu.memory_space<vmem>>, vector<32x288xf32>,
    %c0_18 = arith.constant 0 : index
    %c0_19 = arith.constant 0 : index
    %31 = vector.load %arg4[%c0_18, %c0_19] : memref<32x288xf32, #tpu.memory_space<vmem>>, vector<32x288xf32>
    %c0_20 = arith.constant 0 : index
    %c0_21 = arith.constant 0 : index
    %32 = vector.load %arg10[%c0_20, %c0_21] : memref<288x288xf32, #tpu.memory_space<vmem>>, vector<288x288xf32>
    %cst_22 = arith.constant dense<0.000000e+00> : vector<32x288xf32>
    %33 = tpu.matmul %31, %32, %cst_22 {dimension_numbers = #tpu.dot_dimension_numbers<[1], [0], [0], [1], [0, 0, 1, 1], [], []>} : vector<32x288xf32>, vector<288x288xf32>, vector<32x288xf32> -> vector<32x288xf32>
    %c0_23 = arith.constant 0 : index
    %c0_24 = arith.constant 0 : index
    %34 = vector.load %arg5[%c0_23, %c0_24] : memref<32x1xf32, #tpu.memory_space<vmem>>, vector<32x1xf32>
    %35 = vector.broadcast %34 : vector<32x1xf32> to vector<32x288xf32>
    %36 = arith.addf %33, %35 : vector<32x288xf32>
    %c0_25 = arith.constant 0 : index
    %c19 = arith.constant 19 : index
    %37 = vector.load %arg6[%c0_25, %c19] : memref<1x384xf32, #tpu.memory_space<vmem>>, vector<1x288xf32>
    %38 = vector.broadcast %37 : vector<1x288xf32> to vector<32x288xf32>
    %39 = arith.mulf %36, %38 : vector<32x288xf32>
    %cst_26 = arith.constant dense<0.000000e+00> : vector<32xf32>
    %40 = vector.multi_reduction <add>, %39, %cst_26 [1] : vector<32x288xf32> to vector<32xf32>
    %41 = vector.shape_cast %40 : vector<32xf32> to vector<32x1xf32>
    %c0_27 = arith.constant 0 : index
    %c0_28 = arith.constant 0 : index
    %c0_29 = arith.constant 0 : index
    %42 = vector.load %arg8[%c0_27, %c0_28, %c0_29] : memref<1x32x1xf32, #tpu.memory_space<vmem>>, vector<1x32x1xf32>
    %43 = vector.shape_cast %42 : vector<1x32x1xf32> to vector<32x1xf32>
    %44 = vector.shape_cast %41 : vector<32x1xf32> to vector<1x32x1xf32>
    tpu.vector_store %arg8[%c0_27, %c0_28, %c0_29], %44 {strides = array<i32>} : memref<1x32x1xf32, #tpu.memory_space<vmem>>, vector<1x32x1xf32>,
    %45 = arith.mulf %39, %39 : vector<32x288xf32>
    %cst_30 = arith.constant dense<0.000000e+00> : vector<32xf32>
    %46 = vector.multi_reduction <add>, %45, %cst_30 [1] : vector<32x288xf32> to vector<32xf32>
    %47 = vector.shape_cast %46 : vector<32xf32> to vector<32x1xf32>
    %c0_31 = arith.constant 0 : index
    %c0_32 = arith.constant 0 : index
    %c0_33 = arith.constant 0 : index
    %48 = vector.load %arg9[%c0_31, %c0_32, %c0_33] : memref<1x32x1xf32, #tpu.memory_space<vmem>>, vector<1x32x1xf32>
    %49 = vector.shape_cast %48 : vector<1x32x1xf32> to vector<32x1xf32>
    %50 = vector.shape_cast %47 : vector<32x1xf32> to vector<1x32x1xf32>
    tpu.vector_store %arg9[%c0_31, %c0_32, %c0_33], %50 {strides = array<i32>} : memref<1x32x1xf32, #tpu.memory_space<vmem>>, vector<1x32x1xf32>,
    %c0_34 = arith.constant 0 : index
    %c0_35 = arith.constant 0 : index
    %c0_36 = arith.constant 0 : index
    %51 = vector.load %arg7[%c0_34, %c0_35, %c0_36] : memref<1x32x288xf32, #tpu.memory_space<vmem>>, vector<1x32x288xf32>
    %52 = vector.shape_cast %51 : vector<1x32x288xf32> to vector<32x288xf32>
    %53 = vector.shape_cast %36 : vector<32x288xf32> to vector<1x32x288xf32>
    tpu.vector_store %arg7[%c0_34, %c0_35, %c0_36], %53 {strides = array<i32>} : memref<1x32x288xf32, #tpu.memory_space<vmem>>, vector<1x32x288xf32>,
    return
  }
  func.func @transform_0(%arg0: i32) -> (i32, i32, i32) {
    %c0_i32 = arith.constant 0 : i32
    %c0_i32_0 = arith.constant 0 : i32
    %c0_i32_1 = arith.constant 0 : i32
    return %arg0, %c0_i32, %c0_i32_0 : i32, i32, i32
  }
  func.func @transform_1(%arg0: i32) -> (i32, i32) {
    %c0_i32 = arith.constant 0 : i32
    %c0_i32_0 = arith.constant 0 : i32
    %c0_i32_1 = arith.constant 0 : i32
    return %c0_i32, %c0_i32_0 : i32, i32
  }
  func.func @transform_2(%arg0: i32) -> (i32, i32) {
    %c0_i32 = arith.constant 0 : i32
    %c0_i32_0 = arith.constant 0 : i32
    %c0_i32_1 = arith.constant 0 : i32
    return %c0_i32, %c0_i32_0 : i32, i32
  }
  func.func @transform_3(%arg0: i32) -> (i32, i32) {
    %c0_i32 = arith.constant 0 : i32
    %c0_i32_0 = arith.constant 0 : i32
    %c0_i32_1 = arith.constant 0 : i32
    return %c0_i32, %c0_i32_0 : i32, i32
  }
  func.func @transform_4(%arg0: i32) -> (i32, i32) {
    %c0_i32 = arith.constant 0 : i32
    %c0_i32_0 = arith.constant 0 : i32
    %c0_i32_1 = arith.constant 0 : i32
    return %c0_i32, %c0_i32_0 : i32, i32
  }
  func.func @transform_5(%arg0: i32) -> (i32, i32) {
    %c0_i32 = arith.constant 0 : i32
    %c0_i32_0 = arith.constant 0 : i32
    %c0_i32_1 = arith.constant 0 : i32
    return %c0_i32, %c0_i32_0 : i32, i32
  }
  func.func @transform_6(%arg0: i32) -> (i32, i32, i32) {
    %c0_i32 = arith.constant 0 : i32
    %c0_i32_0 = arith.constant 0 : i32
    %c0_i32_1 = arith.constant 0 : i32
    return %arg0, %c0_i32, %c0_i32_0 : i32, i32, i32
  }
  func.func @transform_7(%arg0: i32) -> (i32, i32, i32) {
    %c0_i32 = arith.constant 0 : i32
    %c0_i32_0 = arith.constant 0 : i32
    %c0_i32_1 = arith.constant 0 : i32
    return %arg0, %c0_i32, %c0_i32_0 : i32, i32, i32
  }
  func.func @transform_8(%arg0: i32) -> (i32, i32, i32) {
    %c0_i32 = arith.constant 0 : i32
    %c0_i32_0 = arith.constant 0 : i32
    %c0_i32_1 = arith.constant 0 : i32
    return %arg0, %c0_i32, %c0_i32_0 : i32, i32, i32
  }
}

module attributes {stable_mosaic.version = 11 : i64} {
  func.func @_bn_relu_conv_kernel(%arg0: i32, %arg1: memref<1x16x384xf32, #tpu.memory_space<vmem>>, %arg2: memref<16x1xf32, #tpu.memory_space<vmem>>, %arg3: memref<16x1xf32, #tpu.memory_space<vmem>>, %arg4: memref<32x144xf32, #tpu.memory_space<vmem>>, %arg5: memref<32x1xf32, #tpu.memory_space<vmem>>, %arg6: memref<1x384xf32, #tpu.memory_space<vmem>>, %arg7: memref<1x32x288xf32, #tpu.memory_space<vmem>>, %arg8: memref<1x32x288xf32, #tpu.memory_space<vmem>>, %arg9: memref<1x32x1xf32, #tpu.memory_space<vmem>>, %arg10: memref<1x32x1xf32, #tpu.memory_space<vmem>>, %arg11: memref<144x288xf32, #tpu.memory_space<vmem>>) attributes {dimension_semantics = [#tpu.dimension_semantics<parallel>], iteration_bounds = array<i64: 2>, scalar_prefetch = 0 : i64, scratch_operands = 1 : i64, tpu.core_type = #tpu.core_type<tc>, window_params = [{transform_indices = @transform_0, window_bounds = array<i64: 1, 16, 384>}, {pipeline_mode = #tpu.pipeline_mode<synchronous>, transform_indices = @transform_1, window_bounds = array<i64: 16, 1>}, {pipeline_mode = #tpu.pipeline_mode<synchronous>, transform_indices = @transform_2, window_bounds = array<i64: 16, 1>}, {pipeline_mode = #tpu.pipeline_mode<synchronous>, transform_indices = @transform_3, window_bounds = array<i64: 32, 144>}, {pipeline_mode = #tpu.pipeline_mode<synchronous>, transform_indices = @transform_4, window_bounds = array<i64: 32, 1>}, {pipeline_mode = #tpu.pipeline_mode<synchronous>, transform_indices = @transform_5, window_bounds = array<i64: 1, 384>}, {transform_indices = @transform_6, window_bounds = array<i64: 1, 32, 288>}, {transform_indices = @transform_7, window_bounds = array<i64: 1, 32, 288>}, {transform_indices = @transform_8, window_bounds = array<i64: 1, 32, 1>}, {transform_indices = @transform_9, window_bounds = array<i64: 1, 32, 1>}]} {
    %c0 = arith.constant 0 : index
    %c0_0 = arith.constant 0 : index
    %c0_1 = arith.constant 0 : index
    %0 = vector.load %arg1[%c0, %c0_0, %c0_1] : memref<1x16x384xf32, #tpu.memory_space<vmem>>, vector<1x16x384xf32>
    %1 = vector.shape_cast %0 : vector<1x16x384xf32> to vector<16x384xf32>
    %c0_2 = arith.constant 0 : index
    %c0_3 = arith.constant 0 : index
    %2 = vector.load %arg2[%c0_2, %c0_3] : memref<16x1xf32, #tpu.memory_space<vmem>>, vector<16x1xf32>
    %3 = vector.broadcast %2 : vector<16x1xf32> to vector<16x384xf32>
    %4 = arith.mulf %1, %3 : vector<16x384xf32>
    %c0_4 = arith.constant 0 : index
    %c0_5 = arith.constant 0 : index
    %5 = vector.load %arg3[%c0_4, %c0_5] : memref<16x1xf32, #tpu.memory_space<vmem>>, vector<16x1xf32>
    %6 = vector.broadcast %5 : vector<16x1xf32> to vector<16x384xf32>
    %7 = arith.addf %4, %6 : vector<16x384xf32>
    %cst = arith.constant 0.000000e+00 : f32
    %8 = vector.broadcast %cst : f32 to vector<16x384xf32>
    %9 = arith.maximumf %7, %8 : vector<16x384xf32>
    %c0_6 = arith.constant 0 : index
    %c0_7 = arith.constant 0 : index
    %10 = vector.load %arg6[%c0_6, %c0_7] : memref<1x384xf32, #tpu.memory_space<vmem>>, vector<1x384xf32>
    %11 = vector.broadcast %10 : vector<1x384xf32> to vector<16x384xf32>
    %12 = arith.mulf %9, %11 : vector<16x384xf32>
    %13 = vector.extract_strided_slice %12 {offsets = [0, 0], sizes = [16, 288], strides = [1, 1]} : vector<16x384xf32> to vector<16x288xf32>
    %c0_8 = arith.constant 0 : index
    %c0_9 = arith.constant 0 : index
    %14 = vector.load %arg11[%c0_8, %c0_9] : memref<144x288xf32, #tpu.memory_space<vmem>>, vector<16x288xf32>
    tpu.vector_store %arg11[%c0_8, %c0_9], %13 {strides = array<i32>} : memref<144x288xf32, #tpu.memory_space<vmem>>, vector<16x288xf32>,
    %15 = vector.extract_strided_slice %12 {offsets = [0, 1], sizes = [16, 288], strides = [1, 1]} : vector<16x384xf32> to vector<16x288xf32>
    %c16 = arith.constant 16 : index
    %c0_10 = arith.constant 0 : index
    %16 = vector.load %arg11[%c16, %c0_10] : memref<144x288xf32, #tpu.memory_space<vmem>>, vector<16x288xf32>
    tpu.vector_store %arg11[%c16, %c0_10], %15 {strides = array<i32>} : memref<144x288xf32, #tpu.memory_space<vmem>>, vector<16x288xf32>,
    %17 = vector.extract_strided_slice %12 {offsets = [0, 2], sizes = [16, 288], strides = [1, 1]} : vector<16x384xf32> to vector<16x288xf32>
    %c32 = arith.constant 32 : index
    %c0_11 = arith.constant 0 : index
    %18 = vector.load %arg11[%c32, %c0_11] : memref<144x288xf32, #tpu.memory_space<vmem>>, vector<16x288xf32>
    tpu.vector_store %arg11[%c32, %c0_11], %17 {strides = array<i32>} : memref<144x288xf32, #tpu.memory_space<vmem>>, vector<16x288xf32>,
    %19 = vector.extract_strided_slice %12 {offsets = [0, 18], sizes = [16, 288], strides = [1, 1]} : vector<16x384xf32> to vector<16x288xf32>
    %c48 = arith.constant 48 : index
    %c0_12 = arith.constant 0 : index
    %20 = vector.load %arg11[%c48, %c0_12] : memref<144x288xf32, #tpu.memory_space<vmem>>, vector<16x288xf32>
    tpu.vector_store %arg11[%c48, %c0_12], %19 {strides = array<i32>} : memref<144x288xf32, #tpu.memory_space<vmem>>, vector<16x288xf32>,
    %21 = vector.extract_strided_slice %12 {offsets = [0, 19], sizes = [16, 288], strides = [1, 1]} : vector<16x384xf32> to vector<16x288xf32>
    %c64 = arith.constant 64 : index
    %c0_13 = arith.constant 0 : index
    %22 = vector.load %arg11[%c64, %c0_13] : memref<144x288xf32, #tpu.memory_space<vmem>>, vector<16x288xf32>
    tpu.vector_store %arg11[%c64, %c0_13], %21 {strides = array<i32>} : memref<144x288xf32, #tpu.memory_space<vmem>>, vector<16x288xf32>,
    %23 = vector.extract_strided_slice %12 {offsets = [0, 20], sizes = [16, 288], strides = [1, 1]} : vector<16x384xf32> to vector<16x288xf32>
    %c80 = arith.constant 80 : index
    %c0_14 = arith.constant 0 : index
    %24 = vector.load %arg11[%c80, %c0_14] : memref<144x288xf32, #tpu.memory_space<vmem>>, vector<16x288xf32>
    tpu.vector_store %arg11[%c80, %c0_14], %23 {strides = array<i32>} : memref<144x288xf32, #tpu.memory_space<vmem>>, vector<16x288xf32>,
    %25 = vector.extract_strided_slice %12 {offsets = [0, 36], sizes = [16, 288], strides = [1, 1]} : vector<16x384xf32> to vector<16x288xf32>
    %c96 = arith.constant 96 : index
    %c0_15 = arith.constant 0 : index
    %26 = vector.load %arg11[%c96, %c0_15] : memref<144x288xf32, #tpu.memory_space<vmem>>, vector<16x288xf32>
    tpu.vector_store %arg11[%c96, %c0_15], %25 {strides = array<i32>} : memref<144x288xf32, #tpu.memory_space<vmem>>, vector<16x288xf32>,
    %27 = vector.extract_strided_slice %12 {offsets = [0, 37], sizes = [16, 288], strides = [1, 1]} : vector<16x384xf32> to vector<16x288xf32>
    %c112 = arith.constant 112 : index
    %c0_16 = arith.constant 0 : index
    %28 = vector.load %arg11[%c112, %c0_16] : memref<144x288xf32, #tpu.memory_space<vmem>>, vector<16x288xf32>
    tpu.vector_store %arg11[%c112, %c0_16], %27 {strides = array<i32>} : memref<144x288xf32, #tpu.memory_space<vmem>>, vector<16x288xf32>,
    %29 = vector.extract_strided_slice %12 {offsets = [0, 38], sizes = [16, 288], strides = [1, 1]} : vector<16x384xf32> to vector<16x288xf32>
    %c128 = arith.constant 128 : index
    %c0_17 = arith.constant 0 : index
    %30 = vector.load %arg11[%c128, %c0_17] : memref<144x288xf32, #tpu.memory_space<vmem>>, vector<16x288xf32>
    tpu.vector_store %arg11[%c128, %c0_17], %29 {strides = array<i32>} : memref<144x288xf32, #tpu.memory_space<vmem>>, vector<16x288xf32>,
    %c0_18 = arith.constant 0 : index
    %c0_19 = arith.constant 0 : index
    %31 = vector.load %arg4[%c0_18, %c0_19] : memref<32x144xf32, #tpu.memory_space<vmem>>, vector<32x144xf32>
    %c0_20 = arith.constant 0 : index
    %c0_21 = arith.constant 0 : index
    %32 = vector.load %arg11[%c0_20, %c0_21] : memref<144x288xf32, #tpu.memory_space<vmem>>, vector<144x288xf32>
    %cst_22 = arith.constant dense<0.000000e+00> : vector<32x288xf32>
    %33 = tpu.matmul %31, %32, %cst_22 {dimension_numbers = #tpu.dot_dimension_numbers<[1], [0], [0], [1], [0, 0, 1, 1], [], []>} : vector<32x144xf32>, vector<144x288xf32>, vector<32x288xf32> -> vector<32x288xf32>
    %c0_23 = arith.constant 0 : index
    %c0_24 = arith.constant 0 : index
    %34 = vector.load %arg5[%c0_23, %c0_24] : memref<32x1xf32, #tpu.memory_space<vmem>>, vector<32x1xf32>
    %35 = vector.broadcast %34 : vector<32x1xf32> to vector<32x288xf32>
    %36 = arith.addf %33, %35 : vector<32x288xf32>
    %c0_25 = arith.constant 0 : index
    %c19 = arith.constant 19 : index
    %37 = vector.load %arg6[%c0_25, %c19] : memref<1x384xf32, #tpu.memory_space<vmem>>, vector<1x288xf32>
    %38 = vector.broadcast %37 : vector<1x288xf32> to vector<32x288xf32>
    %39 = arith.mulf %36, %38 : vector<32x288xf32>
    %cst_26 = arith.constant dense<0.000000e+00> : vector<32xf32>
    %40 = vector.multi_reduction <add>, %39, %cst_26 [1] : vector<32x288xf32> to vector<32xf32>
    %41 = vector.shape_cast %40 : vector<32xf32> to vector<32x1xf32>
    %c0_27 = arith.constant 0 : index
    %c0_28 = arith.constant 0 : index
    %c0_29 = arith.constant 0 : index
    %42 = vector.load %arg9[%c0_27, %c0_28, %c0_29] : memref<1x32x1xf32, #tpu.memory_space<vmem>>, vector<1x32x1xf32>
    %43 = vector.shape_cast %42 : vector<1x32x1xf32> to vector<32x1xf32>
    %44 = vector.shape_cast %41 : vector<32x1xf32> to vector<1x32x1xf32>
    tpu.vector_store %arg9[%c0_27, %c0_28, %c0_29], %44 {strides = array<i32>} : memref<1x32x1xf32, #tpu.memory_space<vmem>>, vector<1x32x1xf32>,
    %45 = arith.mulf %39, %39 : vector<32x288xf32>
    %cst_30 = arith.constant dense<0.000000e+00> : vector<32xf32>
    %46 = vector.multi_reduction <add>, %45, %cst_30 [1] : vector<32x288xf32> to vector<32xf32>
    %47 = vector.shape_cast %46 : vector<32xf32> to vector<32x1xf32>
    %c0_31 = arith.constant 0 : index
    %c0_32 = arith.constant 0 : index
    %c0_33 = arith.constant 0 : index
    %48 = vector.load %arg10[%c0_31, %c0_32, %c0_33] : memref<1x32x1xf32, #tpu.memory_space<vmem>>, vector<1x32x1xf32>
    %49 = vector.shape_cast %48 : vector<1x32x1xf32> to vector<32x1xf32>
    %50 = vector.shape_cast %47 : vector<32x1xf32> to vector<1x32x1xf32>
    tpu.vector_store %arg10[%c0_31, %c0_32, %c0_33], %50 {strides = array<i32>} : memref<1x32x1xf32, #tpu.memory_space<vmem>>, vector<1x32x1xf32>,
    %c0_34 = arith.constant 0 : index
    %c0_35 = arith.constant 0 : index
    %c0_36 = arith.constant 0 : index
    %51 = vector.load %arg7[%c0_34, %c0_35, %c0_36] : memref<1x32x288xf32, #tpu.memory_space<vmem>>, vector<1x32x288xf32>
    %52 = vector.shape_cast %51 : vector<1x32x288xf32> to vector<32x288xf32>
    %53 = arith.addf %36, %52 : vector<32x288xf32>
    %c0_37 = arith.constant 0 : index
    %c0_38 = arith.constant 0 : index
    %c0_39 = arith.constant 0 : index
    %54 = vector.load %arg8[%c0_37, %c0_38, %c0_39] : memref<1x32x288xf32, #tpu.memory_space<vmem>>, vector<1x32x288xf32>
    %55 = vector.shape_cast %54 : vector<1x32x288xf32> to vector<32x288xf32>
    %56 = vector.shape_cast %53 : vector<32x288xf32> to vector<1x32x288xf32>
    tpu.vector_store %arg8[%c0_37, %c0_38, %c0_39], %56 {strides = array<i32>} : memref<1x32x288xf32, #tpu.memory_space<vmem>>, vector<1x32x288xf32>,
    return
  }
  func.func @transform_0(%arg0: i32) -> (i32, i32, i32) {
    %c0_i32 = arith.constant 0 : i32
    %c0_i32_0 = arith.constant 0 : i32
    %c0_i32_1 = arith.constant 0 : i32
    return %arg0, %c0_i32, %c0_i32_0 : i32, i32, i32
  }
  func.func @transform_1(%arg0: i32) -> (i32, i32) {
    %c0_i32 = arith.constant 0 : i32
    %c0_i32_0 = arith.constant 0 : i32
    %c0_i32_1 = arith.constant 0 : i32
    return %c0_i32, %c0_i32_0 : i32, i32
  }
  func.func @transform_2(%arg0: i32) -> (i32, i32) {
    %c0_i32 = arith.constant 0 : i32
    %c0_i32_0 = arith.constant 0 : i32
    %c0_i32_1 = arith.constant 0 : i32
    return %c0_i32, %c0_i32_0 : i32, i32
  }
  func.func @transform_3(%arg0: i32) -> (i32, i32) {
    %c0_i32 = arith.constant 0 : i32
    %c0_i32_0 = arith.constant 0 : i32
    %c0_i32_1 = arith.constant 0 : i32
    return %c0_i32, %c0_i32_0 : i32, i32
  }
  func.func @transform_4(%arg0: i32) -> (i32, i32) {
    %c0_i32 = arith.constant 0 : i32
    %c0_i32_0 = arith.constant 0 : i32
    %c0_i32_1 = arith.constant 0 : i32
    return %c0_i32, %c0_i32_0 : i32, i32
  }
  func.func @transform_5(%arg0: i32) -> (i32, i32) {
    %c0_i32 = arith.constant 0 : i32
    %c0_i32_0 = arith.constant 0 : i32
    %c0_i32_1 = arith.constant 0 : i32
    return %c0_i32, %c0_i32_0 : i32, i32
  }
  func.func @transform_6(%arg0: i32) -> (i32, i32, i32) {
    %c0_i32 = arith.constant 0 : i32
    %c0_i32_0 = arith.constant 0 : i32
    %c0_i32_1 = arith.constant 0 : i32
    return %arg0, %c0_i32, %c0_i32_0 : i32, i32, i32
  }
  func.func @transform_7(%arg0: i32) -> (i32, i32, i32) {
    %c0_i32 = arith.constant 0 : i32
    %c0_i32_0 = arith.constant 0 : i32
    %c0_i32_1 = arith.constant 0 : i32
    return %arg0, %c0_i32, %c0_i32_0 : i32, i32, i32
  }
  func.func @transform_8(%arg0: i32) -> (i32, i32, i32) {
    %c0_i32 = arith.constant 0 : i32
    %c0_i32_0 = arith.constant 0 : i32
    %c0_i32_1 = arith.constant 0 : i32
    return %arg0, %c0_i32, %c0_i32_0 : i32, i32, i32
  }
  func.func @transform_9(%arg0: i32) -> (i32, i32, i32) {
    %c0_i32 = arith.constant 0 : i32
    %c0_i32_0 = arith.constant 0 : i32
    %c0_i32_1 = arith.constant 0 : i32
    return %arg0, %c0_i32, %c0_i32_0 : i32, i32, i32
  }
}

</mosaic_0001>

<llo_original>
// kernel: resblock1_forward.4
$region0: #{resblock1_forward.4}
  #allocation0 [shape = 'u32[]', space=smem, size = 0x4, offset = 0x4, fixed_abs, tag = 'smem constant byte address 0x4 - core index']
  #allocation1 [shape = 'u32[72,128]{1,0:T(1,128)}', space=vmem, size = 0x9000, scoped, tag = 'internal scratch']
  %s0 = inlined_call_operand.vmem [shape: f32[2,16,384], index: 0, kind: input, shape index: {}]
  %s1 = inlined_call_operand.vmem [shape: f32[2,16,1], index: 1, kind: output, shape index: {0}]
  %s2 = inlined_call_operand.vmem [shape: f32[2,16,1], index: 2, kind: output, shape index: {1}]
  %3 = xla_tuple %s1, %s2
  %s4 = sld [smem:[#allocation0]]
  $region45: #{resblock1_forward.4} parent=0
    _
  %s6 = ssub.s32 1, %s4
  %s7 = scalar_select 0, %s6, %s4
  loop: start=0, step=1, limit=4
  $region2: #{resblock1_forward.4} parent=0 // loop_pre_header
    _
  $region3: #{resblock1_forward.4} parent=0 // loop_header
    %s9 = sphi 0, %s13
    %p10 = scmp.ge.s32.totalorder %s9, 4
    %s19 = sphi 0, %s21
    %s22 = sphi 0, %s19
    %s23 = sphi 0, %s22
    %s39 = sphi 0, %s23
    %s45 = sphi 0, %s47
    %s48 = sphi 0, %s45
    %s49 = sphi 0, %s48
    %s65 = sphi 0, %s49
    %s71 = sphi 0, %s73
    %s74 = sphi 0, %s71
    %s75 = sphi 0, %s74
    %s91 = sphi 0, %s75
  $region4: #{resblock1_forward.4} parent=0 // loop_header_branch
    %12 = sbr.rel (%p10) target = $region8
  $region5: #{resblock1_forward.4} parent=0 // loop_body
    %s14 = ssub.s32 %s9, 1
    %s15 = ssub.s32 %s9, 2
    %s16 = sadd.s32 %s9, 1
    %s17 = ssub.s32 %s9, %s16
    %p18 = scmp.eq.s32.totalorder %s17, 0
    %s20 = sadd.s32 %s19, 1
    %s21 = scalar_select %p18, %s19, %s20
    %p24 = pneg %p18
    %p25 = scmp.eq.s32.totalorder %s9, 1
    %p26 = por %p24, %p25
    %p27 = scmp.ne.s32.totalorder %s19, %s22
    %p28 = scmp.eq.s32.totalorder %s9, 0
    %p29 = por %p27, %p28
    %p30 = scmp.ne.s32.totalorder %s19, %s22
    %p31 = scmp.eq.s32.totalorder %s14, 1
    %p32 = por %p30, %p31
    %p33 = scmp.ne.s32.totalorder %s22, %s23
    %p34 = scmp.eq.s32.totalorder %s14, 0
    %p35 = por %p33, %p34
    %p36 = scmp.ne.s32.totalorder %s22, %s23
    %p37 = scmp.eq.s32.totalorder %s15, 1
    %p38 = por %p36, %p37
    %p40 = scmp.ne.s32.totalorder %s23, %s39
    %p41 = scmp.eq.s32.totalorder %s15, 0
    %p42 = por %p40, %p41
    %s43 = ssub.s32 %s9, %s16
    %p44 = scmp.eq.s32.totalorder %s43, 0
    %s46 = sadd.s32 %s45, 1
    %s47 = scalar_select %p44, %s45, %s46
    %p50 = pneg %p44
    %p51 = scmp.eq.s32.totalorder %s9, 1
    %p52 = por %p50, %p51
    %p53 = scmp.ne.s32.totalorder %s45, %s48
    %p54 = scmp.eq.s32.totalorder %s9, 0
    %p55 = por %p53, %p54
    %p56 = scmp.ne.s32.totalorder %s45, %s48
    %p57 = scmp.eq.s32.totalorder %s14, 1
    %p58 = por %p56, %p57
    %p59 = scmp.ne.s32.totalorder %s48, %s49
    %p60 = scmp.eq.s32.totalorder %s14, 0
    %p61 = por %p59, %p60
    %p62 = scmp.ne.s32.totalorder %s48, %s49
    %p63 = scmp.eq.s32.totalorder %s15, 1
    %p64 = por %p62, %p63
    %p66 = scmp.ne.s32.totalorder %s49, %s65
    %p67 = scmp.eq.s32.totalorder %s15, 0
    %p68 = por %p66, %p67
    %s69 = ssub.s32 %s9, %s16
    %p70 = scmp.eq.s32.totalorder %s69, 0
    %s72 = sadd.s32 %s71, 1
    %s73 = scalar_select %p70, %s71, %s72
    %p76 = pneg %p70
    %p77 = scmp.eq.s32.totalorder %s9, 1
    %p78 = por %p76, %p77
    %p79 = scmp.ne.s32.totalorder %s71, %s74
    %p80 = scmp.eq.s32.totalorder %s9, 0
    %p81 = por %p79, %p80
    %p82 = scmp.ne.s32.totalorder %s71, %s74
    %p83 = scmp.eq.s32.totalorder %s14, 1
    %p84 = por %p82, %p83
    %p85 = scmp.ne.s32.totalorder %s74, %s75
    %p86 = scmp.eq.s32.totalorder %s14, 0
    %p87 = por %p85, %p86
    %p88 = scmp.ne.s32.totalorder %s74, %s75
    %p89 = scmp.eq.s32.totalorder %s15, 1
    %p90 = por %p88, %p89
    %p92 = scmp.ne.s32.totalorder %s75, %s91
    %p93 = scmp.eq.s32.totalorder %s15, 0
    %p94 = por %p92, %p93
    %p95 = scmp.le.s32.totalorder 1, %s9
    %p96 = scmp.lt.s32.totalorder %s9, 3
    %p97 = pnand %p95, %p96
    %p98 = pneg %p97
    // Predicated region
    $region9: #{resblock1_forward.4} parent=5 // pred_check
      _
    $region10: #{resblock1_forward.4} parent=5 // pred_check_branch
      %100 = sbr.rel (%p97) target = $region12
    $region11: #{resblock1_forward.4} parent=5 // pred_region
      %s101 = ssub.s32 %s9, 1
    $region12: #{resblock1_forward.4} parent=5 // pred_fallthru
      _
    %p102 = scmp.lt.s32.totalorder %s9, 2
    // Predicated region
    $region13: #{resblock1_forward.4} parent=5 // pred_check
      %p103 = pneg %p102
    $region14: #{resblock1_forward.4} parent=5 // pred_check_branch
      %105 = sbr.rel (%p103) target = $region16
    $region15: #{resblock1_forward.4} parent=5 // pred_region
      // Predicated region
      $region17: #{resblock1_forward.4} parent=15 // pred_check
        %p106 = pneg %p29
      $region18: #{resblock1_forward.4} parent=15 // pred_check_branch
        %108 = sbr.rel (%p106) target = $region20
      $region19: #{resblock1_forward.4} parent=15 // pred_region
        %p109 = scmp.lt.s32.totalorder %s9, 1
        %s110 = scalar_select %p109, %s9, 1
        %s111 = smul.addr %s110, 6
        %s112 = smul.addr %s111, 8
        %s113 = scalar_lea.vmem %s0, %s112
      $region20: #{resblock1_forward.4} parent=15 // pred_fallthru
        _
    $region16: #{resblock1_forward.4} parent=5 // pred_fallthru
      _
    %p114 = scmp.le.s32.totalorder 1, %s9
    %p115 = scmp.lt.s32.totalorder %s9, 3
    %p116 = pnand %p114, %p115
    %p117 = pneg %p116
    // Predicated region
    $region21: #{resblock1_forward.4} parent=5 // pred_check
      _
    $region22: #{resblock1_forward.4} parent=5 // pred_check_branch
      %119 = sbr.rel (%p116) target = $region24
    $region23: #{resblock1_forward.4} parent=5 // pred_region
      %s120 = ssub.s32 %s9, 1
      %p121 = scmp.lt.s32.totalorder %s14, 1
      %s122 = scalar_select %p121, %s14, 1
      %s123 = smul.addr %s122, 6
      %s124 = smul.addr %s123, 8
      %s125 = scalar_lea.vmem %s0, %s124
      %p126 = pneg %p35
      %p127 = pneg %p32
      %p128 = pneg %p61
      %p129 = pneg %p58
      %p130 = scmp.lt.s32.totalorder %s14, 1
      %s131 = scalar_select %p130, %s14, 1
      %s132 = smul.addr %s131, 2
      %s133 = smul.addr %s132, 8
      %s134 = scalar_lea.vmem %s1, %s133
      %p135 = pneg %p87
      %p136 = pneg %p84
      %p137 = scmp.lt.s32.totalorder %s14, 1
      %s138 = scalar_select %p137, %s14, 1
      %s139 = smul.addr %s138, 2
      %s140 = smul.addr %s139, 8
      %s141 = scalar_lea.vmem %s2, %s140
      %p142 = scmp.lt.s32.totalorder %s14, 1
      %s143 = scalar_select %p142, %s14, 1
      %s144 = smul.addr %s143, 6
      %s145 = smul.addr %s144, 8
      %s146 = scalar_lea.vmem %s0, %s145
      %p147 = scmp.lt.s32.totalorder %s14, 1
      %s148 = scalar_select %p147, %s14, 1
      %s149 = smul.addr %s148, 2
      %s150 = smul.addr %s149, 8
      %s151 = scalar_lea.vmem %s1, %s150
      %p152 = scmp.lt.s32.totalorder %s14, 1
      %s153 = scalar_select %p152, %s14, 1
      %s154 = smul.addr %s153, 2
      %s155 = smul.addr %s154, 8
      %s156 = scalar_lea.vmem %s2, %s155
      %v157 = vld [vmem:[%s146] sm:$0xff]
      %v158 = vld [vmem:[%s146 + $0x8] sm:$0xff]
      %v159 = vld [vmem:[%s146 + $0x10] sm:$0xff]
      %v160 = vld [vmem:[%s146 + $0x18] sm:$0xff]
      %v161 = vld [vmem:[%s146 + $0x20] sm:$0xff]
      %v162 = vld [vmem:[%s146 + $0x28] sm:$0xff]
      %v163 = vadd.f32 %v157, %v158
      %v164 = vadd.f32 %v163, %v159
      %165 = vadd.xlane.f32.xlu0 %v164
      %v166 = vpop.xlane.xlu0 %165
      %v167 = vadd.f32 %v160, %v161
      %v168 = vadd.f32 %v167, %v162
      %169 = vadd.xlane.f32.xlu0 %v168
      %v170 = vpop.xlane.xlu0 %169
      %vm171 = vcmask 7168
      %172 = vst.msk [vmem:[%s151] sm:$0xff] %vm171, %v166
      %173 = vst.msk [vmem:[%s151 + $0x8] sm:$0xff] %vm171, %v170
      %v174 = vmul.f32 %v157, %v157
      %v175 = vmul.f32 %v158, %v158
      %v176 = vmul.f32 %v159, %v159
      %v177 = vmul.f32 %v160, %v160
      %v178 = vmul.f32 %v161, %v161
      %v179 = vmul.f32 %v162, %v162
      %v180 = vadd.f32 %v174, %v175
      %v181 = vadd.f32 %v180, %v176
      %182 = vadd.xlane.f32.xlu0 %v181
      %v183 = vpop.xlane.xlu0 %182
      %v184 = vadd.f32 %v177, %v178
      %v185 = vadd.f32 %v184, %v179
      %186 = vadd.xlane.f32.xlu0 %v185
      %v187 = vpop.xlane.xlu0 %186
      %188 = vst.msk [vmem:[%s156] sm:$0xff] %vm171, %v183
      %189 = vst.msk [vmem:[%s156 + $0x8] sm:$0xff] %vm171, %v187
      %p190 = scmp.lt.s32.totalorder %s14, 1
      %s191 = scalar_select %p190, %s14, 1
      %s192 = smul.addr %s191, 2
      %s193 = smul.addr %s192, 8
      %s194 = scalar_lea.vmem %s1, %s193
      %p195 = scmp.lt.s32.totalorder %s14, 1
      %s196 = scalar_select %p195, %s14, 1
      %s197 = smul.addr %s196, 2
      %s198 = smul.addr %s197, 8
      %s199 = scalar_lea.vmem %s2, %s198
      // Predicated region
      $region25: #{resblock1_forward.4} parent=23 // pred_check
        %p200 = pneg %p58
      $region26: #{resblock1_forward.4} parent=23 // pred_check_branch
        %202 = sbr.rel (%p200) target = $region28
      $region27: #{resblock1_forward.4} parent=23 // pred_region
        _
      $region28: #{resblock1_forward.4} parent=23 // pred_fallthru
        _
      // Predicated region
      $region29: #{resblock1_forward.4} parent=23 // pred_check
        %p203 = pneg %p84
      $region30: #{resblock1_forward.4} parent=23 // pred_check_branch
        %205 = sbr.rel (%p203) target = $region32
      $region31: #{resblock1_forward.4} parent=23 // pred_region
        _
      $region32: #{resblock1_forward.4} parent=23 // pred_fallthru
        _
    $region24: #{resblock1_forward.4} parent=5 // pred_fallthru
      _
    %p206 = scmp.le.s32.totalorder 2, %s9
    // Predicated region
    $region33: #{resblock1_forward.4} parent=5 // pred_check
      %p207 = pneg %p206
    $region34: #{resblock1_forward.4} parent=5 // pred_check_branch
      %209 = sbr.rel (%p207) target = $region36
    $region35: #{resblock1_forward.4} parent=5 // pred_region
      %s210 = ssub.s32 %s9, 2
      // Predicated region
      $region37: #{resblock1_forward.4} parent=35 // pred_check
        %p211 = pneg %p64
      $region38: #{resblock1_forward.4} parent=35 // pred_check_branch
        %213 = sbr.rel (%p211) target = $region40
      $region39: #{resblock1_forward.4} parent=35 // pred_region
        %p214 = scmp.lt.s32.totalorder %s15, 1
        %s215 = scalar_select %p214, %s15, 1
        %s216 = smul.addr %s215, 2
        %s217 = smul.addr %s216, 8
        %s218 = scalar_lea.vmem %s1, %s217
      $region40: #{resblock1_forward.4} parent=35 // pred_fallthru
        _
      // Predicated region
      $region41: #{resblock1_forward.4} parent=35 // pred_check
        %p219 = pneg %p90
      $region42: #{resblock1_forward.4} parent=35 // pred_check_branch
        %221 = sbr.rel (%p219) target = $region44
      $region43: #{resblock1_forward.4} parent=35 // pred_region
        %p222 = scmp.lt.s32.totalorder %s15, 1
        %s223 = scalar_select %p222, %s15, 1
        %s224 = smul.addr %s223, 2
        %s225 = smul.addr %s224, 8
        %s226 = scalar_lea.vmem %s2, %s225
      $region44: #{resblock1_forward.4} parent=35 // pred_fallthru
        _
    $region36: #{resblock1_forward.4} parent=5 // pred_fallthru
      _
  $region6: #{resblock1_forward.4} parent=0 // loop_footer
    %s13 = sadd.s32 1, %s9
  $region7: #{resblock1_forward.4} parent=0 // loop_footer_branch
    %8 = sbr.rel target = $region3
  $region8: #{resblock1_forward.4} parent=0 // loop_exit
    _

// kernel: resblock1_forward.5
$region0: #{resblock1_forward.5}
  #allocation0 [shape = 'u32[]', space=smem, size = 0x4, offset = 0x4, fixed_abs, tag = 'smem constant byte address 0x4 - core index']
  #allocation1 [shape = 'u32[72,128]{1,0:T(1,128)}', space=vmem, size = 0x9000, scoped, tag = 'internal scratch']
  #allocation2 [shape = 'f32[144,288]{1,0:T(8,128)}', space=vmem, size = 0x36000, scoped, tag = 'scratch operand']
  %s0 = inlined_call_operand.vmem [shape: f32[2,16,384], index: 0, kind: input, shape index: {}]
  %s1 = inlined_call_operand.vmem [shape: f32[16,1], index: 1, kind: input, shape index: {}]
  %s2 = inlined_call_operand.vmem [shape: f32[16,1], index: 2, kind: input, shape index: {}]
  %s3 = inlined_call_operand.vmem [shape: f32[32,144], index: 3, kind: input, shape index: {}]
  %s4 = inlined_call_operand.vmem [shape: f32[32,1], index: 4, kind: input, shape index: {}]
  %s5 = inlined_call_operand.vmem [shape: f32[1,384], index: 5, kind: input, shape index: {}]
  %s6 = inlined_call_operand.vmem [shape: f32[2,32,288], index: 6, kind: output, shape index: {0}]
  %s7 = inlined_call_operand.vmem [shape: f32[2,32,1], index: 7, kind: output, shape index: {1}]
  %s8 = inlined_call_operand.vmem [shape: f32[2,32,1], index: 8, kind: output, shape index: {2}]
  %9 = xla_tuple %s6, %s7, %s8
  %s10 = sld [smem:[#allocation0]]
  $region73: #{resblock1_forward.5} parent=0
    _
  %s12 = ssub.s32 1, %s10
  %s13 = scalar_select 0, %s12, %s10
  loop: start=0, step=1, limit=4
  $region2: #{resblock1_forward.5} parent=0 // loop_pre_header
    _
  $region3: #{resblock1_forward.5} parent=0 // loop_header
    %s15 = sphi 0, %s19
    %p16 = scmp.ge.s32.totalorder %s15, 4
    %s25 = sphi 0, %s27
    %s28 = sphi 0, %s25
    %s29 = sphi 0, %s28
    %s45 = sphi 0, %s29
    %s49 = sphi 0, %s49
    %s51 = sphi 0, %s49
    %s52 = sphi 0, %s51
    %s66 = sphi 0, %s52
    %s70 = sphi 0, %s70
    %s72 = sphi 0, %s70
    %s73 = sphi 0, %s72
    %s87 = sphi 0, %s73
    %s91 = sphi 0, %s91
    %s93 = sphi 0, %s91
    %s94 = sphi 0, %s93
    %s108 = sphi 0, %s94
    %s112 = sphi 0, %s112
    %s114 = sphi 0, %s112
    %s115 = sphi 0, %s114
    %s129 = sphi 0, %s115
    %s133 = sphi 0, %s133
    %s135 = sphi 0, %s133
    %s136 = sphi 0, %s135
    %s150 = sphi 0, %s136
    %s156 = sphi 0, %s158
    %s159 = sphi 0, %s156
    %s160 = sphi 0, %s159
    %s176 = sphi 0, %s160
    %s182 = sphi 0, %s184
    %s185 = sphi 0, %s182
    %s186 = sphi 0, %s185
    %s202 = sphi 0, %s186
    %s208 = sphi 0, %s210
    %s211 = sphi 0, %s208
    %s212 = sphi 0, %s211
    %s228 = sphi 0, %s212
  $region4: #{resblock1_forward.5} parent=0 // loop_header_branch
    %18 = sbr.rel (%p16) target = $region8
  $region5: #{resblock1_forward.5} parent=0 // loop_body
    %s20 = ssub.s32 %s15, 1
    %s21 = ssub.s32 %s15, 2
    %s22 = sadd.s32 %s15, 1
    %s23 = ssub.s32 %s15, %s22
    %p24 = scmp.eq.s32.totalorder %s23, 0
    %s26 = sadd.s32 %s25, 1
    %s27 = scalar_select %p24, %s25, %s26
    %p30 = pneg %p24
    %p31 = scmp.eq.s32.totalorder %s15, 1
    %p32 = por %p30, %p31
    %p33 = scmp.ne.s32.totalorder %s25, %s28
    %p34 = scmp.eq.s32.totalorder %s15, 0
    %p35 = por %p33, %p34
    %p36 = scmp.ne.s32.totalorder %s25, %s28
    %p37 = scmp.eq.s32.totalorder %s20, 1
    %p38 = por %p36, %p37
    %p39 = scmp.ne.s32.totalorder %s28, %s29
    %p40 = scmp.eq.s32.totalorder %s20, 0
    %p41 = por %p39, %p40
    %p42 = scmp.ne.s32.totalorder %s28, %s29
    %p43 = scmp.eq.s32.totalorder %s21, 1
    %p44 = por %p42, %p43
    %p46 = scmp.ne.s32.totalorder %s29, %s45
    %p47 = scmp.eq.s32.totalorder %s21, 0
    %p48 = por %p46, %p47
    %s50 = sadd.s32 %s49, 1
    %p53 = scmp.eq.s32.totalorder %s15, 1
    %p54 = scmp.ne.s32.totalorder %s49, %s51
    %p55 = scmp.eq.s32.totalorder %s15, 0
    %p56 = por %p54, %p55
    %p57 = scmp.ne.s32.totalorder %s49, %s51
    %p58 = scmp.eq.s32.totalorder %s20, 1
    %p59 = por %p57, %p58
    %p60 = scmp.ne.s32.totalorder %s51, %s52
    %p61 = scmp.eq.s32.totalorder %s20, 0
    %p62 = por %p60, %p61
    %p63 = scmp.ne.s32.totalorder %s51, %s52
    %p64 = scmp.eq.s32.totalorder %s21, 1
    %p65 = por %p63, %p64
    %p67 = scmp.ne.s32.totalorder %s52, %s66
    %p68 = scmp.eq.s32.totalorder %s21, 0
    %p69 = por %p67, %p68
    %s71 = sadd.s32 %s70, 1
    %p74 = scmp.eq.s32.totalorder %s15, 1
    %p75 = scmp.ne.s32.totalorder %s70, %s72
    %p76 = scmp.eq.s32.totalorder %s15, 0
    %p77 = por %p75, %p76
    %p78 = scmp.ne.s32.totalorder %s70, %s72
    %p79 = scmp.eq.s32.totalorder %s20, 1
    %p80 = por %p78, %p79
    %p81 = scmp.ne.s32.totalorder %s72, %s73
    %p82 = scmp.eq.s32.totalorder %s20, 0
    %p83 = por %p81, %p82
    %p84 = scmp.ne.s32.totalorder %s72, %s73
    %p85 = scmp.eq.s32.totalorder %s21, 1
    %p86 = por %p84, %p85
    %p88 = scmp.ne.s32.totalorder %s73, %s87
    %p89 = scmp.eq.s32.totalorder %s21, 0
    %p90 = por %p88, %p89
    %s92 = sadd.s32 %s91, 1
    %p95 = scmp.eq.s32.totalorder %s15, 1
    %p96 = scmp.ne.s32.totalorder %s91, %s93
    %p97 = scmp.eq.s32.totalorder %s15, 0
    %p98 = por %p96, %p97
    %p99 = scmp.ne.s32.totalorder %s91, %s93
    %p100 = scmp.eq.s32.totalorder %s20, 1
    %p101 = por %p99, %p100
    %p102 = scmp.ne.s32.totalorder %s93, %s94
    %p103 = scmp.eq.s32.totalorder %s20, 0
    %p104 = por %p102, %p103
    %p105 = scmp.ne.s32.totalorder %s93, %s94
    %p106 = scmp.eq.s32.totalorder %s21, 1
    %p107 = por %p105, %p106
    %p109 = scmp.ne.s32.totalorder %s94, %s108
    %p110 = scmp.eq.s32.totalorder %s21, 0
    %p111 = por %p109, %p110
    %s113 = sadd.s32 %s112, 1
    %p116 = scmp.eq.s32.totalorder %s15, 1
    %p117 = scmp.ne.s32.totalorder %s112, %s114
    %p118 = scmp.eq.s32.totalorder %s15, 0
    %p119 = por %p117, %p118
    %p120 = scmp.ne.s32.totalorder %s112, %s114
    %p121 = scmp.eq.s32.totalorder %s20, 1
    %p122 = por %p120, %p121
    %p123 = scmp.ne.s32.totalorder %s114, %s115
    %p124 = scmp.eq.s32.totalorder %s20, 0
    %p125 = por %p123, %p124
    %p126 = scmp.ne.s32.totalorder %s114, %s115
    %p127 = scmp.eq.s32.totalorder %s21, 1
    %p128 = por %p126, %p127
    %p130 = scmp.ne.s32.totalorder %s115, %s129
    %p131 = scmp.eq.s32.totalorder %s21, 0
    %p132 = por %p130, %p131
    %s134 = sadd.s32 %s133, 1
    %p137 = scmp.eq.s32.totalorder %s15, 1
    %p138 = scmp.ne.s32.totalorder %s133, %s135
    %p139 = scmp.eq.s32.totalorder %s15, 0
    %p140 = por %p138, %p139
    %p141 = scmp.ne.s32.totalorder %s133, %s135
    %p142 = scmp.eq.s32.totalorder %s20, 1
    %p143 = por %p141, %p142
    %p144 = scmp.ne.s32.totalorder %s135, %s136
    %p145 = scmp.eq.s32.totalorder %s20, 0
    %p146 = por %p144, %p145
    %p147 = scmp.ne.s32.totalorder %s135, %s136
    %p148 = scmp.eq.s32.totalorder %s21, 1
    %p149 = por %p147, %p148
    %p151 = scmp.ne.s32.totalorder %s136, %s150
    %p152 = scmp.eq.s32.totalorder %s21, 0
    %p153 = por %p151, %p152
    %s154 = ssub.s32 %s15, %s22
    %p155 = scmp.eq.s32.totalorder %s154, 0
    %s157 = sadd.s32 %s156, 1
    %s158 = scalar_select %p155, %s156, %s157
    %p161 = pneg %p155
    %p162 = scmp.eq.s32.totalorder %s15, 1
    %p163 = por %p161, %p162
    %p164 = scmp.ne.s32.totalorder %s156, %s159
    %p165 = scmp.eq.s32.totalorder %s15, 0
    %p166 = por %p164, %p165
    %p167 = scmp.ne.s32.totalorder %s156, %s159
    %p168 = scmp.eq.s32.totalorder %s20, 1
    %p169 = por %p167, %p168
    %p170 = scmp.ne.s32.totalorder %s159, %s160
    %p171 = scmp.eq.s32.totalorder %s20, 0
    %p172 = por %p170, %p171
    %p173 = scmp.ne.s32.totalorder %s159, %s160
    %p174 = scmp.eq.s32.totalorder %s21, 1
    %p175 = por %p173, %p174
    %p177 = scmp.ne.s32.totalorder %s160, %s176
    %p178 = scmp.eq.s32.totalorder %s21, 0
    %p179 = por %p177, %p178
    %s180 = ssub.s32 %s15, %s22
    %p181 = scmp.eq.s32.totalorder %s180, 0
    %s183 = sadd.s32 %s182, 1
    %s184 = scalar_select %p181, %s182, %s183
    %p187 = pneg %p181
    %p188 = scmp.eq.s32.totalorder %s15, 1
    %p189 = por %p187, %p188
    %p190 = scmp.ne.s32.totalorder %s182, %s185
    %p191 = scmp.eq.s32.totalorder %s15, 0
    %p192 = por %p190, %p191
    %p193 = scmp.ne.s32.totalorder %s182, %s185
    %p194 = scmp.eq.s32.totalorder %s20, 1
    %p195 = por %p193, %p194
    %p196 = scmp.ne.s32.totalorder %s185, %s186
    %p197 = scmp.eq.s32.totalorder %s20, 0
    %p198 = por %p196, %p197
    %p199 = scmp.ne.s32.totalorder %s185, %s186
    %p200 = scmp.eq.s32.totalorder %s21, 1
    %p201 = por %p199, %p200
    %p203 = scmp.ne.s32.totalorder %s186, %s202
    %p204 = scmp.eq.s32.totalorder %s21, 0
    %p205 = por %p203, %p204
    %s206 = ssub.s32 %s15, %s22
    %p207 = scmp.eq.s32.totalorder %s206, 0
    %s209 = sadd.s32 %s208, 1
    %s210 = scalar_select %p207, %s208, %s209
    %p213 = pneg %p207
    %p214 = scmp.eq.s32.totalorder %s15, 1
    %p215 = por %p213, %p214
    %p216 = scmp.ne.s32.totalorder %s208, %s211
    %p217 = scmp.eq.s32.totalorder %s15, 0
    %p218 = por %p216, %p217
    %p219 = scmp.ne.s32.totalorder %s208, %s211
    %p220 = scmp.eq.s32.totalorder %s20, 1
    %p221 = por %p219, %p220
    %p222 = scmp.ne.s32.totalorder %s211, %s212
    %p223 = scmp.eq.s32.totalorder %s20, 0
    %p224 = por %p222, %p223
    %p225 = scmp.ne.s32.totalorder %s211, %s212
    %p226 = scmp.eq.s32.totalorder %s21, 1
    %p227 = por %p225, %p226
    %p229 = scmp.ne.s32.totalorder %s212, %s228
    %p230 = scmp.eq.s32.totalorder %s21, 0
    %p231 = por %p229, %p230
    %p232 = scmp.le.s32.totalorder 1, %s15
    %p233 = scmp.lt.s32.totalorder %s15, 3
    %p234 = pnand %p232, %p233
    %p235 = pneg %p234
    // Predicated region
    $region9: #{resblock1_forward.5} parent=5 // pred_check
      _
    $region10: #{resblock1_forward.5} parent=5 // pred_check_branch
      %237 = sbr.rel (%p234) target = $region12
    $region11: #{resblock1_forward.5} parent=5 // pred_region
      %s238 = ssub.s32 %s15, 1
      // Predicated region
      $region13: #{resblock1_forward.5} parent=11 // pred_check
        %p239 = pneg %p62
      $region14: #{resblock1_forward.5} parent=11 // pred_check_branch
        %241 = sbr.rel (%p239) target = $region16
      $region15: #{resblock1_forward.5} parent=11 // pred_region
        _
      $region16: #{resblock1_forward.5} parent=11 // pred_fallthru
        _
      // Predicated region
      $region17: #{resblock1_forward.5} parent=11 // pred_check
        %p242 = pneg %p83
      $region18: #{resblock1_forward.5} parent=11 // pred_check_branch
        %244 = sbr.rel (%p242) target = $region20
      $region19: #{resblock1_forward.5} parent=11 // pred_region
        _
      $region20: #{resblock1_forward.5} parent=11 // pred_fallthru
        _
      // Predicated region
      $region21: #{resblock1_forward.5} parent=11 // pred_check
        %p245 = pneg %p104
      $region22: #{resblock1_forward.5} parent=11 // pred_check_branch
        %247 = sbr.rel (%p245) target = $region24
      $region23: #{resblock1_forward.5} parent=11 // pred_region
        _
      $region24: #{resblock1_forward.5} parent=11 // pred_fallthru
        _
      // Predicated region
      $region25: #{resblock1_forward.5} parent=11 // pred_check
        %p248 = pneg %p125
      $region26: #{resblock1_forward.5} parent=11 // pred_check_branch
        %250 = sbr.rel (%p248) target = $region28
      $region27: #{resblock1_forward.5} parent=11 // pred_region
        _
      $region28: #{resblock1_forward.5} parent=11 // pred_fallthru
        _
      // Predicated region
      $region29: #{resblock1_forward.5} parent=11 // pred_check
        %p251 = pneg %p146
      $region30: #{resblock1_forward.5} parent=11 // pred_check_branch
        %253 = sbr.rel (%p251) target = $region32
      $region31: #{resblock1_forward.5} parent=11 // pred_region
        _
      $region32: #{resblock1_forward.5} parent=11 // pred_fallthru
        _
    $region12: #{resblock1_forward.5} parent=5 // pred_fallthru
      _
    %p254 = scmp.lt.s32.totalorder %s15, 2
    // Predicated region
    $region33: #{resblock1_forward.5} parent=5 // pred_check
      %p255 = pneg %p254
    $region34: #{resblock1_forward.5} parent=5 // pred_check_branch
      %257 = sbr.rel (%p255) target = $region36
    $region35: #{resblock1_forward.5} parent=5 // pred_region
      // Predicated region
      $region37: #{resblock1_forward.5} parent=35 // pred_check
        %p258 = pneg %p35
      $region38: #{resblock1_forward.5} parent=35 // pred_check_branch
        %260 = sbr.rel (%p258) target = $region40
      $region39: #{resblock1_forward.5} parent=35 // pred_region
        %p261 = scmp.lt.s32.totalorder %s15, 1
        %s262 = scalar_select %p261, %s15, 1
        %s263 = smul.addr %s262, 6
        %s264 = smul.addr %s263, 8
        %s265 = scalar_lea.vmem %s0, %s264
      $region40: #{resblock1_forward.5} parent=35 // pred_fallthru
        _
    $region36: #{resblock1_forward.5} parent=5 // pred_fallthru
      _
    %p266 = scmp.le.s32.totalorder 1, %s15
    %p267 = scmp.lt.s32.totalorder %s15, 3
    %p268 = pnand %p266, %p267
    %p269 = pneg %p268
    // Predicated region
    $region41: #{resblock1_forward.5} parent=5 // pred_check
      _
    $region42: #{resblock1_forward.5} parent=5 // pred_check_branch
      %271 = sbr.rel (%p268) target = $region44
    $region43: #{resblock1_forward.5} parent=5 // pred_region
      %s272 = ssub.s32 %s15, 1
      %p273 = scmp.lt.s32.totalorder %s20, 1
      %s274 = scalar_select %p273, %s20, 1
      %s275 = smul.addr %s274, 6
      %s276 = smul.addr %s275, 8
      %s277 = scalar_lea.vmem %s0, %s276
      %p278 = pneg %p41
      %p279 = pneg %p38
      %p280 = pneg %p62
      %p281 = pneg %p59
      %p282 = pneg %p83
      %p283 = pneg %p80
      %p284 = pneg %p104
      %p285 = pneg %p101
      %p286 = pneg %p125
      %p287 = pneg %p122
      %p288 = pneg %p146
      %p289 = pneg %p143
      %p290 = pneg %p172
      %p291 = pneg %p169
      %p292 = scmp.lt.s32.totalorder %s20, 1
      %s293 = scalar_select %p292, %s20, 1
      %s294 = smul.addr %s293, 12
      %s295 = smul.addr %s294, 8
      %s296 = scalar_lea.vmem %s6, %s295
      %p297 = pneg %p198
      %p298 = pneg %p195
      %p299 = scmp.lt.s32.totalorder %s20, 1
      %s300 = scalar_select %p299, %s20, 1
      %s301 = smul.addr %s300, 4
      %s302 = smul.addr %s301, 8
      %s303 = scalar_lea.vmem %s7, %s302
      %p304 = pneg %p224
      %p305 = pneg %p221
      %p306 = scmp.lt.s32.totalorder %s20, 1
      %s307 = scalar_select %p306, %s20, 1
      %s308 = smul.addr %s307, 4
      %s309 = smul.addr %s308, 8
      %s310 = scalar_lea.vmem %s8, %s309
      %p311 = scmp.lt.s32.totalorder %s20, 1
      %s312 = scalar_select %p311, %s20, 1
      %s313 = smul.addr %s312, 6
      %s314 = smul.addr %s313, 8
      %s315 = scalar_lea.vmem %s0, %s314
      %p316 = scmp.lt.s32.totalorder %s20, 1
      %s317 = scalar_select %p316, %s20, 1
      %s318 = smul.addr %s317, 12
      %s319 = smul.addr %s318, 8
      %s320 = scalar_lea.vmem %s6, %s319
      %p321 = scmp.lt.s32.totalorder %s20, 1
      %s322 = scalar_select %p321, %s20, 1
      %s323 = smul.addr %s322, 4
      %s324 = smul.addr %s323, 8
      %s325 = scalar_lea.vmem %s7, %s324
      %p326 = scmp.lt.s32.totalorder %s20, 1
      %s327 = scalar_select %p326, %s20, 1
      %s328 = smul.addr %s327, 4
      %s329 = smul.addr %s328, 8
      %s330 = scalar_lea.vmem %s8, %s329
      %v331 = vld [vmem:[%s315] sm:$0xff]
      %v332 = vld [vmem:[%s315 + $0x8] sm:$0xff]
      %v333 = vld [vmem:[%s315 + $0x10] sm:$0xff]
      %v334 = vld [vmem:[%s315 + $0x18] sm:$0xff]
      %v335 = vld [vmem:[%s315 + $0x20] sm:$0xff]
      %v336 = vld [vmem:[%s315 + $0x28] sm:$0xff]
      %v337 = vld [vmem:[%s1] sm:$0xff]
      %v338 = vld [vmem:[%s1 + $0x8] sm:$0xff]
      %340 = vset.pattern.permute.xlu0 0
      %341 = vperm.xlu0 %340, %v337
      %v342 = vpop.permute.xlu0 %341
      %345 = vset.pattern.permute.xlu0 0
      %346 = vperm.xlu0 %345, %v338
      %v347 = vpop.permute.xlu0 %346
      %v349 = vmul.f32 %v331, %v342
      %v350 = vmul.f32 %v332, %v342
      %v351 = vmul.f32 %v333, %v342
      %v352 = vmul.f32 %v334, %v347
      %v353 = vmul.f32 %v335, %v347
      %v354 = vmul.f32 %v336, %v347
      %v355 = vld [vmem:[%s2] sm:$0xff]
      %v356 = vld [vmem:[%s2 + $0x8] sm:$0xff]
      %358 = vset.pattern.permute.xlu0 0
      %359 = vperm.xlu0 %358, %v355
      %v360 = vpop.permute.xlu0 %359
      %363 = vset.pattern.permute.xlu0 0
      %364 = vperm.xlu0 %363, %v356
      %v365 = vpop.permute.xlu0 %364
      %v367 = vadd.f32 %v349, %v360
      %v368 = vadd.f32 %v350, %v360
      %v369 = vadd.f32 %v351, %v360
      %v370 = vadd.f32 %v352, %v365
      %v371 = vadd.f32 %v353, %v365
      %v372 = vadd.f32 %v354, %v365
      %v373 = vmax.f32 %v367, 0.0
      %v374 = vmax.f32 %v368, 0.0
      %v375 = vmax.f32 %v369, 0.0
      %v376 = vmax.f32 %v370, 0.0
      %v377 = vmax.f32 %v371, 0.0
      %v378 = vmax.f32 %v372, 0.0
      %v379 = vld [vmem:[%s5] sm:$0x7]
      %v381 = vperm.slane %v379, 0
      %v382 = vperm.slane %v379, 1
      %v383 = vperm.slane %v379, 2
      %v387 = vmul.f32 %v373, %v381
      %v388 = vmul.f32 %v374, %v382
      %v389 = vmul.f32 %v375, %v383
      %v390 = vmul.f32 %v376, %v381
      %v391 = vmul.f32 %v377, %v382
      %v392 = vmul.f32 %v378, %v383
      %393 = vst [vmem:[#allocation2] sm:$0xff] %v387
      %394 = vst [vmem:[#allocation2 + $0x8] sm:$0xff] %v388
      %vm395 = vcmask 261120
      %396 = vst.msk [vmem:[#allocation2 + $0x10] sm:$0xff] %vm395, %v389
      %397 = vst [vmem:[#allocation2 + $0x18] sm:$0xff] %v390
      %398 = vst [vmem:[#allocation2 + $0x20] sm:$0xff] %v391
      %399 = vst.msk [vmem:[#allocation2 + $0x28] sm:$0xff] %vm395, %v392
      %406 = vrot.lane.b32.xlu0 %v387, 127
      %v407 = vpop.permute.xlu0 %406
      %408 = vrot.lane.b32.xlu0 %v388, 127
      %v409 = vpop.permute.xlu0 %408
      %410 = vrot.lane.b32.xlu0 %v389, 127
      %v411 = vpop.permute.xlu0 %410
      %412 = vrot.lane.b32.xlu0 %v390, 127
      %v413 = vpop.permute.xlu0 %412
      %414 = vrot.lane.b32.xlu0 %v391, 127
      %v415 = vpop.permute.xlu0 %414
      %416 = vrot.lane.b32.xlu0 %v392, 127
      %v417 = vpop.permute.xlu0 %416
      %vm418 = vcmask 1039360
      %v419 = vsel %vm418, %v407, %v409
      %v420 = vsel %vm418, %v409, %v411
      %v421 = vsel %vm418, %v413, %v415
      %v422 = vsel %vm418, %v415, %v417
      %429 = vst [vmem:[#allocation2 + $0x30] sm:$0xff] %v419
      %430 = vst [vmem:[#allocation2 + $0x38] sm:$0xff] %v420
      %431 = vst.msk [vmem:[#allocation2 + $0x40] sm:$0xff] %vm395, %v411
      %432 = vst [vmem:[#allocation2 + $0x48] sm:$0xff] %v421
      %433 = vst [vmem:[#allocation2 + $0x50] sm:$0xff] %v422
      %434 = vst.msk [vmem:[#allocation2 + $0x58] sm:$0xff] %vm395, %v417
      %435 = vrot.lane.b32.xlu0 %v387, 126
      %v436 = vpop.permute.xlu0 %435
      %437 = vrot.lane.b32.xlu0 %v388, 126
      %v438 = vpop.permute.xlu0 %437
      %439 = vrot.lane.b32.xlu0 %v389, 126
      %v440 = vpop.permute.xlu0 %439
      %441 = vrot.lane.b32.xlu0 %v390, 126
      %v442 = vpop.permute.xlu0 %441
      %443 = vrot.lane.b32.xlu0 %v391, 126
      %v444 = vpop.permute.xlu0 %443
      %445 = vrot.lane.b32.xlu0 %v392, 126
      %v446 = vpop.permute.xlu0 %445
      %vm447 = vcmask 1031168
      %v448 = vsel %vm447, %v436, %v438
      %v449 = vsel %vm447, %v438, %v440
      %v450 = vsel %vm447, %v442, %v444
      %v451 = vsel %vm447, %v444, %v446
      %458 = vst [vmem:[#allocation2 + $0x60] sm:$0xff] %v448
      %459 = vst [vmem:[#allocation2 + $0x68] sm:$0xff] %v449
      %460 = vst.msk [vmem:[#allocation2 + $0x70] sm:$0xff] %vm395, %v440
      %461 = vst [vmem:[#allocation2 + $0x78] sm:$0xff] %v450
      %462 = vst [vmem:[#allocation2 + $0x80] sm:$0xff] %v451
      %463 = vst.msk [vmem:[#allocation2 + $0x88] sm:$0xff] %vm395, %v446
      %464 = vrot.lane.b32.xlu0 %v387, 110
      %v465 = vpop.permute.xlu0 %464
      %466 = vrot.lane.b32.xlu0 %v388, 110
      %v467 = vpop.permute.xlu0 %466
      %468 = vrot.lane.b32.xlu0 %v389, 110
      %v469 = vpop.permute.xlu0 %468
      %470 = vrot.lane.b32.xlu0 %v390, 110
      %v471 = vpop.permute.xlu0 %470
      %472 = vrot.lane.b32.xlu0 %v391, 110
      %v473 = vpop.permute.xlu0 %472
      %474 = vrot.lane.b32.xlu0 %v392, 110
      %v475 = vpop.permute.xlu0 %474
      %vm476 = vcmask 900096
      %v477 = vsel %vm476, %v465, %v467
      %v478 = vsel %vm476, %v467, %v469
      %v479 = vsel %vm476, %v471, %v473
      %v480 = vsel %vm476, %v473, %v475
      %487 = vst [vmem:[#allocation2 + $0x90] sm:$0xff] %v477
      %488 = vst [vmem:[#allocation2 + $0x98] sm:$0xff] %v478
      %489 = vst.msk [vmem:[#allocation2 + $0xa0] sm:$0xff] %vm395, %v469
      %490 = vst [vmem:[#allocation2 + $0xa8] sm:$0xff] %v479
      %491 = vst [vmem:[#allocation2 + $0xb0] sm:$0xff] %v480
      %492 = vst.msk [vmem:[#allocation2 + $0xb8] sm:$0xff] %vm395, %v475
      %493 = vrot.lane.b32.xlu0 %v387, 109
      %v494 = vpop.permute.xlu0 %493
      %495 = vrot.lane.b32.xlu0 %v388, 109
      %v496 = vpop.permute.xlu0 %495
      %497 = vrot.lane.b32.xlu0 %v389, 109
      %v498 = vpop.permute.xlu0 %497
      %499 = vrot.lane.b32.xlu0 %v390, 109
      %v500 = vpop.permute.xlu0 %499
      %501 = vrot.lane.b32.xlu0 %v391, 109
      %v502 = vpop.permute.xlu0 %501
      %503 = vrot.lane.b32.xlu0 %v392, 109
      %v504 = vpop.permute.xlu0 %503
      %vm505 = vcmask 891904
      %v506 = vsel %vm505, %v494, %v496
      %v507 = vsel %vm505, %v496, %v498
      %v508 = vsel %vm505, %v500, %v502
      %v509 = vsel %vm505, %v502, %v504
      %516 = vst [vmem:[#allocation2 + $0xc0] sm:$0xff] %v506
      %517 = vst [vmem:[#allocation2 + $0xc8] sm:$0xff] %v507
      %518 = vst.msk [vmem:[#allocation2 + $0xd0] sm:$0xff] %vm395, %v498
      %519 = vst [vmem:[#allocation2 + $0xd8] sm:$0xff] %v508
      %520 = vst [vmem:[#allocation2 + $0xe0] sm:$0xff] %v509
      %521 = vst.msk [vmem:[#allocation2 + $0xe8] sm:$0xff] %vm395, %v504
      %522 = vrot.lane.b32.xlu0 %v387, 108
      %v523 = vpop.permute.xlu0 %522
      %524 = vrot.lane.b32.xlu0 %v388, 108
      %v525 = vpop.permute.xlu0 %524
      %526 = vrot.lane.b32.xlu0 %v389, 108
      %v527 = vpop.permute.xlu0 %526
      %528 = vrot.lane.b32.xlu0 %v390, 108
      %v529 = vpop.permute.xlu0 %528
      %530 = vrot.lane.b32.xlu0 %v391, 108
      %v531 = vpop.permute.xlu0 %530
      %532 = vrot.lane.b32.xlu0 %v392, 108
      %v533 = vpop.permute.xlu0 %532
      %vm534 = vcmask 883712
      %v535 = vsel %vm534, %v523, %v525
      %v536 = vsel %vm534, %v525, %v527
      %v537 = vsel %vm534, %v529, %v531
      %v538 = vsel %vm534, %v531, %v533
      %545 = vst [vmem:[#allocation2 + $0xf0] sm:$0xff] %v535
      %546 = vst [vmem:[#allocation2 + $0xf8] sm:$0xff] %v536
      %547 = vst.msk [vmem:[#allocation2 + $0x100] sm:$0xff] %vm395, %v527
      %548 = vst [vmem:[#allocation2 + $0x108] sm:$0xff] %v537
      %549 = vst [vmem:[#allocation2 + $0x110] sm:$0xff] %v538
      %550 = vst.msk [vmem:[#allocation2 + $0x118] sm:$0xff] %vm395, %v533
      %551 = vrot.lane.b32.xlu0 %v387, 92
      %v552 = vpop.permute.xlu0 %551
      %553 = vrot.lane.b32.xlu0 %v388, 92
      %v554 = vpop.permute.xlu0 %553
      %555 = vrot.lane.b32.xlu0 %v389, 92
      %v556 = vpop.permute.xlu0 %555
      %557 = vrot.lane.b32.xlu0 %v390, 92
      %v558 = vpop.permute.xlu0 %557
      %559 = vrot.lane.b32.xlu0 %v391, 92
      %v560 = vpop.permute.xlu0 %559
      %561 = vrot.lane.b32.xlu0 %v392, 92
      %v562 = vpop.permute.xlu0 %561
      %vm563 = vcmask 752640
      %v564 = vsel %vm563, %v552, %v554
      %v565 = vsel %vm563, %v554, %v556
      %v566 = vsel %vm563, %v558, %v560
      %v567 = vsel %vm563, %v560, %v562
      %574 = vst [vmem:[#allocation2 + $0x120] sm:$0xff] %v564
      %575 = vst [vmem:[#allocation2 + $0x128] sm:$0xff] %v565
      %576 = vst.msk [vmem:[#allocation2 + $0x130] sm:$0xff] %vm395, %v556
      %577 = vst [vmem:[#allocation2 + $0x138] sm:$0xff] %v566
      %578 = vst [vmem:[#allocation2 + $0x140] sm:$0xff] %v567
      %579 = vst.msk [vmem:[#allocation2 + $0x148] sm:$0xff] %vm395, %v562
      %580 = vrot.lane.b32.xlu0 %v387, 91
      %v581 = vpop.permute.xlu0 %580
      %582 = vrot.lane.b32.xlu0 %v388, 91
      %v583 = vpop.permute.xlu0 %582
      %584 = vrot.lane.b32.xlu0 %v389, 91
      %v585 = vpop.permute.xlu0 %584
      %586 = vrot.lane.b32.xlu0 %v390, 91
      %v587 = vpop.permute.xlu0 %586
      %588 = vrot.lane.b32.xlu0 %v391, 91
      %v589 = vpop.permute.xlu0 %588
      %590 = vrot.lane.b32.xlu0 %v392, 91
      %v591 = vpop.permute.xlu0 %590
      %vm592 = vcmask 744448
      %v593 = vsel %vm592, %v581, %v583
      %v594 = vsel %vm592, %v583, %v585
      %v595 = vsel %vm592, %v587, %v589
      %v596 = vsel %vm592, %v589, %v591
      %603 = vst [vmem:[#allocation2 + $0x150] sm:$0xff] %v593
      %604 = vst [vmem:[#allocation2 + $0x158] sm:$0xff] %v594
      %605 = vst.msk [vmem:[#allocation2 + $0x160] sm:$0xff] %vm395, %v585
      %606 = vst [vmem:[#allocation2 + $0x168] sm:$0xff] %v595
      %607 = vst [vmem:[#allocation2 + $0x170] sm:$0xff] %v596
      %608 = vst.msk [vmem:[#allocation2 + $0x178] sm:$0xff] %vm395, %v591
      %609 = vrot.lane.b32.xlu0 %v387, 90
      %v610 = vpop.permute.xlu0 %609
      %611 = vrot.lane.b32.xlu0 %v388, 90
      %v612 = vpop.permute.xlu0 %611
      %613 = vrot.lane.b32.xlu0 %v389, 90
      %v614 = vpop.permute.xlu0 %613
      %615 = vrot.lane.b32.xlu0 %v390, 90
      %v616 = vpop.permute.xlu0 %615
      %617 = vrot.lane.b32.xlu0 %v391, 90
      %v618 = vpop.permute.xlu0 %617
      %619 = vrot.lane.b32.xlu0 %v392, 90
      %v620 = vpop.permute.xlu0 %619
      %vm621 = vcmask 736256
      %v622 = vsel %vm621, %v610, %v612
      %v623 = vsel %vm621, %v612, %v614
      %v624 = vsel %vm621, %v616, %v618
      %v625 = vsel %vm621, %v618, %v620
      %632 = vst [vmem:[#allocation2 + $0x180] sm:$0xff] %v622
      %633 = vst [vmem:[#allocation2 + $0x188] sm:$0xff] %v623
      %634 = vst.msk [vmem:[#allocation2 + $0x190] sm:$0xff] %vm395, %v614
      %635 = vst [vmem:[#allocation2 + $0x198] sm:$0xff] %v624
      %636 = vst [vmem:[#allocation2 + $0x1a0] sm:$0xff] %v625
      %637 = vst.msk [vmem:[#allocation2 + $0x1a8] sm:$0xff] %vm395, %v620
      %v638 = vld [vmem:[%s3] sm:$0xff]
      %v639 = vld [vmem:[%s3 + $0x8] sm:$0xff]
      %v640 = vld [vmem:[%s3 + $0x10] sm:$0xff]
      %v641 = vld [vmem:[%s3 + $0x18] sm:$0xff]
      %v642 = vld [vmem:[%s3 + $0x20] sm:$0xff]
      %v643 = vld [vmem:[%s3 + $0x28] sm:$0xff]
      %v644 = vld [vmem:[%s3 + $0x30] sm:$0xff]
      %v645 = vld [vmem:[%s3 + $0x38] sm:$0xff]
      %v646 = vld [vmem:[#allocation2] sm:$0xff]
      %v647 = vld [vmem:[#allocation2 + $0x8] sm:$0xff]
      %v648 = vld [vmem:[#allocation2 + $0x10] sm:$0xff]
      %v649 = vld [vmem:[#allocation2 + $0x18] sm:$0xff]
      %v650 = vld [vmem:[#allocation2 + $0x20] sm:$0xff]
      %v651 = vld [vmem:[#allocation2 + $0x28] sm:$0xff]
      %v652 = vld [vmem:[#allocation2 + $0x30] sm:$0xff]
      %v653 = vld [vmem:[#allocation2 + $0x38] sm:$0xff]
      %v654 = vld [vmem:[#allocation2 + $0x40] sm:$0xff]
      %v655 = vld [vmem:[#allocation2 + $0x48] sm:$0xff]
      %v656 = vld [vmem:[#allocation2 + $0x50] sm:$0xff]
      %v657 = vld [vmem:[#allocation2 + $0x58] sm:$0xff]
      %v658 = vld [vmem:[#allocation2 + $0x60] sm:$0xff]
      %v659 = vld [vmem:[#allocation2 + $0x68] sm:$0xff]
      %v660 = vld [vmem:[#allocation2 + $0x70] sm:$0xff]
      %v661 = vld [vmem:[#allocation2 + $0x78] sm:$0xff]
      %v662 = vld [vmem:[#allocation2 + $0x80] sm:$0xff]
      %v663 = vld [vmem:[#allocation2 + $0x88] sm:$0xff]
      %v664 = vld [vmem:[#allocation2 + $0x90] sm:$0xff]
      %v665 = vld [vmem:[#allocation2 + $0x98] sm:$0xff]
      %v666 = vld [vmem:[#allocation2 + $0xa0] sm:$0xff]
      %v667 = vld [vmem:[#allocation2 + $0xa8] sm:$0xff]
      %v668 = vld [vmem:[#allocation2 + $0xb0] sm:$0xff]
      %v669 = vld [vmem:[#allocation2 + $0xb8] sm:$0xff]
      %v670 = vld [vmem:[#allocation2 + $0xc0] sm:$0xff]
      %v671 = vld [vmem:[#allocation2 + $0xc8] sm:$0xff]
      %v672 = vld [vmem:[#allocation2 + $0xd0] sm:$0xff]
      %v673 = vld [vmem:[#allocation2 + $0xd8] sm:$0xff]
      %v674 = vld [vmem:[#allocation2 + $0xe0] sm:$0xff]
      %v675 = vld [vmem:[#allocation2 + $0xe8] sm:$0xff]
      %v676 = vld [vmem:[#allocation2 + $0xf0] sm:$0xff]
      %v677 = vld [vmem:[#allocation2 + $0xf8] sm:$0xff]
      %v678 = vld [vmem:[#allocation2 + $0x100] sm:$0xff]
      %v679 = vld [vmem:[#allocation2 + $0x108] sm:$0xff]
      %v680 = vld [vmem:[#allocation2 + $0x110] sm:$0xff]
      %v681 = vld [vmem:[#allocation2 + $0x118] sm:$0xff]
      %v682 = vld [vmem:[#allocation2 + $0x120] sm:$0xff]
      %v683 = vld [vmem:[#allocation2 + $0x128] sm:$0xff]
      %v684 = vld [vmem:[#allocation2 + $0x130] sm:$0xff]
      %v685 = vld [vmem:[#allocation2 + $0x138] sm:$0xff]
      %v686 = vld [vmem:[#allocation2 + $0x140] sm:$0xff]
      %v687 = vld [vmem:[#allocation2 + $0x148] sm:$0xff]
      %v688 = vld [vmem:[#allocation2 + $0x150] sm:$0xff]
      %v689 = vld [vmem:[#allocation2 + $0x158] sm:$0xff]
      %v690 = vld [vmem:[#allocation2 + $0x160] sm:$0xff]
      %v691 = vld [vmem:[#allocation2 + $0x168] sm:$0xff]
      %v692 = vld [vmem:[#allocation2 + $0x170] sm:$0xff]
      %v693 = vld [vmem:[#allocation2 + $0x178] sm:$0xff]
      %v694 = vld [vmem:[#allocation2 + $0x180] sm:$0xff]
      %v695 = vld [vmem:[#allocation2 + $0x188] sm:$0xff]
      %v696 = vld [vmem:[#allocation2 + $0x190] sm:$0xff]
      %v697 = vld [vmem:[#allocation2 + $0x198] sm:$0xff]
      %v698 = vld [vmem:[#allocation2 + $0x1a0] sm:$0xff]
      %v699 = vld [vmem:[#allocation2 + $0x1a8] sm:$0xff]
      %v700 = vld [vmem:[%s4] sm:$0xff]
      %v701 = vld [vmem:[%s4 + $0x8] sm:$0xff]
      %v702 = vld [vmem:[%s4 + $0x10] sm:$0xff]
      %v703 = vld [vmem:[%s4 + $0x18] sm:$0xff]
      %705 = vset.pattern.permute.xlu0 0
      %706 = vperm.xlu0 %705, %v700
      %v707 = vpop.permute.xlu0 %706
      %710 = vset.pattern.permute.xlu0 0
      %711 = vperm.xlu0 %710, %v701
      %v712 = vpop.permute.xlu0 %711
      %715 = vset.pattern.permute.xlu0 0
      %716 = vperm.xlu0 %715, %v702
      %v717 = vpop.permute.xlu0 %716
      %720 = vset.pattern.permute.xlu0 0
      %721 = vperm.xlu0 %720, %v703
      %v722 = vpop.permute.xlu0 %721
      %vm724 = vcmask 130048
      %v726 = vsel %vm724, %v639, 0
      %v729 = vsel %vm724, %v641, 0
      %v732 = vsel %vm724, %v643, 0
      %v735 = vsel %vm724, %v645, 0
      %737 = vmatpush.msra.mxu0 %v691
      %738 = vmatpush.msra.mxu0 %v688
      %739 = vmatpush.msra.mxu0 %v685
      %740 = vmatpush.msra.mxu0 %v682
      %741 = vmatpush.msra.mxu0 %v679
      %742 = vmatpush.msra.mxu0 %v676
      %743 = vmatpush.msra.mxu0 %v673
      %744 = vmatpush.msra.mxu0 %v670
      %745 = vmatpush.msra.mxu0 %v667
      %746 = vmatpush.msra.mxu0 %v664
      %747 = vmatpush.msra.mxu0 %v661
      %748 = vmatpush.msra.mxu0 %v658
      %749 = vmatpush.msra.mxu0 %v655
      %750 = vmatpush.msra.mxu0 %v652
      %751 = vmatpush.msra.mxu0 %v649
      %752 = vmatpush.msra.mxu0 %v646
      %753 = vmatmul.f32.gmra.mxu0 %v638
      %v754 = vpop.f32.mrf.mxu0
      %v755 = vadd.f32 %v707, %v754
      %756 = vmatmul.f32.gmra.mxu0 %v640
      %v757 = vpop.f32.mrf.mxu0
      %v758 = vadd.f32 %v712, %v757
      %759 = vmatmul.f32.gmra.mxu0 %v642
      %v760 = vpop.f32.mrf.mxu0
      %v761 = vadd.f32 %v717, %v760
      %762 = vmatmul.f32.gmra.mxu0 %v644
      %v763 = vpop.f32.mrf.mxu0
      %v764 = vadd.f32 %v722, %v763
      %765 = vdwg.mxu0
      %766 = vmatpush.msra.mxu0 0.0
      %767 = vmatpush.msra.mxu0 0.0
      %768 = vmatpush.msra.mxu0 0.0
      %769 = vmatpush.msra.mxu0 0.0
      %770 = vmatpush.msra.mxu0 0.0
      %771 = vmatpush.msra.mxu0 0.0
      %772 = vmatpush.msra.mxu0 0.0
      %773 = vmatpush.msra.mxu0 0.0
      %774 = vmatpush.msra.mxu0 0.0
      %775 = vmatpush.msra.mxu0 0.0
      %776 = vmatpush.msra.mxu0 0.0
      %777 = vmatpush.msra.mxu0 0.0
      %778 = vmatpush.msra.mxu0 0.0
      %779 = vmatpush.msra.mxu0 0.0
      %780 = vmatpush.msra.mxu0 %v697
      %781 = vmatpush.msra.mxu0 %v694
      %782 = vmatmul.f32.gmra.mxu0 %v726
      %v783 = vpop.f32.mrf.mxu0
      %v784 = vadd.f32 %v755, %v783
      %785 = vmatmul.f32.gmra.mxu0 %v729
      %v786 = vpop.f32.mrf.mxu0
      %v787 = vadd.f32 %v758, %v786
      %788 = vmatmul.f32.gmra.mxu0 %v732
      %v789 = vpop.f32.mrf.mxu0
      %v790 = vadd.f32 %v761, %v789
      %791 = vmatmul.f32.gmra.mxu0 %v735
      %v792 = vpop.f32.mrf.mxu0
      %v793 = vadd.f32 %v764, %v792
      %794 = vdwg.mxu0
      %795 = vmatpush.msra.mxu0 %v692
      %796 = vmatpush.msra.mxu0 %v689
      %797 = vmatpush.msra.mxu0 %v686
      %798 = vmatpush.msra.mxu0 %v683
      %799 = vmatpush.msra.mxu0 %v680
      %800 = vmatpush.msra.mxu0 %v677
      %801 = vmatpush.msra.mxu0 %v674
      %802 = vmatpush.msra.mxu0 %v671
      %803 = vmatpush.msra.mxu0 %v668
      %804 = vmatpush.msra.mxu0 %v665
      %805 = vmatpush.msra.mxu0 %v662
      %806 = vmatpush.msra.mxu0 %v659
      %807 = vmatpush.msra.mxu0 %v656
      %808 = vmatpush.msra.mxu0 %v653
      %809 = vmatpush.msra.mxu0 %v650
      %810 = vmatpush.msra.mxu0 %v647
      %811 = vmatmul.f32.gmra.mxu0 %v638
      %v812 = vpop.f32.mrf.mxu0
      %v813 = vadd.f32 %v707, %v812
      %814 = vmatmul.f32.gmra.mxu0 %v640
      %v815 = vpop.f32.mrf.mxu0
      %v816 = vadd.f32 %v712, %v815
      %817 = vmatmul.f32.gmra.mxu0 %v642
      %v818 = vpop.f32.mrf.mxu0
      %v819 = vadd.f32 %v717, %v818
      %820 = vmatmul.f32.gmra.mxu0 %v644
      %v821 = vpop.f32.mrf.mxu0
      %v822 = vadd.f32 %v722, %v821
      %823 = vdwg.mxu0
      %824 = vmatpush.msra.mxu0 0.0
      %825 = vmatpush.msra.mxu0 0.0
      %826 = vmatpush.msra.mxu0 0.0
      %827 = vmatpush.msra.mxu0 0.0
      %828 = vmatpush.msra.mxu0 0.0
      %829 = vmatpush.msra.mxu0 0.0
      %830 = vmatpush.msra.mxu0 0.0
      %831 = vmatpush.msra.mxu0 0.0
      %832 = vmatpush.msra.mxu0 0.0
      %833 = vmatpush.msra.mxu0 0.0
      %834 = vmatpush.msra.mxu0 0.0
      %835 = vmatpush.msra.mxu0 0.0
      %836 = vmatpush.msra.mxu0 0.0
      %837 = vmatpush.msra.mxu0 0.0
      %838 = vmatpush.msra.mxu0 %v698
      %839 = vmatpush.msra.mxu0 %v695
      %840 = vmatmul.f32.gmra.mxu0 %v726
      %v841 = vpop.f32.mrf.mxu0
      %v842 = vadd.f32 %v813, %v841
      %843 = vmatmul.f32.gmra.mxu0 %v729
      %v844 = vpop.f32.mrf.mxu0
      %v845 = vadd.f32 %v816, %v844
      %846 = vmatmul.f32.gmra.mxu0 %v732
      %v847 = vpop.f32.mrf.mxu0
      %v848 = vadd.f32 %v819, %v847
      %849 = vmatmul.f32.gmra.mxu0 %v735
      %v850 = vpop.f32.mrf.mxu0
      %v851 = vadd.f32 %v822, %v850
      %852 = vdwg.mxu0
      %853 = vmatpush.msra.mxu0 %v693
      %854 = vmatpush.msra.mxu0 %v690
      %855 = vmatpush.msra.mxu0 %v687
      %856 = vmatpush.msra.mxu0 %v684
      %857 = vmatpush.msra.mxu0 %v681
      %858 = vmatpush.msra.mxu0 %v678
      %859 = vmatpush.msra.mxu0 %v675
      %860 = vmatpush.msra.mxu0 %v672
      %861 = vmatpush.msra.mxu0 %v669
      %862 = vmatpush.msra.mxu0 %v666
      %863 = vmatpush.msra.mxu0 %v663
      %864 = vmatpush.msra.mxu0 %v660
      %865 = vmatpush.msra.mxu0 %v657
      %866 = vmatpush.msra.mxu0 %v654
      %867 = vmatpush.msra.mxu0 %v651
      %868 = vmatpush.msra.mxu0 %v648
      %869 = vmatmul.f32.gmra.mxu0 %v638
      %v870 = vpop.f32.mrf.mxu0
      %v871 = vadd.f32 %v707, %v870
      %872 = vmatmul.f32.gmra.mxu0 %v640
      %v873 = vpop.f32.mrf.mxu0
      %v874 = vadd.f32 %v712, %v873
      %875 = vmatmul.f32.gmra.mxu0 %v642
      %v876 = vpop.f32.mrf.mxu0
      %v877 = vadd.f32 %v717, %v876
      %878 = vmatmul.f32.gmra.mxu0 %v644
      %v879 = vpop.f32.mrf.mxu0
      %v880 = vadd.f32 %v722, %v879
      %881 = vdwg.mxu0
      %882 = vmatpush.msra.mxu0 0.0
      %883 = vmatpush.msra.mxu0 0.0
      %884 = vmatpush.msra.mxu0 0.0
      %885 = vmatpush.msra.mxu0 0.0
      %886 = vmatpush.msra.mxu0 0.0
      %887 = vmatpush.msra.mxu0 0.0
      %888 = vmatpush.msra.mxu0 0.0
      %889 = vmatpush.msra.mxu0 0.0
      %890 = vmatpush.msra.mxu0 0.0
      %891 = vmatpush.msra.mxu0 0.0
      %892 = vmatpush.msra.mxu0 0.0
      %893 = vmatpush.msra.mxu0 0.0
      %894 = vmatpush.msra.mxu0 0.0
      %895 = vmatpush.msra.mxu0 0.0
      %896 = vmatpush.msra.mxu0 %v699
      %897 = vmatpush.msra.mxu0 %v696
      %898 = vmatmul.f32.gmra.mxu0 %v726
      %v899 = vpop.f32.mrf.mxu0
      %v900 = vadd.f32 %v871, %v899
      %901 = vmatmul.f32.gmra.mxu0 %v729
      %v902 = vpop.f32.mrf.mxu0
      %v903 = vadd.f32 %v874, %v902
      %904 = vmatmul.f32.gmra.mxu0 %v732
      %v905 = vpop.f32.mrf.mxu0
      %v906 = vadd.f32 %v877, %v905
      %907 = vmatmul.f32.gmra.mxu0 %v735
      %v908 = vpop.f32.mrf.mxu0
      %v909 = vadd.f32 %v880, %v908
      %910 = vdwg.mxu0
      %v911 = vld [vmem:[%s5] sm:$0x7]
      %v913 = vperm.slane %v911, 0
      %v914 = vperm.slane %v911, 1
      %v915 = vperm.slane %v911, 2
      %916 = vrot.lane.b32.xlu0 %v913, 109
      %v917 = vpop.permute.xlu0 %916
      %918 = vrot.lane.b32.xlu0 %v914, 109
      %v919 = vpop.permute.xlu0 %918
      %920 = vrot.lane.b32.xlu0 %v915, 109
      %v921 = vpop.permute.xlu0 %920
      %v922 = vsel %vm505, %v917, %v919
      %v923 = vsel %vm505, %v919, %v921
      %v927 = vmul.f32 %v784, %v922
      %v928 = vmul.f32 %v842, %v923
      %v929 = vmul.f32 %v900, %v921
      %v930 = vmul.f32 %v787, %v922
      %v931 = vmul.f32 %v845, %v923
      %v932 = vmul.f32 %v903, %v921
      %v933 = vmul.f32 %v790, %v922
      %v934 = vmul.f32 %v848, %v923
      %v935 = vmul.f32 %v906, %v921
      %v936 = vmul.f32 %v793, %v922
      %v937 = vmul.f32 %v851, %v923
      %v938 = vmul.f32 %v909, %v921
      %v939 = vadd.f32 %v927, %v928
      %v940 = vsel %vm395, %v929, 0.0
      %v941 = vadd.f32 %v939, %v940
      %942 = vadd.xlane.f32.xlu0 %v941
      %v943 = vpop.xlane.xlu0 %942
      %v944 = vadd.f32 %v930, %v931
      %v945 = vsel %vm395, %v932, 0.0
      %v946 = vadd.f32 %v944, %v945
      %947 = vadd.xlane.f32.xlu0 %v946
      %v948 = vpop.xlane.xlu0 %947
      %v949 = vadd.f32 %v933, %v934
      %v950 = vsel %vm395, %v935, 0.0
      %v951 = vadd.f32 %v949, %v950
      %952 = vadd.xlane.f32.xlu0 %v951
      %v953 = vpop.xlane.xlu0 %952
      %v954 = vadd.f32 %v936, %v937
      %v955 = vsel %vm395, %v938, 0.0
      %v956 = vadd.f32 %v954, %v955
      %957 = vadd.xlane.f32.xlu0 %v956
      %v958 = vpop.xlane.xlu0 %957
      %vm959 = vcmask 7168
      %960 = vst.msk [vmem:[%s325] sm:$0xff] %vm959, %v943
      %961 = vst.msk [vmem:[%s325 + $0x8] sm:$0xff] %vm959, %v948
      %962 = vst.msk [vmem:[%s325 + $0x10] sm:$0xff] %vm959, %v953
      %963 = vst.msk [vmem:[%s325 + $0x18] sm:$0xff] %vm959, %v958
      %v964 = vmul.f32 %v927, %v927
      %v965 = vmul.f32 %v928, %v928
      %v966 = vmul.f32 %v929, %v929
      %v967 = vmul.f32 %v930, %v930
      %v968 = vmul.f32 %v931, %v931
      %v969 = vmul.f32 %v932, %v932
      %v970 = vmul.f32 %v933, %v933
      %v971 = vmul.f32 %v934, %v934
      %v972 = vmul.f32 %v935, %v935
      %v973 = vmul.f32 %v936, %v936
      %v974 = vmul.f32 %v937, %v937
      %v975 = vmul.f32 %v938, %v938
      %v976 = vadd.f32 %v964, %v965
      %v977 = vsel %vm395, %v966, 0.0
      %v978 = vadd.f32 %v976, %v977
      %979 = vadd.xlane.f32.xlu0 %v978
      %v980 = vpop.xlane.xlu0 %979
      %v981 = vadd.f32 %v967, %v968
      %v982 = vsel %vm395, %v969, 0.0
      %v983 = vadd.f32 %v981, %v982
      %984 = vadd.xlane.f32.xlu0 %v983
      %v985 = vpop.xlane.xlu0 %984
      %v986 = vadd.f32 %v970, %v971
      %v987 = vsel %vm395, %v972, 0.0
      %v988 = vadd.f32 %v986, %v987
      %989 = vadd.xlane.f32.xlu0 %v988
      %v990 = vpop.xlane.xlu0 %989
      %v991 = vadd.f32 %v973, %v974
      %v992 = vsel %vm395, %v975, 0.0
      %v993 = vadd.f32 %v991, %v992
      %994 = vadd.xlane.f32.xlu0 %v993
      %v995 = vpop.xlane.xlu0 %994
      %996 = vst.msk [vmem:[%s330] sm:$0xff] %vm959, %v980
      %997 = vst.msk [vmem:[%s330 + $0x8] sm:$0xff] %vm959, %v985
      %998 = vst.msk [vmem:[%s330 + $0x10] sm:$0xff] %vm959, %v990
      %999 = vst.msk [vmem:[%s330 + $0x18] sm:$0xff] %vm959, %v995
      %1000 = vst [vmem:[%s320] sm:$0xff] %v784
      %1001 = vst [vmem:[%s320 + $0x8] sm:$0xff] %v842
      %1002 = vst.msk [vmem:[%s320 + $0x10] sm:$0xff] %vm395, %v900
      %1003 = vst [vmem:[%s320 + $0x18] sm:$0xff] %v787
      %1004 = vst [vmem:[%s320 + $0x20] sm:$0xff] %v845
      %1005 = vst.msk [vmem:[%s320 + $0x28] sm:$0xff] %vm395, %v903
      %1006 = vst [vmem:[%s320 + $0x30] sm:$0xff] %v790
      %1007 = vst [vmem:[%s320 + $0x38] sm:$0xff] %v848
      %1008 = vst.msk [vmem:[%s320 + $0x40] sm:$0xff] %vm395, %v906
      %1009 = vst [vmem:[%s320 + $0x48] sm:$0xff] %v793
      %1010 = vst [vmem:[%s320 + $0x50] sm:$0xff] %v851
      %1011 = vst.msk [vmem:[%s320 + $0x58] sm:$0xff] %vm395, %v909
      %p1012 = scmp.lt.s32.totalorder %s20, 1
      %s1013 = scalar_select %p1012, %s20, 1
      %s1014 = smul.addr %s1013, 12
      %s1015 = smul.addr %s1014, 8
      %s1016 = scalar_lea.vmem %s6, %s1015
      %p1017 = scmp.lt.s32.totalorder %s20, 1
      %s1018 = scalar_select %p1017, %s20, 1
      %s1019 = smul.addr %s1018, 4
      %s1020 = smul.addr %s1019, 8
      %s1021 = scalar_lea.vmem %s7, %s1020
      %p1022 = scmp.lt.s32.totalorder %s20, 1
      %s1023 = scalar_select %p1022, %s20, 1
      %s1024 = smul.addr %s1023, 4
      %s1025 = smul.addr %s1024, 8
      %s1026 = scalar_lea.vmem %s8, %s1025
      // Predicated region
      $region45: #{resblock1_forward.5} parent=43 // pred_check
        %p1027 = pneg %p169
      $region46: #{resblock1_forward.5} parent=43 // pred_check_branch
        %1029 = sbr.rel (%p1027) target = $region48
      $region47: #{resblock1_forward.5} parent=43 // pred_region
        _
      $region48: #{resblock1_forward.5} parent=43 // pred_fallthru
        _
      // Predicated region
      $region49: #{resblock1_forward.5} parent=43 // pred_check
        %p1030 = pneg %p195
      $region50: #{resblock1_forward.5} parent=43 // pred_check_branch
        %1032 = sbr.rel (%p1030) target = $region52
      $region51: #{resblock1_forward.5} parent=43 // pred_region
        _
      $region52: #{resblock1_forward.5} parent=43 // pred_fallthru
        _
      // Predicated region
      $region53: #{resblock1_forward.5} parent=43 // pred_check
        %p1033 = pneg %p221
      $region54: #{resblock1_forward.5} parent=43 // pred_check_branch
        %1035 = sbr.rel (%p1033) target = $region56
      $region55: #{resblock1_forward.5} parent=43 // pred_region
        _
      $region56: #{resblock1_forward.5} parent=43 // pred_fallthru
        _
    $region44: #{resblock1_forward.5} parent=5 // pred_fallthru
      _
    %p1036 = scmp.le.s32.totalorder 2, %s15
    // Predicated region
    $region57: #{resblock1_forward.5} parent=5 // pred_check
      %p1037 = pneg %p1036
    $region58: #{resblock1_forward.5} parent=5 // pred_check_branch
      %1039 = sbr.rel (%p1037) target = $region60
    $region59: #{resblock1_forward.5} parent=5 // pred_region
      %s1040 = ssub.s32 %s15, 2
      // Predicated region
      $region61: #{resblock1_forward.5} parent=59 // pred_check
        %p1041 = pneg %p175
      $region62: #{resblock1_forward.5} parent=59 // pred_check_branch
        %1043 = sbr.rel (%p1041) target = $region64
      $region63: #{resblock1_forward.5} parent=59 // pred_region
        %p1044 = scmp.lt.s32.totalorder %s21, 1
        %s1045 = scalar_select %p1044, %s21, 1
        %s1046 = smul.addr %s1045, 12
        %s1047 = smul.addr %s1046, 8
        %s1048 = scalar_lea.vmem %s6, %s1047
      $region64: #{resblock1_forward.5} parent=59 // pred_fallthru
        _
      // Predicated region
      $region65: #{resblock1_forward.5} parent=59 // pred_check
        %p1049 = pneg %p201
      $region66: #{resblock1_forward.5} parent=59 // pred_check_branch
        %1051 = sbr.rel (%p1049) target = $region68
      $region67: #{resblock1_forward.5} parent=59 // pred_region
        %p1052 = scmp.lt.s32.totalorder %s21, 1
        %s1053 = scalar_select %p1052, %s21, 1
        %s1054 = smul.addr %s1053, 4
        %s1055 = smul.addr %s1054, 8
        %s1056 = scalar_lea.vmem %s7, %s1055
      $region68: #{resblock1_forward.5} parent=59 // pred_fallthru
        _
      // Predicated region
      $region69: #{resblock1_forward.5} parent=59 // pred_check
        %p1057 = pneg %p227
      $region70: #{resblock1_forward.5} parent=59 // pred_check_branch
        %1059 = sbr.rel (%p1057) target = $region72
      $region71: #{resblock1_forward.5} parent=59 // pred_region
        %p1060 = scmp.lt.s32.totalorder %s21, 1
        %s1061 = scalar_select %p1060, %s21, 1
        %s1062 = smul.addr %s1061, 4
        %s1063 = smul.addr %s1062, 8
        %s1064 = scalar_lea.vmem %s8, %s1063
      $region72: #{resblock1_forward.5} parent=59 // pred_fallthru
        _
    $region60: #{resblock1_forward.5} parent=5 // pred_fallthru
      _
  $region6: #{resblock1_forward.5} parent=0 // loop_footer
    %s19 = sadd.s32 1, %s15
  $region7: #{resblock1_forward.5} parent=0 // loop_footer_branch
    %14 = sbr.rel target = $region3
  $region8: #{resblock1_forward.5} parent=0 // loop_exit
    _

// kernel: resblock1_forward.7
$region0: #{resblock1_forward.7}
  #allocation0 [shape = 'u32[]', space=smem, size = 0x4, offset = 0x4, fixed_abs, tag = 'smem constant byte address 0x4 - core index']
  #allocation1 [shape = 'u32[72,128]{1,0:T(1,128)}', space=vmem, size = 0x9000, scoped, tag = 'internal scratch']
  #allocation2 [shape = 'f32[144,288]{1,0:T(8,128)}', space=vmem, size = 0x36000, scoped, tag = 'scratch operand']
  %s0 = inlined_call_operand.vmem [shape: f32[2,16,384], index: 0, kind: input, shape index: {}]
  %s1 = inlined_call_operand.vmem [shape: f32[16,1], index: 1, kind: input, shape index: {}]
  %s2 = inlined_call_operand.vmem [shape: f32[16,1], index: 2, kind: input, shape index: {}]
  %s3 = inlined_call_operand.vmem [shape: f32[32,144], index: 3, kind: input, shape index: {}]
  %s4 = inlined_call_operand.vmem [shape: f32[32,1], index: 4, kind: input, shape index: {}]
  %s5 = inlined_call_operand.vmem [shape: f32[1,384], index: 5, kind: input, shape index: {}]
  %s6 = inlined_call_operand.vmem [shape: f32[2,32,288], index: 6, kind: input, shape index: {}]
  %s7 = inlined_call_operand.vmem [shape: f32[2,32,288], index: 7, kind: output, shape index: {0}]
  %s8 = inlined_call_operand.hbm [shape: f32[2,32,1], index: 8, kind: output, shape index: {1}]
  %s9 = inlined_call_operand.hbm [shape: f32[2,32,1], index: 9, kind: output, shape index: {2}]
  %10 = xla_tuple %s7, %s8, %s9
  %s11 = sld [smem:[#allocation0]]
  $region77: #{resblock1_forward.7} parent=0
    _
  %s13 = ssub.s32 1, %s11
  %s14 = scalar_select 0, %s13, %s11
  $region1: #{resblock1_forward.7} parent=0
    #allocation3 [shape = 'u8[32768]{0}', space=vmem, size = 0x8000, scoped, tag = 'output window, operand 1']
    #allocation4 [shape = 's32[2]{0}', space=sflag, size = 0x8, scoped, tag = 'scoped memory for resblock1_forward.7']
    #allocation5 [shape = 'u8[32768]{0}', space=vmem, size = 0x8000, scoped, tag = 'output window, operand 2']
    #allocation6 [shape = 's32[2]{0}', space=sflag, size = 0x8, scoped, tag = 'scoped memory for resblock1_forward.7']
    %15 = vsyncpa [#allocation4], 0
    %s16 = scalar_lea.sflag [#allocation4], 1
    %17 = vsyncpa %s16, 0
    %18 = vsyncpa [#allocation6], 0
    %s19 = scalar_lea.sflag [#allocation6], 1
    %20 = vsyncpa %s19, 0
    loop: start=0, step=1, limit=4
    $region2: #{resblock1_forward.7} parent=1 // loop_pre_header
      _
    $region3: #{resblock1_forward.7} parent=1 // loop_header
      %s22 = sphi 0, %s26
      %p23 = scmp.ge.s32.totalorder %s22, 4
      %s32 = sphi 0, %s34
      %s35 = sphi 0, %s32
      %s36 = sphi 0, %s35
      %s52 = sphi 0, %s36
      %s56 = sphi 0, %s56
      %s58 = sphi 0, %s56
      %s59 = sphi 0, %s58
      %s73 = sphi 0, %s59
      %s77 = sphi 0, %s77
      %s79 = sphi 0, %s77
      %s80 = sphi 0, %s79
      %s94 = sphi 0, %s80
      %s98 = sphi 0, %s98
      %s100 = sphi 0, %s98
      %s101 = sphi 0, %s100
      %s115 = sphi 0, %s101
      %s119 = sphi 0, %s119
      %s121 = sphi 0, %s119
      %s122 = sphi 0, %s121
      %s136 = sphi 0, %s122
      %s140 = sphi 0, %s140
      %s142 = sphi 0, %s140
      %s143 = sphi 0, %s142
      %s157 = sphi 0, %s143
      %s163 = sphi 0, %s165
      %s166 = sphi 0, %s163
      %s167 = sphi 0, %s166
      %s183 = sphi 0, %s167
      %s189 = sphi 0, %s191
      %s192 = sphi 0, %s189
      %s193 = sphi 0, %s192
      %s209 = sphi 0, %s193
      %s215 = sphi 0, %s217
      %s218 = sphi 0, %s215
      %s219 = sphi 0, %s218
      %s235 = sphi 0, %s219
      %s241 = sphi 0, %s243
      %s244 = sphi 0, %s241
      %s245 = sphi 0, %s244
      %s261 = sphi 0, %s245
    $region4: #{resblock1_forward.7} parent=1 // loop_header_branch
      %25 = sbr.rel (%p23) target = $region8
    $region5: #{resblock1_forward.7} parent=1 // loop_body
      %s27 = ssub.s32 %s22, 1
      %s28 = ssub.s32 %s22, 2
      %s29 = sadd.s32 %s22, 1
      %s30 = ssub.s32 %s22, %s29
      %p31 = scmp.eq.s32.totalorder %s30, 0
      %s33 = sadd.s32 %s32, 1
      %s34 = scalar_select %p31, %s32, %s33
      %p37 = pneg %p31
      %p38 = scmp.eq.s32.totalorder %s22, 1
      %p39 = por %p37, %p38
      %p40 = scmp.ne.s32.totalorder %s32, %s35
      %p41 = scmp.eq.s32.totalorder %s22, 0
      %p42 = por %p40, %p41
      %p43 = scmp.ne.s32.totalorder %s32, %s35
      %p44 = scmp.eq.s32.totalorder %s27, 1
      %p45 = por %p43, %p44
      %p46 = scmp.ne.s32.totalorder %s35, %s36
      %p47 = scmp.eq.s32.totalorder %s27, 0
      %p48 = por %p46, %p47
      %p49 = scmp.ne.s32.totalorder %s35, %s36
      %p50 = scmp.eq.s32.totalorder %s28, 1
      %p51 = por %p49, %p50
      %p53 = scmp.ne.s32.totalorder %s36, %s52
      %p54 = scmp.eq.s32.totalorder %s28, 0
      %p55 = por %p53, %p54
      %s57 = sadd.s32 %s56, 1
      %p60 = scmp.eq.s32.totalorder %s22, 1
      %p61 = scmp.ne.s32.totalorder %s56, %s58
      %p62 = scmp.eq.s32.totalorder %s22, 0
      %p63 = por %p61, %p62
      %p64 = scmp.ne.s32.totalorder %s56, %s58
      %p65 = scmp.eq.s32.totalorder %s27, 1
      %p66 = por %p64, %p65
      %p67 = scmp.ne.s32.totalorder %s58, %s59
      %p68 = scmp.eq.s32.totalorder %s27, 0
      %p69 = por %p67, %p68
      %p70 = scmp.ne.s32.totalorder %s58, %s59
      %p71 = scmp.eq.s32.totalorder %s28, 1
      %p72 = por %p70, %p71
      %p74 = scmp.ne.s32.totalorder %s59, %s73
      %p75 = scmp.eq.s32.totalorder %s28, 0
      %p76 = por %p74, %p75
      %s78 = sadd.s32 %s77, 1
      %p81 = scmp.eq.s32.totalorder %s22, 1
      %p82 = scmp.ne.s32.totalorder %s77, %s79
      %p83 = scmp.eq.s32.totalorder %s22, 0
      %p84 = por %p82, %p83
      %p85 = scmp.ne.s32.totalorder %s77, %s79
      %p86 = scmp.eq.s32.totalorder %s27, 1
      %p87 = por %p85, %p86
      %p88 = scmp.ne.s32.totalorder %s79, %s80
      %p89 = scmp.eq.s32.totalorder %s27, 0
      %p90 = por %p88, %p89
      %p91 = scmp.ne.s32.totalorder %s79, %s80
      %p92 = scmp.eq.s32.totalorder %s28, 1
      %p93 = por %p91, %p92
      %p95 = scmp.ne.s32.totalorder %s80, %s94
      %p96 = scmp.eq.s32.totalorder %s28, 0
      %p97 = por %p95, %p96
      %s99 = sadd.s32 %s98, 1
      %p102 = scmp.eq.s32.totalorder %s22, 1
      %p103 = scmp.ne.s32.totalorder %s98, %s100
      %p104 = scmp.eq.s32.totalorder %s22, 0
      %p105 = por %p103, %p104
      %p106 = scmp.ne.s32.totalorder %s98, %s100
      %p107 = scmp.eq.s32.totalorder %s27, 1
      %p108 = por %p106, %p107
      %p109 = scmp.ne.s32.totalorder %s100, %s101
      %p110 = scmp.eq.s32.totalorder %s27, 0
      %p111 = por %p109, %p110
      %p112 = scmp.ne.s32.totalorder %s100, %s101
      %p113 = scmp.eq.s32.totalorder %s28, 1
      %p114 = por %p112, %p113
      %p116 = scmp.ne.s32.totalorder %s101, %s115
      %p117 = scmp.eq.s32.totalorder %s28, 0
      %p118 = por %p116, %p117
      %s120 = sadd.s32 %s119, 1
      %p123 = scmp.eq.s32.totalorder %s22, 1
      %p124 = scmp.ne.s32.totalorder %s119, %s121
      %p125 = scmp.eq.s32.totalorder %s22, 0
      %p126 = por %p124, %p125
      %p127 = scmp.ne.s32.totalorder %s119, %s121
      %p128 = scmp.eq.s32.totalorder %s27, 1
      %p129 = por %p127, %p128
      %p130 = scmp.ne.s32.totalorder %s121, %s122
      %p131 = scmp.eq.s32.totalorder %s27, 0
      %p132 = por %p130, %p131
      %p133 = scmp.ne.s32.totalorder %s121, %s122
      %p134 = scmp.eq.s32.totalorder %s28, 1
      %p135 = por %p133, %p134
      %p137 = scmp.ne.s32.totalorder %s122, %s136
      %p138 = scmp.eq.s32.totalorder %s28, 0
      %p139 = por %p137, %p138
      %s141 = sadd.s32 %s140, 1
      %p144 = scmp.eq.s32.totalorder %s22, 1
      %p145 = scmp.ne.s32.totalorder %s140, %s142
      %p146 = scmp.eq.s32.totalorder %s22, 0
      %p147 = por %p145, %p146
      %p148 = scmp.ne.s32.totalorder %s140, %s142
      %p149 = scmp.eq.s32.totalorder %s27, 1
      %p150 = por %p148, %p149
      %p151 = scmp.ne.s32.totalorder %s142, %s143
      %p152 = scmp.eq.s32.totalorder %s27, 0
      %p153 = por %p151, %p152
      %p154 = scmp.ne.s32.totalorder %s142, %s143
      %p155 = scmp.eq.s32.totalorder %s28, 1
      %p156 = por %p154, %p155
      %p158 = scmp.ne.s32.totalorder %s143, %s157
      %p159 = scmp.eq.s32.totalorder %s28, 0
      %p160 = por %p158, %p159
      %s161 = ssub.s32 %s22, %s29
      %p162 = scmp.eq.s32.totalorder %s161, 0
      %s164 = sadd.s32 %s163, 1
      %s165 = scalar_select %p162, %s163, %s164
      %p168 = pneg %p162
      %p169 = scmp.eq.s32.totalorder %s22, 1
      %p170 = por %p168, %p169
      %p171 = scmp.ne.s32.totalorder %s163, %s166
      %p172 = scmp.eq.s32.totalorder %s22, 0
      %p173 = por %p171, %p172
      %p174 = scmp.ne.s32.totalorder %s163, %s166
      %p175 = scmp.eq.s32.totalorder %s27, 1
      %p176 = por %p174, %p175
      %p177 = scmp.ne.s32.totalorder %s166, %s167
      %p178 = scmp.eq.s32.totalorder %s27, 0
      %p179 = por %p177, %p178
      %p180 = scmp.ne.s32.totalorder %s166, %s167
      %p181 = scmp.eq.s32.totalorder %s28, 1
      %p182 = por %p180, %p181
      %p184 = scmp.ne.s32.totalorder %s167, %s183
      %p185 = scmp.eq.s32.totalorder %s28, 0
      %p186 = por %p184, %p185
      %s187 = ssub.s32 %s22, %s29
      %p188 = scmp.eq.s32.totalorder %s187, 0
      %s190 = sadd.s32 %s189, 1
      %s191 = scalar_select %p188, %s189, %s190
      %p194 = pneg %p188
      %p195 = scmp.eq.s32.totalorder %s22, 1
      %p196 = por %p194, %p195
      %p197 = scmp.ne.s32.totalorder %s189, %s192
      %p198 = scmp.eq.s32.totalorder %s22, 0
      %p199 = por %p197, %p198
      %p200 = scmp.ne.s32.totalorder %s189, %s192
      %p201 = scmp.eq.s32.totalorder %s27, 1
      %p202 = por %p200, %p201
      %p203 = scmp.ne.s32.totalorder %s192, %s193
      %p204 = scmp.eq.s32.totalorder %s27, 0
      %p205 = por %p203, %p204
      %p206 = scmp.ne.s32.totalorder %s192, %s193
      %p207 = scmp.eq.s32.totalorder %s28, 1
      %p208 = por %p206, %p207
      %p210 = scmp.ne.s32.totalorder %s193, %s209
      %p211 = scmp.eq.s32.totalorder %s28, 0
      %p212 = por %p210, %p211
      %s213 = ssub.s32 %s22, %s29
      %p214 = scmp.eq.s32.totalorder %s213, 0
      %s216 = sadd.s32 %s215, 1
      %s217 = scalar_select %p214, %s215, %s216
      %p220 = pneg %p214
      %p221 = scmp.eq.s32.totalorder %s22, 1
      %p222 = por %p220, %p221
      %p223 = scmp.ne.s32.totalorder %s215, %s218
      %p224 = scmp.eq.s32.totalorder %s22, 0
      %p225 = por %p223, %p224
      %p226 = scmp.ne.s32.totalorder %s215, %s218
      %p227 = scmp.eq.s32.totalorder %s27, 1
      %p228 = por %p226, %p227
      %p229 = scmp.ne.s32.totalorder %s218, %s219
      %p230 = scmp.eq.s32.totalorder %s27, 0
      %p231 = por %p229, %p230
      %p232 = scmp.ne.s32.totalorder %s218, %s219
      %p233 = scmp.eq.s32.totalorder %s28, 1
      %p234 = por %p232, %p233
      %p236 = scmp.ne.s32.totalorder %s219, %s235
      %p237 = scmp.eq.s32.totalorder %s28, 0
      %p238 = por %p236, %p237
      %s239 = ssub.s32 %s22, %s29
      %p240 = scmp.eq.s32.totalorder %s239, 0
      %s242 = sadd.s32 %s241, 1
      %s243 = scalar_select %p240, %s241, %s242
      %p246 = pneg %p240
      %p247 = scmp.eq.s32.totalorder %s22, 1
      %p248 = por %p246, %p247
      %p249 = scmp.ne.s32.totalorder %s241, %s244
      %p250 = scmp.eq.s32.totalorder %s22, 0
      %p251 = por %p249, %p250
      %p252 = scmp.ne.s32.totalorder %s241, %s244
      %p253 = scmp.eq.s32.totalorder %s27, 1
      %p254 = por %p252, %p253
      %p255 = scmp.ne.s32.totalorder %s244, %s245
      %p256 = scmp.eq.s32.totalorder %s27, 0
      %p257 = por %p255, %p256
      %p258 = scmp.ne.s32.totalorder %s244, %s245
      %p259 = scmp.eq.s32.totalorder %s28, 1
      %p260 = por %p258, %p259
      %p262 = scmp.ne.s32.totalorder %s245, %s261
      %p263 = scmp.eq.s32.totalorder %s28, 0
      %p264 = por %p262, %p263
      %p265 = scmp.le.s32.totalorder 1, %s22
      %p266 = scmp.lt.s32.totalorder %s22, 3
      %p267 = pnand %p265, %p266
      %p268 = pneg %p267
      // Predicated region
      $region9: #{resblock1_forward.7} parent=5 // pred_check
        _
      $region10: #{resblock1_forward.7} parent=5 // pred_check_branch
        %270 = sbr.rel (%p267) target = $region12
      $region11: #{resblock1_forward.7} parent=5 // pred_region
        %s271 = ssub.s32 %s22, 1
        // Predicated region
        $region13: #{resblock1_forward.7} parent=11 // pred_check
          %p272 = pneg %p69
        $region14: #{resblock1_forward.7} parent=11 // pred_check_branch
          %274 = sbr.rel (%p272) target = $region16
        $region15: #{resblock1_forward.7} parent=11 // pred_region
          _
        $region16: #{resblock1_forward.7} parent=11 // pred_fallthru
          _
        // Predicated region
        $region17: #{resblock1_forward.7} parent=11 // pred_check
          %p275 = pneg %p90
        $region18: #{resblock1_forward.7} parent=11 // pred_check_branch
          %277 = sbr.rel (%p275) target = $region20
        $region19: #{resblock1_forward.7} parent=11 // pred_region
          _
        $region20: #{resblock1_forward.7} parent=11 // pred_fallthru
          _
        // Predicated region
        $region21: #{resblock1_forward.7} parent=11 // pred_check
          %p278 = pneg %p111
        $region22: #{resblock1_forward.7} parent=11 // pred_check_branch
          %280 = sbr.rel (%p278) target = $region24
        $region23: #{resblock1_forward.7} parent=11 // pred_region
          _
        $region24: #{resblock1_forward.7} parent=11 // pred_fallthru
          _
        // Predicated region
        $region25: #{resblock1_forward.7} parent=11 // pred_check
          %p281 = pneg %p132
        $region26: #{resblock1_forward.7} parent=11 // pred_check_branch
          %283 = sbr.rel (%p281) target = $region28
        $region27: #{resblock1_forward.7} parent=11 // pred_region
          _
        $region28: #{resblock1_forward.7} parent=11 // pred_fallthru
          _
        // Predicated region
        $region29: #{resblock1_forward.7} parent=11 // pred_check
          %p284 = pneg %p153
        $region30: #{resblock1_forward.7} parent=11 // pred_check_branch
          %286 = sbr.rel (%p284) target = $region32
        $region31: #{resblock1_forward.7} parent=11 // pred_region
          _
        $region32: #{resblock1_forward.7} parent=11 // pred_fallthru
          _
      $region12: #{resblock1_forward.7} parent=5 // pred_fallthru
        _
      %p287 = scmp.lt.s32.totalorder %s22, 2
      // Predicated region
      $region33: #{resblock1_forward.7} parent=5 // pred_check
        %p288 = pneg %p287
      $region34: #{resblock1_forward.7} parent=5 // pred_check_branch
        %290 = sbr.rel (%p288) target = $region36
      $region35: #{resblock1_forward.7} parent=5 // pred_region
        // Predicated region
        $region37: #{resblock1_forward.7} parent=35 // pred_check
          %p291 = pneg %p42
        $region38: #{resblock1_forward.7} parent=35 // pred_check_branch
          %293 = sbr.rel (%p291) target = $region40
        $region39: #{resblock1_forward.7} parent=35 // pred_region
          %p294 = scmp.lt.s32.totalorder %s22, 1
          %s295 = scalar_select %p294, %s22, 1
          %s296 = smul.addr %s295, 6
          %s297 = smul.addr %s296, 8
          %s298 = scalar_lea.vmem %s0, %s297
        $region40: #{resblock1_forward.7} parent=35 // pred_fallthru
          _
        // Predicated region
        $region41: #{resblock1_forward.7} parent=35 // pred_check
          %p299 = pneg %p173
        $region42: #{resblock1_forward.7} parent=35 // pred_check_branch
          %301 = sbr.rel (%p299) target = $region44
        $region43: #{resblock1_forward.7} parent=35 // pred_region
          %p302 = scmp.lt.s32.totalorder %s22, 1
          %s303 = scalar_select %p302, %s22, 1
          %s304 = smul.addr %s303, 12
          %s305 = smul.addr %s304, 8
          %s306 = scalar_lea.vmem %s6, %s305
        $region44: #{resblock1_forward.7} parent=35 // pred_fallthru
          _
      $region36: #{resblock1_forward.7} parent=5 // pred_fallthru
        _
      %p307 = scmp.le.s32.totalorder 1, %s22
      %p308 = scmp.lt.s32.totalorder %s22, 3
      %p309 = pnand %p307, %p308
      %p310 = pneg %p309
      // Predicated region
      $region45: #{resblock1_forward.7} parent=5 // pred_check
        _
      $region46: #{resblock1_forward.7} parent=5 // pred_check_branch
        %312 = sbr.rel (%p309) target = $region48
      $region47: #{resblock1_forward.7} parent=5 // pred_region
        %s313 = ssub.s32 %s22, 1
        %p314 = scmp.lt.s32.totalorder %s27, 1
        %s315 = scalar_select %p314, %s27, 1
        %s316 = smul.addr %s315, 6
        %s317 = smul.addr %s316, 8
        %s318 = scalar_lea.vmem %s0, %s317
        %p319 = pneg %p48
        %p320 = pneg %p45
        %p321 = pneg %p69
        %p322 = pneg %p66
        %p323 = pneg %p90
        %p324 = pneg %p87
        %p325 = pneg %p111
        %p326 = pneg %p108
        %p327 = pneg %p132
        %p328 = pneg %p129
        %p329 = pneg %p153
        %p330 = pneg %p150
        %p331 = scmp.lt.s32.totalorder %s27, 1
        %s332 = scalar_select %p331, %s27, 1
        %s333 = smul.addr %s332, 12
        %s334 = smul.addr %s333, 8
        %s335 = scalar_lea.vmem %s6, %s334
        %p336 = pneg %p179
        %p337 = pneg %p176
        %p338 = pneg %p205
        %p339 = pneg %p202
        %p340 = scmp.lt.s32.totalorder %s27, 1
        %s341 = scalar_select %p340, %s27, 1
        %s342 = smul.addr %s341, 12
        %s343 = smul.addr %s342, 8
        %s344 = scalar_lea.vmem %s7, %s343
        %p345 = pneg %p231
        %p346 = pneg %p228
        %s347 = sand.u32 %s218, 1
        %s348 = scalar_lea.sflag [#allocation4], %s347
        %s349 = sand.u32 %s218, 1
        %s350 = smul.addr %s349, 32
        %s351 = scalar_lea.vmem [#allocation3], %s350
        %p352 = pneg %p257
        %p353 = pneg %p254
        %s354 = sand.u32 %s244, 1
        %s355 = scalar_lea.sflag [#allocation6], %s354
        %s356 = sand.u32 %s244, 1
        %s357 = smul.addr %s356, 32
        %s358 = scalar_lea.vmem [#allocation5], %s357
        %p359 = scmp.lt.s32.totalorder %s27, 1
        %s360 = scalar_select %p359, %s27, 1
        %s361 = smul.addr %s360, 6
        %s362 = smul.addr %s361, 8
        %s363 = scalar_lea.vmem %s0, %s362
        %p364 = scmp.lt.s32.totalorder %s27, 1
        %s365 = scalar_select %p364, %s27, 1
        %s366 = smul.addr %s365, 12
        %s367 = smul.addr %s366, 8
        %s368 = scalar_lea.vmem %s6, %s367
        %p369 = scmp.lt.s32.totalorder %s27, 1
        %s370 = scalar_select %p369, %s27, 1
        %s371 = smul.addr %s370, 12
        %s372 = smul.addr %s371, 8
        %s373 = scalar_lea.vmem %s7, %s372
        %v374 = vld [vmem:[%s363] sm:$0xff]
        %v375 = vld [vmem:[%s363 + $0x8] sm:$0xff]
        %v376 = vld [vmem:[%s363 + $0x10] sm:$0xff]
        %v377 = vld [vmem:[%s363 + $0x18] sm:$0xff]
        %v378 = vld [vmem:[%s363 + $0x20] sm:$0xff]
        %v379 = vld [vmem:[%s363 + $0x28] sm:$0xff]
        %v380 = vld [vmem:[%s1] sm:$0xff]
        %v381 = vld [vmem:[%s1 + $0x8] sm:$0xff]
        %383 = vset.pattern.permute.xlu0 0
        %384 = vperm.xlu0 %383, %v380
        %v385 = vpop.permute.xlu0 %384
        %388 = vset.pattern.permute.xlu0 0
        %389 = vperm.xlu0 %388, %v381
        %v390 = vpop.permute.xlu0 %389
        %v392 = vmul.f32 %v374, %v385
        %v393 = vmul.f32 %v375, %v385
        %v394 = vmul.f32 %v376, %v385
        %v395 = vmul.f32 %v377, %v390
        %v396 = vmul.f32 %v378, %v390
        %v397 = vmul.f32 %v379, %v390
        %v398 = vld [vmem:[%s2] sm:$0xff]
        %v399 = vld [vmem:[%s2 + $0x8] sm:$0xff]
        %401 = vset.pattern.permute.xlu0 0
        %402 = vperm.xlu0 %401, %v398
        %v403 = vpop.permute.xlu0 %402
        %406 = vset.pattern.permute.xlu0 0
        %407 = vperm.xlu0 %406, %v399
        %v408 = vpop.permute.xlu0 %407
        %v410 = vadd.f32 %v392, %v403
        %v411 = vadd.f32 %v393, %v403
        %v412 = vadd.f32 %v394, %v403
        %v413 = vadd.f32 %v395, %v408
        %v414 = vadd.f32 %v396, %v408
        %v415 = vadd.f32 %v397, %v408
        %v416 = vmax.f32 %v410, 0.0
        %v417 = vmax.f32 %v411, 0.0
        %v418 = vmax.f32 %v412, 0.0
        %v419 = vmax.f32 %v413, 0.0
        %v420 = vmax.f32 %v414, 0.0
        %v421 = vmax.f32 %v415, 0.0
        %v422 = vld [vmem:[%s5] sm:$0x7]
        %v424 = vperm.slane %v422, 0
        %v425 = vperm.slane %v422, 1
        %v426 = vperm.slane %v422, 2
        %v430 = vmul.f32 %v416, %v424
        %v431 = vmul.f32 %v417, %v425
        %v432 = vmul.f32 %v418, %v426
        %v433 = vmul.f32 %v419, %v424
        %v434 = vmul.f32 %v420, %v425
        %v435 = vmul.f32 %v421, %v426
        %436 = vst [vmem:[#allocation2] sm:$0xff] %v430
        %437 = vst [vmem:[#allocation2 + $0x8] sm:$0xff] %v431
        %vm438 = vcmask 261120
        %439 = vst.msk [vmem:[#allocation2 + $0x10] sm:$0xff] %vm438, %v432
        %440 = vst [vmem:[#allocation2 + $0x18] sm:$0xff] %v433
        %441 = vst [vmem:[#allocation2 + $0x20] sm:$0xff] %v434
        %442 = vst.msk [vmem:[#allocation2 + $0x28] sm:$0xff] %vm438, %v435
        %449 = vrot.lane.b32.xlu0 %v430, 127
        %v450 = vpop.permute.xlu0 %449
        %451 = vrot.lane.b32.xlu0 %v431, 127
        %v452 = vpop.permute.xlu0 %451
        %453 = vrot.lane.b32.xlu0 %v432, 127
        %v454 = vpop.permute.xlu0 %453
        %455 = vrot.lane.b32.xlu0 %v433, 127
        %v456 = vpop.permute.xlu0 %455
        %457 = vrot.lane.b32.xlu0 %v434, 127
        %v458 = vpop.permute.xlu0 %457
        %459 = vrot.lane.b32.xlu0 %v435, 127
        %v460 = vpop.permute.xlu0 %459
        %vm461 = vcmask 1039360
        %v462 = vsel %vm461, %v450, %v452
        %v463 = vsel %vm461, %v452, %v454
        %v464 = vsel %vm461, %v456, %v458
        %v465 = vsel %vm461, %v458, %v460
        %472 = vst [vmem:[#allocation2 + $0x30] sm:$0xff] %v462
        %473 = vst [vmem:[#allocation2 + $0x38] sm:$0xff] %v463
        %474 = vst.msk [vmem:[#allocation2 + $0x40] sm:$0xff] %vm438, %v454
        %475 = vst [vmem:[#allocation2 + $0x48] sm:$0xff] %v464
        %476 = vst [vmem:[#allocation2 + $0x50] sm:$0xff] %v465
        %477 = vst.msk [vmem:[#allocation2 + $0x58] sm:$0xff] %vm438, %v460
        %478 = vrot.lane.b32.xlu0 %v430, 126
        %v479 = vpop.permute.xlu0 %478
        %480 = vrot.lane.b32.xlu0 %v431, 126
        %v481 = vpop.permute.xlu0 %480
        %482 = vrot.lane.b32.xlu0 %v432, 126
        %v483 = vpop.permute.xlu0 %482
        %484 = vrot.lane.b32.xlu0 %v433, 126
        %v485 = vpop.permute.xlu0 %484
        %486 = vrot.lane.b32.xlu0 %v434, 126
        %v487 = vpop.permute.xlu0 %486
        %488 = vrot.lane.b32.xlu0 %v435, 126
        %v489 = vpop.permute.xlu0 %488
        %vm490 = vcmask 1031168
        %v491 = vsel %vm490, %v479, %v481
        %v492 = vsel %vm490, %v481, %v483
        %v493 = vsel %vm490, %v485, %v487
        %v494 = vsel %vm490, %v487, %v489
        %501 = vst [vmem:[#allocation2 + $0x60] sm:$0xff] %v491
        %502 = vst [vmem:[#allocation2 + $0x68] sm:$0xff] %v492
        %503 = vst.msk [vmem:[#allocation2 + $0x70] sm:$0xff] %vm438, %v483
        %504 = vst [vmem:[#allocation2 + $0x78] sm:$0xff] %v493
        %505 = vst [vmem:[#allocation2 + $0x80] sm:$0xff] %v494
        %506 = vst.msk [vmem:[#allocation2 + $0x88] sm:$0xff] %vm438, %v489
        %507 = vrot.lane.b32.xlu0 %v430, 110
        %v508 = vpop.permute.xlu0 %507
        %509 = vrot.lane.b32.xlu0 %v431, 110
        %v510 = vpop.permute.xlu0 %509
        %511 = vrot.lane.b32.xlu0 %v432, 110
        %v512 = vpop.permute.xlu0 %511
        %513 = vrot.lane.b32.xlu0 %v433, 110
        %v514 = vpop.permute.xlu0 %513
        %515 = vrot.lane.b32.xlu0 %v434, 110
        %v516 = vpop.permute.xlu0 %515
        %517 = vrot.lane.b32.xlu0 %v435, 110
        %v518 = vpop.permute.xlu0 %517
        %vm519 = vcmask 900096
        %v520 = vsel %vm519, %v508, %v510
        %v521 = vsel %vm519, %v510, %v512
        %v522 = vsel %vm519, %v514, %v516
        %v523 = vsel %vm519, %v516, %v518
        %530 = vst [vmem:[#allocation2 + $0x90] sm:$0xff] %v520
        %531 = vst [vmem:[#allocation2 + $0x98] sm:$0xff] %v521
        %532 = vst.msk [vmem:[#allocation2 + $0xa0] sm:$0xff] %vm438, %v512
        %533 = vst [vmem:[#allocation2 + $0xa8] sm:$0xff] %v522
        %534 = vst [vmem:[#allocation2 + $0xb0] sm:$0xff] %v523
        %535 = vst.msk [vmem:[#allocation2 + $0xb8] sm:$0xff] %vm438, %v518
        %536 = vrot.lane.b32.xlu0 %v430, 109
        %v537 = vpop.permute.xlu0 %536
        %538 = vrot.lane.b32.xlu0 %v431, 109
        %v539 = vpop.permute.xlu0 %538
        %540 = vrot.lane.b32.xlu0 %v432, 109
        %v541 = vpop.permute.xlu0 %540
        %542 = vrot.lane.b32.xlu0 %v433, 109
        %v543 = vpop.permute.xlu0 %542
        %544 = vrot.lane.b32.xlu0 %v434, 109
        %v545 = vpop.permute.xlu0 %544
        %546 = vrot.lane.b32.xlu0 %v435, 109
        %v547 = vpop.permute.xlu0 %546
        %vm548 = vcmask 891904
        %v549 = vsel %vm548, %v537, %v539
        %v550 = vsel %vm548, %v539, %v541
        %v551 = vsel %vm548, %v543, %v545
        %v552 = vsel %vm548, %v545, %v547
        %559 = vst [vmem:[#allocation2 + $0xc0] sm:$0xff] %v549
        %560 = vst [vmem:[#allocation2 + $0xc8] sm:$0xff] %v550
        %561 = vst.msk [vmem:[#allocation2 + $0xd0] sm:$0xff] %vm438, %v541
        %562 = vst [vmem:[#allocation2 + $0xd8] sm:$0xff] %v551
        %563 = vst [vmem:[#allocation2 + $0xe0] sm:$0xff] %v552
        %564 = vst.msk [vmem:[#allocation2 + $0xe8] sm:$0xff] %vm438, %v547
        %565 = vrot.lane.b32.xlu0 %v430, 108
        %v566 = vpop.permute.xlu0 %565
        %567 = vrot.lane.b32.xlu0 %v431, 108
        %v568 = vpop.permute.xlu0 %567
        %569 = vrot.lane.b32.xlu0 %v432, 108
        %v570 = vpop.permute.xlu0 %569
        %571 = vrot.lane.b32.xlu0 %v433, 108
        %v572 = vpop.permute.xlu0 %571
        %573 = vrot.lane.b32.xlu0 %v434, 108
        %v574 = vpop.permute.xlu0 %573
        %575 = vrot.lane.b32.xlu0 %v435, 108
        %v576 = vpop.permute.xlu0 %575
        %vm577 = vcmask 883712
        %v578 = vsel %vm577, %v566, %v568
        %v579 = vsel %vm577, %v568, %v570
        %v580 = vsel %vm577, %v572, %v574
        %v581 = vsel %vm577, %v574, %v576
        %588 = vst [vmem:[#allocation2 + $0xf0] sm:$0xff] %v578
        %589 = vst [vmem:[#allocation2 + $0xf8] sm:$0xff] %v579
        %590 = vst.msk [vmem:[#allocation2 + $0x100] sm:$0xff] %vm438, %v570
        %591 = vst [vmem:[#allocation2 + $0x108] sm:$0xff] %v580
        %592 = vst [vmem:[#allocation2 + $0x110] sm:$0xff] %v581
        %593 = vst.msk [vmem:[#allocation2 + $0x118] sm:$0xff] %vm438, %v576
        %594 = vrot.lane.b32.xlu0 %v430, 92
        %v595 = vpop.permute.xlu0 %594
        %596 = vrot.lane.b32.xlu0 %v431, 92
        %v597 = vpop.permute.xlu0 %596
        %598 = vrot.lane.b32.xlu0 %v432, 92
        %v599 = vpop.permute.xlu0 %598
        %600 = vrot.lane.b32.xlu0 %v433, 92
        %v601 = vpop.permute.xlu0 %600
        %602 = vrot.lane.b32.xlu0 %v434, 92
        %v603 = vpop.permute.xlu0 %602
        %604 = vrot.lane.b32.xlu0 %v435, 92
        %v605 = vpop.permute.xlu0 %604
        %vm606 = vcmask 752640
        %v607 = vsel %vm606, %v595, %v597
        %v608 = vsel %vm606, %v597, %v599
        %v609 = vsel %vm606, %v601, %v603
        %v610 = vsel %vm606, %v603, %v605
        %617 = vst [vmem:[#allocation2 + $0x120] sm:$0xff] %v607
        %618 = vst [vmem:[#allocation2 + $0x128] sm:$0xff] %v608
        %619 = vst.msk [vmem:[#allocation2 + $0x130] sm:$0xff] %vm438, %v599
        %620 = vst [vmem:[#allocation2 + $0x138] sm:$0xff] %v609
        %621 = vst [vmem:[#allocation2 + $0x140] sm:$0xff] %v610
        %622 = vst.msk [vmem:[#allocation2 + $0x148] sm:$0xff] %vm438, %v605
        %623 = vrot.lane.b32.xlu0 %v430, 91
        %v624 = vpop.permute.xlu0 %623
        %625 = vrot.lane.b32.xlu0 %v431, 91
        %v626 = vpop.permute.xlu0 %625
        %627 = vrot.lane.b32.xlu0 %v432, 91
        %v628 = vpop.permute.xlu0 %627
        %629 = vrot.lane.b32.xlu0 %v433, 91
        %v630 = vpop.permute.xlu0 %629
        %631 = vrot.lane.b32.xlu0 %v434, 91
        %v632 = vpop.permute.xlu0 %631
        %633 = vrot.lane.b32.xlu0 %v435, 91
        %v634 = vpop.permute.xlu0 %633
        %vm635 = vcmask 744448
        %v636 = vsel %vm635, %v624, %v626
        %v637 = vsel %vm635, %v626, %v628
        %v638 = vsel %vm635, %v630, %v632
        %v639 = vsel %vm635, %v632, %v634
        %646 = vst [vmem:[#allocation2 + $0x150] sm:$0xff] %v636
        %647 = vst [vmem:[#allocation2 + $0x158] sm:$0xff] %v637
        %648 = vst.msk [vmem:[#allocation2 + $0x160] sm:$0xff] %vm438, %v628
        %649 = vst [vmem:[#allocation2 + $0x168] sm:$0xff] %v638
        %650 = vst [vmem:[#allocation2 + $0x170] sm:$0xff] %v639
        %651 = vst.msk [vmem:[#allocation2 + $0x178] sm:$0xff] %vm438, %v634
        %652 = vrot.lane.b32.xlu0 %v430, 90
        %v653 = vpop.permute.xlu0 %652
        %654 = vrot.lane.b32.xlu0 %v431, 90
        %v655 = vpop.permute.xlu0 %654
        %656 = vrot.lane.b32.xlu0 %v432, 90
        %v657 = vpop.permute.xlu0 %656
        %658 = vrot.lane.b32.xlu0 %v433, 90
        %v659 = vpop.permute.xlu0 %658
        %660 = vrot.lane.b32.xlu0 %v434, 90
        %v661 = vpop.permute.xlu0 %660
        %662 = vrot.lane.b32.xlu0 %v435, 90
        %v663 = vpop.permute.xlu0 %662
        %vm664 = vcmask 736256
        %v665 = vsel %vm664, %v653, %v655
        %v666 = vsel %vm664, %v655, %v657
        %v667 = vsel %vm664, %v659, %v661
        %v668 = vsel %vm664, %v661, %v663
        %675 = vst [vmem:[#allocation2 + $0x180] sm:$0xff] %v665
        %676 = vst [vmem:[#allocation2 + $0x188] sm:$0xff] %v666
        %677 = vst.msk [vmem:[#allocation2 + $0x190] sm:$0xff] %vm438, %v657
        %678 = vst [vmem:[#allocation2 + $0x198] sm:$0xff] %v667
        %679 = vst [vmem:[#allocation2 + $0x1a0] sm:$0xff] %v668
        %680 = vst.msk [vmem:[#allocation2 + $0x1a8] sm:$0xff] %vm438, %v663
        %v681 = vld [vmem:[%s3] sm:$0xff]
        %v682 = vld [vmem:[%s3 + $0x8] sm:$0xff]
        %v683 = vld [vmem:[%s3 + $0x10] sm:$0xff]
        %v684 = vld [vmem:[%s3 + $0x18] sm:$0xff]
        %v685 = vld [vmem:[%s3 + $0x20] sm:$0xff]
        %v686 = vld [vmem:[%s3 + $0x28] sm:$0xff]
        %v687 = vld [vmem:[%s3 + $0x30] sm:$0xff]
        %v688 = vld [vmem:[%s3 + $0x38] sm:$0xff]
        %v689 = vld [vmem:[#allocation2] sm:$0xff]
        %v690 = vld [vmem:[#allocation2 + $0x8] sm:$0xff]
        %v691 = vld [vmem:[#allocation2 + $0x10] sm:$0xff]
        %v692 = vld [vmem:[#allocation2 + $0x18] sm:$0xff]
        %v693 = vld [vmem:[#allocation2 + $0x20] sm:$0xff]
        %v694 = vld [vmem:[#allocation2 + $0x28] sm:$0xff]
        %v695 = vld [vmem:[#allocation2 + $0x30] sm:$0xff]
        %v696 = vld [vmem:[#allocation2 + $0x38] sm:$0xff]
        %v697 = vld [vmem:[#allocation2 + $0x40] sm:$0xff]
        %v698 = vld [vmem:[#allocation2 + $0x48] sm:$0xff]
        %v699 = vld [vmem:[#allocation2 + $0x50] sm:$0xff]
        %v700 = vld [vmem:[#allocation2 + $0x58] sm:$0xff]
        %v701 = vld [vmem:[#allocation2 + $0x60] sm:$0xff]
        %v702 = vld [vmem:[#allocation2 + $0x68] sm:$0xff]
        %v703 = vld [vmem:[#allocation2 + $0x70] sm:$0xff]
        %v704 = vld [vmem:[#allocation2 + $0x78] sm:$0xff]
        %v705 = vld [vmem:[#allocation2 + $0x80] sm:$0xff]
        %v706 = vld [vmem:[#allocation2 + $0x88] sm:$0xff]
        %v707 = vld [vmem:[#allocation2 + $0x90] sm:$0xff]
        %v708 = vld [vmem:[#allocation2 + $0x98] sm:$0xff]
        %v709 = vld [vmem:[#allocation2 + $0xa0] sm:$0xff]
        %v710 = vld [vmem:[#allocation2 + $0xa8] sm:$0xff]
        %v711 = vld [vmem:[#allocation2 + $0xb0] sm:$0xff]
        %v712 = vld [vmem:[#allocation2 + $0xb8] sm:$0xff]
        %v713 = vld [vmem:[#allocation2 + $0xc0] sm:$0xff]
        %v714 = vld [vmem:[#allocation2 + $0xc8] sm:$0xff]
        %v715 = vld [vmem:[#allocation2 + $0xd0] sm:$0xff]
        %v716 = vld [vmem:[#allocation2 + $0xd8] sm:$0xff]
        %v717 = vld [vmem:[#allocation2 + $0xe0] sm:$0xff]
        %v718 = vld [vmem:[#allocation2 + $0xe8] sm:$0xff]
        %v719 = vld [vmem:[#allocation2 + $0xf0] sm:$0xff]
        %v720 = vld [vmem:[#allocation2 + $0xf8] sm:$0xff]
        %v721 = vld [vmem:[#allocation2 + $0x100] sm:$0xff]
        %v722 = vld [vmem:[#allocation2 + $0x108] sm:$0xff]
        %v723 = vld [vmem:[#allocation2 + $0x110] sm:$0xff]
        %v724 = vld [vmem:[#allocation2 + $0x118] sm:$0xff]
        %v725 = vld [vmem:[#allocation2 + $0x120] sm:$0xff]
        %v726 = vld [vmem:[#allocation2 + $0x128] sm:$0xff]
        %v727 = vld [vmem:[#allocation2 + $0x130] sm:$0xff]
        %v728 = vld [vmem:[#allocation2 + $0x138] sm:$0xff]
        %v729 = vld [vmem:[#allocation2 + $0x140] sm:$0xff]
        %v730 = vld [vmem:[#allocation2 + $0x148] sm:$0xff]
        %v731 = vld [vmem:[#allocation2 + $0x150] sm:$0xff]
        %v732 = vld [vmem:[#allocation2 + $0x158] sm:$0xff]
        %v733 = vld [vmem:[#allocation2 + $0x160] sm:$0xff]
        %v734 = vld [vmem:[#allocation2 + $0x168] sm:$0xff]
        %v735 = vld [vmem:[#allocation2 + $0x170] sm:$0xff]
        %v736 = vld [vmem:[#allocation2 + $0x178] sm:$0xff]
        %v737 = vld [vmem:[#allocation2 + $0x180] sm:$0xff]
        %v738 = vld [vmem:[#allocation2 + $0x188] sm:$0xff]
        %v739 = vld [vmem:[#allocation2 + $0x190] sm:$0xff]
        %v740 = vld [vmem:[#allocation2 + $0x198] sm:$0xff]
        %v741 = vld [vmem:[#allocation2 + $0x1a0] sm:$0xff]
        %v742 = vld [vmem:[#allocation2 + $0x1a8] sm:$0xff]
        %v743 = vld [vmem:[%s4] sm:$0xff]
        %v744 = vld [vmem:[%s4 + $0x8] sm:$0xff]
        %v745 = vld [vmem:[%s4 + $0x10] sm:$0xff]
        %v746 = vld [vmem:[%s4 + $0x18] sm:$0xff]
        %748 = vset.pattern.permute.xlu0 0
        %749 = vperm.xlu0 %748, %v743
        %v750 = vpop.permute.xlu0 %749
        %753 = vset.pattern.permute.xlu0 0
        %754 = vperm.xlu0 %753, %v744
        %v755 = vpop.permute.xlu0 %754
        %758 = vset.pattern.permute.xlu0 0
        %759 = vperm.xlu0 %758, %v745
        %v760 = vpop.permute.xlu0 %759
        %763 = vset.pattern.permute.xlu0 0
        %764 = vperm.xlu0 %763, %v746
        %v765 = vpop.permute.xlu0 %764
        %vm767 = vcmask 130048
        %v769 = vsel %vm767, %v682, 0
        %v772 = vsel %vm767, %v684, 0
        %v775 = vsel %vm767, %v686, 0
        %v778 = vsel %vm767, %v688, 0
        %780 = vmatpush.msra.mxu0 %v734
        %781 = vmatpush.msra.mxu0 %v731
        %782 = vmatpush.msra.mxu0 %v728
        %783 = vmatpush.msra.mxu0 %v725
        %784 = vmatpush.msra.mxu0 %v722
        %785 = vmatpush.msra.mxu0 %v719
        %786 = vmatpush.msra.mxu0 %v716
        %787 = vmatpush.msra.mxu0 %v713
        %788 = vmatpush.msra.mxu0 %v710
        %789 = vmatpush.msra.mxu0 %v707
        %790 = vmatpush.msra.mxu0 %v704
        %791 = vmatpush.msra.mxu0 %v701
        %792 = vmatpush.msra.mxu0 %v698
        %793 = vmatpush.msra.mxu0 %v695
        %794 = vmatpush.msra.mxu0 %v692
        %795 = vmatpush.msra.mxu0 %v689
        %796 = vmatmul.f32.gmra.mxu0 %v681
        %v797 = vpop.f32.mrf.mxu0
        %v798 = vadd.f32 %v750, %v797
        %799 = vmatmul.f32.gmra.mxu0 %v683
        %v800 = vpop.f32.mrf.mxu0
        %v801 = vadd.f32 %v755, %v800
        %802 = vmatmul.f32.gmra.mxu0 %v685
        %v803 = vpop.f32.mrf.mxu0
        %v804 = vadd.f32 %v760, %v803
        %805 = vmatmul.f32.gmra.mxu0 %v687
        %v806 = vpop.f32.mrf.mxu0
        %v807 = vadd.f32 %v765, %v806
        %808 = vdwg.mxu0
        %809 = vmatpush.msra.mxu0 0.0
        %810 = vmatpush.msra.mxu0 0.0
        %811 = vmatpush.msra.mxu0 0.0
        %812 = vmatpush.msra.mxu0 0.0
        %813 = vmatpush.msra.mxu0 0.0
        %814 = vmatpush.msra.mxu0 0.0
        %815 = vmatpush.msra.mxu0 0.0
        %816 = vmatpush.msra.mxu0 0.0
        %817 = vmatpush.msra.mxu0 0.0
        %818 = vmatpush.msra.mxu0 0.0
        %819 = vmatpush.msra.mxu0 0.0
        %820 = vmatpush.msra.mxu0 0.0
        %821 = vmatpush.msra.mxu0 0.0
        %822 = vmatpush.msra.mxu0 0.0
        %823 = vmatpush.msra.mxu0 %v740
        %824 = vmatpush.msra.mxu0 %v737
        %825 = vmatmul.f32.gmra.mxu0 %v769
        %v826 = vpop.f32.mrf.mxu0
        %v827 = vadd.f32 %v798, %v826
        %828 = vmatmul.f32.gmra.mxu0 %v772
        %v829 = vpop.f32.mrf.mxu0
        %v830 = vadd.f32 %v801, %v829
        %831 = vmatmul.f32.gmra.mxu0 %v775
        %v832 = vpop.f32.mrf.mxu0
        %v833 = vadd.f32 %v804, %v832
        %834 = vmatmul.f32.gmra.mxu0 %v778
        %v835 = vpop.f32.mrf.mxu0
        %v836 = vadd.f32 %v807, %v835
        %837 = vdwg.mxu0
        %838 = vmatpush.msra.mxu0 %v735
        %839 = vmatpush.msra.mxu0 %v732
        %840 = vmatpush.msra.mxu0 %v729
        %841 = vmatpush.msra.mxu0 %v726
        %842 = vmatpush.msra.mxu0 %v723
        %843 = vmatpush.msra.mxu0 %v720
        %844 = vmatpush.msra.mxu0 %v717
        %845 = vmatpush.msra.mxu0 %v714
        %846 = vmatpush.msra.mxu0 %v711
        %847 = vmatpush.msra.mxu0 %v708
        %848 = vmatpush.msra.mxu0 %v705
        %849 = vmatpush.msra.mxu0 %v702
        %850 = vmatpush.msra.mxu0 %v699
        %851 = vmatpush.msra.mxu0 %v696
        %852 = vmatpush.msra.mxu0 %v693
        %853 = vmatpush.msra.mxu0 %v690
        %854 = vmatmul.f32.gmra.mxu0 %v681
        %v855 = vpop.f32.mrf.mxu0
        %v856 = vadd.f32 %v750, %v855
        %857 = vmatmul.f32.gmra.mxu0 %v683
        %v858 = vpop.f32.mrf.mxu0
        %v859 = vadd.f32 %v755, %v858
        %860 = vmatmul.f32.gmra.mxu0 %v685
        %v861 = vpop.f32.mrf.mxu0
        %v862 = vadd.f32 %v760, %v861
        %863 = vmatmul.f32.gmra.mxu0 %v687
        %v864 = vpop.f32.mrf.mxu0
        %v865 = vadd.f32 %v765, %v864
        %866 = vdwg.mxu0
        %867 = vmatpush.msra.mxu0 0.0
        %868 = vmatpush.msra.mxu0 0.0
        %869 = vmatpush.msra.mxu0 0.0
        %870 = vmatpush.msra.mxu0 0.0
        %871 = vmatpush.msra.mxu0 0.0
        %872 = vmatpush.msra.mxu0 0.0
        %873 = vmatpush.msra.mxu0 0.0
        %874 = vmatpush.msra.mxu0 0.0
        %875 = vmatpush.msra.mxu0 0.0
        %876 = vmatpush.msra.mxu0 0.0
        %877 = vmatpush.msra.mxu0 0.0
        %878 = vmatpush.msra.mxu0 0.0
        %879 = vmatpush.msra.mxu0 0.0
        %880 = vmatpush.msra.mxu0 0.0
        %881 = vmatpush.msra.mxu0 %v741
        %882 = vmatpush.msra.mxu0 %v738
        %883 = vmatmul.f32.gmra.mxu0 %v769
        %v884 = vpop.f32.mrf.mxu0
        %v885 = vadd.f32 %v856, %v884
        %886 = vmatmul.f32.gmra.mxu0 %v772
        %v887 = vpop.f32.mrf.mxu0
        %v888 = vadd.f32 %v859, %v887
        %889 = vmatmul.f32.gmra.mxu0 %v775
        %v890 = vpop.f32.mrf.mxu0
        %v891 = vadd.f32 %v862, %v890
        %892 = vmatmul.f32.gmra.mxu0 %v778
        %v893 = vpop.f32.mrf.mxu0
        %v894 = vadd.f32 %v865, %v893
        %895 = vdwg.mxu0
        %896 = vmatpush.msra.mxu0 %v736
        %897 = vmatpush.msra.mxu0 %v733
        %898 = vmatpush.msra.mxu0 %v730
        %899 = vmatpush.msra.mxu0 %v727
        %900 = vmatpush.msra.mxu0 %v724
        %901 = vmatpush.msra.mxu0 %v721
        %902 = vmatpush.msra.mxu0 %v718
        %903 = vmatpush.msra.mxu0 %v715
        %904 = vmatpush.msra.mxu0 %v712
        %905 = vmatpush.msra.mxu0 %v709
        %906 = vmatpush.msra.mxu0 %v706
        %907 = vmatpush.msra.mxu0 %v703
        %908 = vmatpush.msra.mxu0 %v700
        %909 = vmatpush.msra.mxu0 %v697
        %910 = vmatpush.msra.mxu0 %v694
        %911 = vmatpush.msra.mxu0 %v691
        %912 = vmatmul.f32.gmra.mxu0 %v681
        %v913 = vpop.f32.mrf.mxu0
        %v914 = vadd.f32 %v750, %v913
        %915 = vmatmul.f32.gmra.mxu0 %v683
        %v916 = vpop.f32.mrf.mxu0
        %v917 = vadd.f32 %v755, %v916
        %918 = vmatmul.f32.gmra.mxu0 %v685
        %v919 = vpop.f32.mrf.mxu0
        %v920 = vadd.f32 %v760, %v919
        %921 = vmatmul.f32.gmra.mxu0 %v687
        %v922 = vpop.f32.mrf.mxu0
        %v923 = vadd.f32 %v765, %v922
        %924 = vdwg.mxu0
        %925 = vmatpush.msra.mxu0 0.0
        %926 = vmatpush.msra.mxu0 0.0
        %927 = vmatpush.msra.mxu0 0.0
        %928 = vmatpush.msra.mxu0 0.0
        %929 = vmatpush.msra.mxu0 0.0
        %930 = vmatpush.msra.mxu0 0.0
        %931 = vmatpush.msra.mxu0 0.0
        %932 = vmatpush.msra.mxu0 0.0
        %933 = vmatpush.msra.mxu0 0.0
        %934 = vmatpush.msra.mxu0 0.0
        %935 = vmatpush.msra.mxu0 0.0
        %936 = vmatpush.msra.mxu0 0.0
        %937 = vmatpush.msra.mxu0 0.0
        %938 = vmatpush.msra.mxu0 0.0
        %939 = vmatpush.msra.mxu0 %v742
        %940 = vmatpush.msra.mxu0 %v739
        %941 = vmatmul.f32.gmra.mxu0 %v769
        %v942 = vpop.f32.mrf.mxu0
        %v943 = vadd.f32 %v914, %v942
        %944 = vmatmul.f32.gmra.mxu0 %v772
        %v945 = vpop.f32.mrf.mxu0
        %v946 = vadd.f32 %v917, %v945
        %947 = vmatmul.f32.gmra.mxu0 %v775
        %v948 = vpop.f32.mrf.mxu0
        %v949 = vadd.f32 %v920, %v948
        %950 = vmatmul.f32.gmra.mxu0 %v778
        %v951 = vpop.f32.mrf.mxu0
        %v952 = vadd.f32 %v923, %v951
        %953 = vdwg.mxu0
        %v954 = vld [vmem:[%s5] sm:$0x7]
        %v956 = vperm.slane %v954, 0
        %v957 = vperm.slane %v954, 1
        %v958 = vperm.slane %v954, 2
        %959 = vrot.lane.b32.xlu0 %v956, 109
        %v960 = vpop.permute.xlu0 %959
        %961 = vrot.lane.b32.xlu0 %v957, 109
        %v962 = vpop.permute.xlu0 %961
        %963 = vrot.lane.b32.xlu0 %v958, 109
        %v964 = vpop.permute.xlu0 %963
        %v965 = vsel %vm548, %v960, %v962
        %v966 = vsel %vm548, %v962, %v964
        %v970 = vmul.f32 %v827, %v965
        %v971 = vmul.f32 %v885, %v966
        %v972 = vmul.f32 %v943, %v964
        %v973 = vmul.f32 %v830, %v965
        %v974 = vmul.f32 %v888, %v966
        %v975 = vmul.f32 %v946, %v964
        %v976 = vmul.f32 %v833, %v965
        %v977 = vmul.f32 %v891, %v966
        %v978 = vmul.f32 %v949, %v964
        %v979 = vmul.f32 %v836, %v965
        %v980 = vmul.f32 %v894, %v966
        %v981 = vmul.f32 %v952, %v964
        %v982 = vadd.f32 %v970, %v971
        %v983 = vsel %vm438, %v972, 0.0
        %v984 = vadd.f32 %v982, %v983
        %985 = vadd.xlane.f32.xlu0 %v984
        %v986 = vpop.xlane.xlu0 %985
        %v987 = vadd.f32 %v973, %v974
        %v988 = vsel %vm438, %v975, 0.0
        %v989 = vadd.f32 %v987, %v988
        %990 = vadd.xlane.f32.xlu0 %v989
        %v991 = vpop.xlane.xlu0 %990
        %v992 = vadd.f32 %v976, %v977
        %v993 = vsel %vm438, %v978, 0.0
        %v994 = vadd.f32 %v992, %v993
        %995 = vadd.xlane.f32.xlu0 %v994
        %v996 = vpop.xlane.xlu0 %995
        %v997 = vadd.f32 %v979, %v980
        %v998 = vsel %vm438, %v981, 0.0
        %v999 = vadd.f32 %v997, %v998
        %1000 = vadd.xlane.f32.xlu0 %v999
        %v1001 = vpop.xlane.xlu0 %1000
        %vm1002 = vcmask 7168
        %1003 = vst.msk [vmem:[%s351] sm:$0xff] %vm1002, %v986
        %1004 = vst.msk [vmem:[%s351 + $0x8] sm:$0xff] %vm1002, %v991
        %1005 = vst.msk [vmem:[%s351 + $0x10] sm:$0xff] %vm1002, %v996
        %1006 = vst.msk [vmem:[%s351 + $0x18] sm:$0xff] %vm1002, %v1001
        %v1007 = vmul.f32 %v970, %v970
        %v1008 = vmul.f32 %v971, %v971
        %v1009 = vmul.f32 %v972, %v972
        %v1010 = vmul.f32 %v973, %v973
        %v1011 = vmul.f32 %v974, %v974
        %v1012 = vmul.f32 %v975, %v975
        %v1013 = vmul.f32 %v976, %v976
        %v1014 = vmul.f32 %v977, %v977
        %v1015 = vmul.f32 %v978, %v978
        %v1016 = vmul.f32 %v979, %v979
        %v1017 = vmul.f32 %v980, %v980
        %v1018 = vmul.f32 %v981, %v981
        %v1019 = vadd.f32 %v1007, %v1008
        %v1020 = vsel %vm438, %v1009, 0.0
        %v1021 = vadd.f32 %v1019, %v1020
        %1022 = vadd.xlane.f32.xlu0 %v1021
        %v1023 = vpop.xlane.xlu0 %1022
        %v1024 = vadd.f32 %v1010, %v1011
        %v1025 = vsel %vm438, %v1012, 0.0
        %v1026 = vadd.f32 %v1024, %v1025
        %1027 = vadd.xlane.f32.xlu0 %v1026
        %v1028 = vpop.xlane.xlu0 %1027
        %v1029 = vadd.f32 %v1013, %v1014
        %v1030 = vsel %vm438, %v1015, 0.0
        %v1031 = vadd.f32 %v1029, %v1030
        %1032 = vadd.xlane.f32.xlu0 %v1031
        %v1033 = vpop.xlane.xlu0 %1032
        %v1034 = vadd.f32 %v1016, %v1017
        %v1035 = vsel %vm438, %v1018, 0.0
        %v1036 = vadd.f32 %v1034, %v1035
        %1037 = vadd.xlane.f32.xlu0 %v1036
        %v1038 = vpop.xlane.xlu0 %1037
        %1039 = vst.msk [vmem:[%s358] sm:$0xff] %vm1002, %v1023
        %1040 = vst.msk [vmem:[%s358 + $0x8] sm:$0xff] %vm1002, %v1028
        %1041 = vst.msk [vmem:[%s358 + $0x10] sm:$0xff] %vm1002, %v1033
        %1042 = vst.msk [vmem:[%s358 + $0x18] sm:$0xff] %vm1002, %v1038
        %v1043 = vld [vmem:[%s368] sm:$0xff]
        %v1044 = vld [vmem:[%s368 + $0x8] sm:$0xff]
        %v1045 = vld [vmem:[%s368 + $0x10] sm:$0xff]
        %v1046 = vld [vmem:[%s368 + $0x18] sm:$0xff]
        %v1047 = vld [vmem:[%s368 + $0x20] sm:$0xff]
        %v1048 = vld [vmem:[%s368 + $0x28] sm:$0xff]
        %v1049 = vld [vmem:[%s368 + $0x30] sm:$0xff]
        %v1050 = vld [vmem:[%s368 + $0x38] sm:$0xff]
        %v1051 = vld [vmem:[%s368 + $0x40] sm:$0xff]
        %v1052 = vld [vmem:[%s368 + $0x48] sm:$0xff]
        %v1053 = vld [vmem:[%s368 + $0x50] sm:$0xff]
        %v1054 = vld [vmem:[%s368 + $0x58] sm:$0xff]
        %v1055 = vadd.f32 %v827, %v1043
        %v1056 = vadd.f32 %v885, %v1044
        %v1057 = vadd.f32 %v943, %v1045
        %v1058 = vadd.f32 %v830, %v1046
        %v1059 = vadd.f32 %v888, %v1047
        %v1060 = vadd.f32 %v946, %v1048
        %v1061 = vadd.f32 %v833, %v1049
        %v1062 = vadd.f32 %v891, %v1050
        %v1063 = vadd.f32 %v949, %v1051
        %v1064 = vadd.f32 %v836, %v1052
        %v1065 = vadd.f32 %v894, %v1053
        %v1066 = vadd.f32 %v952, %v1054
        %1067 = vst [vmem:[%s373] sm:$0xff] %v1055
        %1068 = vst [vmem:[%s373 + $0x8] sm:$0xff] %v1056
        %1069 = vst.msk [vmem:[%s373 + $0x10] sm:$0xff] %vm438, %v1057
        %1070 = vst [vmem:[%s373 + $0x18] sm:$0xff] %v1058
        %1071 = vst [vmem:[%s373 + $0x20] sm:$0xff] %v1059
        %1072 = vst.msk [vmem:[%s373 + $0x28] sm:$0xff] %vm438, %v1060
        %1073 = vst [vmem:[%s373 + $0x30] sm:$0xff] %v1061
        %1074 = vst [vmem:[%s373 + $0x38] sm:$0xff] %v1062
        %1075 = vst.msk [vmem:[%s373 + $0x40] sm:$0xff] %vm438, %v1063
        %1076 = vst [vmem:[%s373 + $0x48] sm:$0xff] %v1064
        %1077 = vst [vmem:[%s373 + $0x50] sm:$0xff] %v1065
        %1078 = vst.msk [vmem:[%s373 + $0x58] sm:$0xff] %vm438, %v1066
        %p1079 = scmp.lt.s32.totalorder %s27, 1
        %s1080 = scalar_select %p1079, %s27, 1
        %s1081 = smul.addr %s1080, 12
        %s1082 = smul.addr %s1081, 8
        %s1083 = scalar_lea.vmem %s7, %s1082
        %s1084 = sand.u32 %s218, 1
        %s1085 = scalar_lea.sflag [#allocation4], %s1084
        %s1086 = sand.u32 %s218, 1
        %s1087 = smul.addr %s1086, 32
        %s1088 = scalar_lea.vmem [#allocation3], %s1087
        %s1089 = sand.u32 %s244, 1
        %s1090 = scalar_lea.sflag [#allocation6], %s1089
        %s1091 = sand.u32 %s244, 1
        %s1092 = smul.addr %s1091, 32
        %s1093 = scalar_lea.vmem [#allocation5], %s1092
        // Predicated region
        $region49: #{resblock1_forward.7} parent=47 // pred_check
          %p1094 = pneg %p202
        $region50: #{resblock1_forward.7} parent=47 // pred_check_branch
          %1096 = sbr.rel (%p1094) target = $region52
        $region51: #{resblock1_forward.7} parent=47 // pred_region
          _
        $region52: #{resblock1_forward.7} parent=47 // pred_fallthru
          _
        // Predicated region
        $region53: #{resblock1_forward.7} parent=47 // pred_check
          %p1097 = pneg %p228
        $region54: #{resblock1_forward.7} parent=47 // pred_check_branch
          %1099 = sbr.rel (%p1097) target = $region56
        $region55: #{resblock1_forward.7} parent=47 // pred_region
          %1101 = vsyncadd %s1085, 0
          %s1102 = smul.addr %s27, 4
          %s1103 = smul.addr %s1102, 8
          %s1104 = scalar_lea.hbm %s8, %s1103
          %s1105 = sshll.u32 %s1088, 4
          %s1106 = int_to_ptr.vmem [resolvable:$true] %s1105
          %s1107 = sshll.u32 %s1104, 4
          %s1108 = int_to_ptr.hbm [resolvable:$true] %s1107
          %1113 = dma.vmem_to_hbm [thread:$0]  %s1106, 512, %s1108, %s1085, 128, 128, 8
        $region56: #{resblock1_forward.7} parent=47 // pred_fallthru
          _
        // Predicated region
        $region57: #{resblock1_forward.7} parent=47 // pred_check
          %p1114 = pneg %p254
        $region58: #{resblock1_forward.7} parent=47 // pred_check_branch
          %1116 = sbr.rel (%p1114) target = $region60
        $region59: #{resblock1_forward.7} parent=47 // pred_region
          %1118 = vsyncadd %s1090, 0
          %s1119 = smul.addr %s27, 4
          %s1120 = smul.addr %s1119, 8
          %s1121 = scalar_lea.hbm %s9, %s1120
          %s1122 = sshll.u32 %s1093, 4
          %s1123 = int_to_ptr.vmem [resolvable:$true] %s1122
          %s1124 = sshll.u32 %s1121, 4
          %s1125 = int_to_ptr.hbm [resolvable:$true] %s1124
          %1130 = dma.vmem_to_hbm [thread:$0]  %s1123, 512, %s1125, %s1090, 128, 128, 8
        $region60: #{resblock1_forward.7} parent=47 // pred_fallthru
          _
      $region48: #{resblock1_forward.7} parent=5 // pred_fallthru
        _
      %p1131 = scmp.le.s32.totalorder 2, %s22
      // Predicated region
      $region61: #{resblock1_forward.7} parent=5 // pred_check
        %p1132 = pneg %p1131
      $region62: #{resblock1_forward.7} parent=5 // pred_check_branch
        %1134 = sbr.rel (%p1132) target = $region64
      $region63: #{resblock1_forward.7} parent=5 // pred_region
        %s1135 = ssub.s32 %s22, 2
        // Predicated region
        $region65: #{resblock1_forward.7} parent=63 // pred_check
          %p1136 = pneg %p208
        $region66: #{resblock1_forward.7} parent=63 // pred_check_branch
          %1138 = sbr.rel (%p1136) target = $region68
        $region67: #{resblock1_forward.7} parent=63 // pred_region
          %p1139 = scmp.lt.s32.totalorder %s28, 1
          %s1140 = scalar_select %p1139, %s28, 1
          %s1141 = smul.addr %s1140, 12
          %s1142 = smul.addr %s1141, 8
          %s1143 = scalar_lea.vmem %s7, %s1142
        $region68: #{resblock1_forward.7} parent=63 // pred_fallthru
          _
        // Predicated region
        $region69: #{resblock1_forward.7} parent=63 // pred_check
          %p1144 = pneg %p234
        $region70: #{resblock1_forward.7} parent=63 // pred_check_branch
          %1146 = sbr.rel (%p1144) target = $region72
        $region71: #{resblock1_forward.7} parent=63 // pred_region
          %s1147 = sand.u32 %s219, 1
          %s1148 = scalar_lea.sflag [#allocation4], %s1147
          %s1149 = sand.u32 %s219, 1
          %s1150 = smul.addr %s1149, 32
          %s1151 = scalar_lea.vmem [#allocation3], %s1150
          %1153 = dma.done %s1148, 512
        $region72: #{resblock1_forward.7} parent=63 // pred_fallthru
          _
        // Predicated region
        $region73: #{resblock1_forward.7} parent=63 // pred_check
          %p1154 = pneg %p260
        $region74: #{resblock1_forward.7} parent=63 // pred_check_branch
          %1156 = sbr.rel (%p1154) target = $region76
        $region75: #{resblock1_forward.7} parent=63 // pred_region
          %s1157 = sand.u32 %s245, 1
          %s1158 = scalar_lea.sflag [#allocation6], %s1157
          %s1159 = sand.u32 %s245, 1
          %s1160 = smul.addr %s1159, 32
          %s1161 = scalar_lea.vmem [#allocation5], %s1160
          %1163 = dma.done %s1158, 512
        $region76: #{resblock1_forward.7} parent=63 // pred_fallthru
          _
      $region64: #{resblock1_forward.7} parent=5 // pred_fallthru
        _
    $region6: #{resblock1_forward.7} parent=1 // loop_footer
      %s26 = sadd.s32 1, %s22
    $region7: #{resblock1_forward.7} parent=1 // loop_footer_branch
      %21 = sbr.rel target = $region3
    $region8: #{resblock1_forward.7} parent=1 // loop_exit
      _
    %1164 = vsyncpa [#allocation4], 1
    %s1165 = scalar_lea.sflag [#allocation4], 1
    %1166 = vsyncpa %s1165, 1
    %1167 = vsyncpa [#allocation6], 1
    %s1168 = scalar_lea.sflag [#allocation6], 1
    %1169 = vsyncpa %s1168, 1

// kernel: resblock1_forward.6
$region0: #{resblock1_forward.6}
  #allocation0 [shape = 'u32[]', space=smem, size = 0x4, offset = 0x4, fixed_abs, tag = 'smem constant byte address 0x4 - core index']
  #allocation1 [shape = 'u32[72,128]{1,0:T(1,128)}', space=vmem, size = 0x9000, scoped, tag = 'internal scratch']
  #allocation2 [shape = 'f32[288,288]{1,0:T(8,128)}', space=vmem, size = 0x6c000, scoped, tag = 'scratch operand']
  %s0 = inlined_call_operand.vmem [shape: f32[2,32,384], index: 0, kind: input, shape index: {}]
  %s1 = inlined_call_operand.vmem [shape: f32[32,1], index: 1, kind: input, shape index: {}]
  %s2 = inlined_call_operand.vmem [shape: f32[32,1], index: 2, kind: input, shape index: {}]
  %s3 = inlined_call_operand.vmem [shape: f32[32,288], index: 3, kind: input, shape index: {}]
  %s4 = inlined_call_operand.vmem [shape: f32[32,1], index: 4, kind: input, shape index: {}]
  %s5 = inlined_call_operand.vmem [shape: f32[1,384], index: 5, kind: input, shape index: {}]
  %s6 = inlined_call_operand.vmem [shape: f32[2,32,288], index: 6, kind: output, shape index: {0}]
  %s7 = inlined_call_operand.hbm [shape: f32[2,32,1], index: 7, kind: output, shape index: {1}]
  %s8 = inlined_call_operand.hbm [shape: f32[2,32,1], index: 8, kind: output, shape index: {2}]
  %9 = xla_tuple %s6, %s7, %s8
  %s10 = sld [smem:[#allocation0]]
  $region73: #{resblock1_forward.6} parent=0
    _
  %s12 = ssub.s32 1, %s10
  %s13 = scalar_select 0, %s12, %s10
  $region1: #{resblock1_forward.6} parent=0
    #allocation3 [shape = 'u8[32768]{0}', space=vmem, size = 0x8000, scoped, tag = 'output window, operand 1']
    #allocation4 [shape = 's32[2]{0}', space=sflag, size = 0x8, scoped, tag = 'scoped memory for resblock1_forward.6']
    #allocation5 [shape = 'u8[32768]{0}', space=vmem, size = 0x8000, scoped, tag = 'output window, operand 2']
    #allocation6 [shape = 's32[2]{0}', space=sflag, size = 0x8, scoped, tag = 'scoped memory for resblock1_forward.6']
    %14 = vsyncpa [#allocation4], 0
    %s15 = scalar_lea.sflag [#allocation4], 1
    %16 = vsyncpa %s15, 0
    %17 = vsyncpa [#allocation6], 0
    %s18 = scalar_lea.sflag [#allocation6], 1
    %19 = vsyncpa %s18, 0
    loop: start=0, step=1, limit=4
    $region2: #{resblock1_forward.6} parent=1 // loop_pre_header
      _
    $region3: #{resblock1_forward.6} parent=1 // loop_header
      %s21 = sphi 0, %s25
      %p22 = scmp.ge.s32.totalorder %s21, 4
      %s31 = sphi 0, %s33
      %s34 = sphi 0, %s31
      %s35 = sphi 0, %s34
      %s51 = sphi 0, %s35
      %s55 = sphi 0, %s55
      %s57 = sphi 0, %s55
      %s58 = sphi 0, %s57
      %s72 = sphi 0, %s58
      %s76 = sphi 0, %s76
      %s78 = sphi 0, %s76
      %s79 = sphi 0, %s78
      %s93 = sphi 0, %s79
      %s97 = sphi 0, %s97
      %s99 = sphi 0, %s97
      %s100 = sphi 0, %s99
      %s114 = sphi 0, %s100
      %s118 = sphi 0, %s118
      %s120 = sphi 0, %s118
      %s121 = sphi 0, %s120
      %s135 = sphi 0, %s121
      %s139 = sphi 0, %s139
      %s141 = sphi 0, %s139
      %s142 = sphi 0, %s141
      %s156 = sphi 0, %s142
      %s162 = sphi 0, %s164
      %s165 = sphi 0, %s162
      %s166 = sphi 0, %s165
      %s182 = sphi 0, %s166
      %s188 = sphi 0, %s190
      %s191 = sphi 0, %s188
      %s192 = sphi 0, %s191
      %s208 = sphi 0, %s192
      %s214 = sphi 0, %s216
      %s217 = sphi 0, %s214
      %s218 = sphi 0, %s217
      %s234 = sphi 0, %s218
    $region4: #{resblock1_forward.6} parent=1 // loop_header_branch
      %24 = sbr.rel (%p22) target = $region8
    $region5: #{resblock1_forward.6} parent=1 // loop_body
      %s26 = ssub.s32 %s21, 1
      %s27 = ssub.s32 %s21, 2
      %s28 = sadd.s32 %s21, 1
      %s29 = ssub.s32 %s21, %s28
      %p30 = scmp.eq.s32.totalorder %s29, 0
      %s32 = sadd.s32 %s31, 1
      %s33 = scalar_select %p30, %s31, %s32
      %p36 = pneg %p30
      %p37 = scmp.eq.s32.totalorder %s21, 1
      %p38 = por %p36, %p37
      %p39 = scmp.ne.s32.totalorder %s31, %s34
      %p40 = scmp.eq.s32.totalorder %s21, 0
      %p41 = por %p39, %p40
      %p42 = scmp.ne.s32.totalorder %s31, %s34
      %p43 = scmp.eq.s32.totalorder %s26, 1
      %p44 = por %p42, %p43
      %p45 = scmp.ne.s32.totalorder %s34, %s35
      %p46 = scmp.eq.s32.totalorder %s26, 0
      %p47 = por %p45, %p46
      %p48 = scmp.ne.s32.totalorder %s34, %s35
      %p49 = scmp.eq.s32.totalorder %s27, 1
      %p50 = por %p48, %p49
      %p52 = scmp.ne.s32.totalorder %s35, %s51
      %p53 = scmp.eq.s32.totalorder %s27, 0
      %p54 = por %p52, %p53
      %s56 = sadd.s32 %s55, 1
      %p59 = scmp.eq.s32.totalorder %s21, 1
      %p60 = scmp.ne.s32.totalorder %s55, %s57
      %p61 = scmp.eq.s32.totalorder %s21, 0
      %p62 = por %p60, %p61
      %p63 = scmp.ne.s32.totalorder %s55, %s57
      %p64 = scmp.eq.s32.totalorder %s26, 1
      %p65 = por %p63, %p64
      %p66 = scmp.ne.s32.totalorder %s57, %s58
      %p67 = scmp.eq.s32.totalorder %s26, 0
      %p68 = por %p66, %p67
      %p69 = scmp.ne.s32.totalorder %s57, %s58
      %p70 = scmp.eq.s32.totalorder %s27, 1
      %p71 = por %p69, %p70
      %p73 = scmp.ne.s32.totalorder %s58, %s72
      %p74 = scmp.eq.s32.totalorder %s27, 0
      %p75 = por %p73, %p74
      %s77 = sadd.s32 %s76, 1
      %p80 = scmp.eq.s32.totalorder %s21, 1
      %p81 = scmp.ne.s32.totalorder %s76, %s78
      %p82 = scmp.eq.s32.totalorder %s21, 0
      %p83 = por %p81, %p82
      %p84 = scmp.ne.s32.totalorder %s76, %s78
      %p85 = scmp.eq.s32.totalorder %s26, 1
      %p86 = por %p84, %p85
      %p87 = scmp.ne.s32.totalorder %s78, %s79
      %p88 = scmp.eq.s32.totalorder %s26, 0
      %p89 = por %p87, %p88
      %p90 = scmp.ne.s32.totalorder %s78, %s79
      %p91 = scmp.eq.s32.totalorder %s27, 1
      %p92 = por %p90, %p91
      %p94 = scmp.ne.s32.totalorder %s79, %s93
      %p95 = scmp.eq.s32.totalorder %s27, 0
      %p96 = por %p94, %p95
      %s98 = sadd.s32 %s97, 1
      %p101 = scmp.eq.s32.totalorder %s21, 1
      %p102 = scmp.ne.s32.totalorder %s97, %s99
      %p103 = scmp.eq.s32.totalorder %s21, 0
      %p104 = por %p102, %p103
      %p105 = scmp.ne.s32.totalorder %s97, %s99
      %p106 = scmp.eq.s32.totalorder %s26, 1
      %p107 = por %p105, %p106
      %p108 = scmp.ne.s32.totalorder %s99, %s100
      %p109 = scmp.eq.s32.totalorder %s26, 0
      %p110 = por %p108, %p109
      %p111 = scmp.ne.s32.totalorder %s99, %s100
      %p112 = scmp.eq.s32.totalorder %s27, 1
      %p113 = por %p111, %p112
      %p115 = scmp.ne.s32.totalorder %s100, %s114
      %p116 = scmp.eq.s32.totalorder %s27, 0
      %p117 = por %p115, %p116
      %s119 = sadd.s32 %s118, 1
      %p122 = scmp.eq.s32.totalorder %s21, 1
      %p123 = scmp.ne.s32.totalorder %s118, %s120
      %p124 = scmp.eq.s32.totalorder %s21, 0
      %p125 = por %p123, %p124
      %p126 = scmp.ne.s32.totalorder %s118, %s120
      %p127 = scmp.eq.s32.totalorder %s26, 1
      %p128 = por %p126, %p127
      %p129 = scmp.ne.s32.totalorder %s120, %s121
      %p130 = scmp.eq.s32.totalorder %s26, 0
      %p131 = por %p129, %p130
      %p132 = scmp.ne.s32.totalorder %s120, %s121
      %p133 = scmp.eq.s32.totalorder %s27, 1
      %p134 = por %p132, %p133
      %p136 = scmp.ne.s32.totalorder %s121, %s135
      %p137 = scmp.eq.s32.totalorder %s27, 0
      %p138 = por %p136, %p137
      %s140 = sadd.s32 %s139, 1
      %p143 = scmp.eq.s32.totalorder %s21, 1
      %p144 = scmp.ne.s32.totalorder %s139, %s141
      %p145 = scmp.eq.s32.totalorder %s21, 0
      %p146 = por %p144, %p145
      %p147 = scmp.ne.s32.totalorder %s139, %s141
      %p148 = scmp.eq.s32.totalorder %s26, 1
      %p149 = por %p147, %p148
      %p150 = scmp.ne.s32.totalorder %s141, %s142
      %p151 = scmp.eq.s32.totalorder %s26, 0
      %p152 = por %p150, %p151
      %p153 = scmp.ne.s32.totalorder %s141, %s142
      %p154 = scmp.eq.s32.totalorder %s27, 1
      %p155 = por %p153, %p154
      %p157 = scmp.ne.s32.totalorder %s142, %s156
      %p158 = scmp.eq.s32.totalorder %s27, 0
      %p159 = por %p157, %p158
      %s160 = ssub.s32 %s21, %s28
      %p161 = scmp.eq.s32.totalorder %s160, 0
      %s163 = sadd.s32 %s162, 1
      %s164 = scalar_select %p161, %s162, %s163
      %p167 = pneg %p161
      %p168 = scmp.eq.s32.totalorder %s21, 1
      %p169 = por %p167, %p168
      %p170 = scmp.ne.s32.totalorder %s162, %s165
      %p171 = scmp.eq.s32.totalorder %s21, 0
      %p172 = por %p170, %p171
      %p173 = scmp.ne.s32.totalorder %s162, %s165
      %p174 = scmp.eq.s32.totalorder %s26, 1
      %p175 = por %p173, %p174
      %p176 = scmp.ne.s32.totalorder %s165, %s166
      %p177 = scmp.eq.s32.totalorder %s26, 0
      %p178 = por %p176, %p177
      %p179 = scmp.ne.s32.totalorder %s165, %s166
      %p180 = scmp.eq.s32.totalorder %s27, 1
      %p181 = por %p179, %p180
      %p183 = scmp.ne.s32.totalorder %s166, %s182
      %p184 = scmp.eq.s32.totalorder %s27, 0
      %p185 = por %p183, %p184
      %s186 = ssub.s32 %s21, %s28
      %p187 = scmp.eq.s32.totalorder %s186, 0
      %s189 = sadd.s32 %s188, 1
      %s190 = scalar_select %p187, %s188, %s189
      %p193 = pneg %p187
      %p194 = scmp.eq.s32.totalorder %s21, 1
      %p195 = por %p193, %p194
      %p196 = scmp.ne.s32.totalorder %s188, %s191
      %p197 = scmp.eq.s32.totalorder %s21, 0
      %p198 = por %p196, %p197
      %p199 = scmp.ne.s32.totalorder %s188, %s191
      %p200 = scmp.eq.s32.totalorder %s26, 1
      %p201 = por %p199, %p200
      %p202 = scmp.ne.s32.totalorder %s191, %s192
      %p203 = scmp.eq.s32.totalorder %s26, 0
      %p204 = por %p202, %p203
      %p205 = scmp.ne.s32.totalorder %s191, %s192
      %p206 = scmp.eq.s32.totalorder %s27, 1
      %p207 = por %p205, %p206
      %p209 = scmp.ne.s32.totalorder %s192, %s208
      %p210 = scmp.eq.s32.totalorder %s27, 0
      %p211 = por %p209, %p210
      %s212 = ssub.s32 %s21, %s28
      %p213 = scmp.eq.s32.totalorder %s212, 0
      %s215 = sadd.s32 %s214, 1
      %s216 = scalar_select %p213, %s214, %s215
      %p219 = pneg %p213
      %p220 = scmp.eq.s32.totalorder %s21, 1
      %p221 = por %p219, %p220
      %p222 = scmp.ne.s32.totalorder %s214, %s217
      %p223 = scmp.eq.s32.totalorder %s21, 0
      %p224 = por %p222, %p223
      %p225 = scmp.ne.s32.totalorder %s214, %s217
      %p226 = scmp.eq.s32.totalorder %s26, 1
      %p227 = por %p225, %p226
      %p228 = scmp.ne.s32.totalorder %s217, %s218
      %p229 = scmp.eq.s32.totalorder %s26, 0
      %p230 = por %p228, %p229
      %p231 = scmp.ne.s32.totalorder %s217, %s218
      %p232 = scmp.eq.s32.totalorder %s27, 1
      %p233 = por %p231, %p232
      %p235 = scmp.ne.s32.totalorder %s218, %s234
      %p236 = scmp.eq.s32.totalorder %s27, 0
      %p237 = por %p235, %p236
      %p238 = scmp.le.s32.totalorder 1, %s21
      %p239 = scmp.lt.s32.totalorder %s21, 3
      %p240 = pnand %p238, %p239
      %p241 = pneg %p240
      // Predicated region
      $region9: #{resblock1_forward.6} parent=5 // pred_check
        _
      $region10: #{resblock1_forward.6} parent=5 // pred_check_branch
        %243 = sbr.rel (%p240) target = $region12
      $region11: #{resblock1_forward.6} parent=5 // pred_region
        %s244 = ssub.s32 %s21, 1
        // Predicated region
        $region13: #{resblock1_forward.6} parent=11 // pred_check
          %p245 = pneg %p68
        $region14: #{resblock1_forward.6} parent=11 // pred_check_branch
          %247 = sbr.rel (%p245) target = $region16
        $region15: #{resblock1_forward.6} parent=11 // pred_region
          _
        $region16: #{resblock1_forward.6} parent=11 // pred_fallthru
          _
        // Predicated region
        $region17: #{resblock1_forward.6} parent=11 // pred_check
          %p248 = pneg %p89
        $region18: #{resblock1_forward.6} parent=11 // pred_check_branch
          %250 = sbr.rel (%p248) target = $region20
        $region19: #{resblock1_forward.6} parent=11 // pred_region
          _
        $region20: #{resblock1_forward.6} parent=11 // pred_fallthru
          _
        // Predicated region
        $region21: #{resblock1_forward.6} parent=11 // pred_check
          %p251 = pneg %p110
        $region22: #{resblock1_forward.6} parent=11 // pred_check_branch
          %253 = sbr.rel (%p251) target = $region24
        $region23: #{resblock1_forward.6} parent=11 // pred_region
          _
        $region24: #{resblock1_forward.6} parent=11 // pred_fallthru
          _
        // Predicated region
        $region25: #{resblock1_forward.6} parent=11 // pred_check
          %p254 = pneg %p131
        $region26: #{resblock1_forward.6} parent=11 // pred_check_branch
          %256 = sbr.rel (%p254) target = $region28
        $region27: #{resblock1_forward.6} parent=11 // pred_region
          _
        $region28: #{resblock1_forward.6} parent=11 // pred_fallthru
          _
        // Predicated region
        $region29: #{resblock1_forward.6} parent=11 // pred_check
          %p257 = pneg %p152
        $region30: #{resblock1_forward.6} parent=11 // pred_check_branch
          %259 = sbr.rel (%p257) target = $region32
        $region31: #{resblock1_forward.6} parent=11 // pred_region
          _
        $region32: #{resblock1_forward.6} parent=11 // pred_fallthru
          _
      $region12: #{resblock1_forward.6} parent=5 // pred_fallthru
        _
      %p260 = scmp.lt.s32.totalorder %s21, 2
      // Predicated region
      $region33: #{resblock1_forward.6} parent=5 // pred_check
        %p261 = pneg %p260
      $region34: #{resblock1_forward.6} parent=5 // pred_check_branch
        %263 = sbr.rel (%p261) target = $region36
      $region35: #{resblock1_forward.6} parent=5 // pred_region
        // Predicated region
        $region37: #{resblock1_forward.6} parent=35 // pred_check
          %p264 = pneg %p41
        $region38: #{resblock1_forward.6} parent=35 // pred_check_branch
          %266 = sbr.rel (%p264) target = $region40
        $region39: #{resblock1_forward.6} parent=35 // pred_region
          %p267 = scmp.lt.s32.totalorder %s21, 1
          %s268 = scalar_select %p267, %s21, 1
          %s269 = smul.addr %s268, 12
          %s270 = smul.addr %s269, 8
          %s271 = scalar_lea.vmem %s0, %s270
        $region40: #{resblock1_forward.6} parent=35 // pred_fallthru
          _
      $region36: #{resblock1_forward.6} parent=5 // pred_fallthru
        _
      %p272 = scmp.le.s32.totalorder 1, %s21
      %p273 = scmp.lt.s32.totalorder %s21, 3
      %p274 = pnand %p272, %p273
      %p275 = pneg %p274
      // Predicated region
      $region41: #{resblock1_forward.6} parent=5 // pred_check
        _
      $region42: #{resblock1_forward.6} parent=5 // pred_check_branch
        %277 = sbr.rel (%p274) target = $region44
      $region43: #{resblock1_forward.6} parent=5 // pred_region
        %s278 = ssub.s32 %s21, 1
        %p279 = scmp.lt.s32.totalorder %s26, 1
        %s280 = scalar_select %p279, %s26, 1
        %s281 = smul.addr %s280, 12
        %s282 = smul.addr %s281, 8
        %s283 = scalar_lea.vmem %s0, %s282
        %p284 = pneg %p47
        %p285 = pneg %p44
        %p286 = pneg %p68
        %p287 = pneg %p65
        %p288 = pneg %p89
        %p289 = pneg %p86
        %p290 = pneg %p110
        %p291 = pneg %p107
        %p292 = pneg %p131
        %p293 = pneg %p128
        %p294 = pneg %p152
        %p295 = pneg %p149
        %p296 = pneg %p178
        %p297 = pneg %p175
        %p298 = scmp.lt.s32.totalorder %s26, 1
        %s299 = scalar_select %p298, %s26, 1
        %s300 = smul.addr %s299, 12
        %s301 = smul.addr %s300, 8
        %s302 = scalar_lea.vmem %s6, %s301
        %p303 = pneg %p204
        %p304 = pneg %p201
        %s305 = sand.u32 %s191, 1
        %s306 = scalar_lea.sflag [#allocation4], %s305
        %s307 = sand.u32 %s191, 1
        %s308 = smul.addr %s307, 32
        %s309 = scalar_lea.vmem [#allocation3], %s308
        %p310 = pneg %p230
        %p311 = pneg %p227
        %s312 = sand.u32 %s217, 1
        %s313 = scalar_lea.sflag [#allocation6], %s312
        %s314 = sand.u32 %s217, 1
        %s315 = smul.addr %s314, 32
        %s316 = scalar_lea.vmem [#allocation5], %s315
        %p317 = scmp.lt.s32.totalorder %s26, 1
        %s318 = scalar_select %p317, %s26, 1
        %s319 = smul.addr %s318, 12
        %s320 = smul.addr %s319, 8
        %s321 = scalar_lea.vmem %s0, %s320
        %p322 = scmp.lt.s32.totalorder %s26, 1
        %s323 = scalar_select %p322, %s26, 1
        %s324 = smul.addr %s323, 12
        %s325 = smul.addr %s324, 8
        %s326 = scalar_lea.vmem %s6, %s325
        %v327 = vld [vmem:[%s321] sm:$0xff]
        %v328 = vld [vmem:[%s321 + $0x8] sm:$0xff]
        %v329 = vld [vmem:[%s321 + $0x10] sm:$0xff]
        %v330 = vld [vmem:[%s321 + $0x18] sm:$0xff]
        %v331 = vld [vmem:[%s321 + $0x20] sm:$0xff]
        %v332 = vld [vmem:[%s321 + $0x28] sm:$0xff]
        %v333 = vld [vmem:[%s321 + $0x30] sm:$0xff]
        %v334 = vld [vmem:[%s321 + $0x38] sm:$0xff]
        %v335 = vld [vmem:[%s321 + $0x40] sm:$0xff]
        %v336 = vld [vmem:[%s321 + $0x48] sm:$0xff]
        %v337 = vld [vmem:[%s321 + $0x50] sm:$0xff]
        %v338 = vld [vmem:[%s321 + $0x58] sm:$0xff]
        %v339 = vld [vmem:[%s1] sm:$0xff]
        %v340 = vld [vmem:[%s1 + $0x8] sm:$0xff]
        %v341 = vld [vmem:[%s1 + $0x10] sm:$0xff]
        %v342 = vld [vmem:[%s1 + $0x18] sm:$0xff]
        %344 = vset.pattern.permute.xlu0 0
        %345 = vperm.xlu0 %344, %v339
        %v346 = vpop.permute.xlu0 %345
        %349 = vset.pattern.permute.xlu0 0
        %350 = vperm.xlu0 %349, %v340
        %v351 = vpop.permute.xlu0 %350
        %354 = vset.pattern.permute.xlu0 0
        %355 = vperm.xlu0 %354, %v341
        %v356 = vpop.permute.xlu0 %355
        %359 = vset.pattern.permute.xlu0 0
        %360 = vperm.xlu0 %359, %v342
        %v361 = vpop.permute.xlu0 %360
        %v363 = vmul.f32 %v327, %v346
        %v364 = vmul.f32 %v328, %v346
        %v365 = vmul.f32 %v329, %v346
        %v366 = vmul.f32 %v330, %v351
        %v367 = vmul.f32 %v331, %v351
        %v368 = vmul.f32 %v332, %v351
        %v369 = vmul.f32 %v333, %v356
        %v370 = vmul.f32 %v334, %v356
        %v371 = vmul.f32 %v335, %v356
        %v372 = vmul.f32 %v336, %v361
        %v373 = vmul.f32 %v337, %v361
        %v374 = vmul.f32 %v338, %v361
        %v375 = vld [vmem:[%s2] sm:$0xff]
        %v376 = vld [vmem:[%s2 + $0x8] sm:$0xff]
        %v377 = vld [vmem:[%s2 + $0x10] sm:$0xff]
        %v378 = vld [vmem:[%s2 + $0x18] sm:$0xff]
        %380 = vset.pattern.permute.xlu0 0
        %381 = vperm.xlu0 %380, %v375
        %v382 = vpop.permute.xlu0 %381
        %385 = vset.pattern.permute.xlu0 0
        %386 = vperm.xlu0 %385, %v376
        %v387 = vpop.permute.xlu0 %386
        %390 = vset.pattern.permute.xlu0 0
        %391 = vperm.xlu0 %390, %v377
        %v392 = vpop.permute.xlu0 %391
        %395 = vset.pattern.permute.xlu0 0
        %396 = vperm.xlu0 %395, %v378
        %v397 = vpop.permute.xlu0 %396
        %v399 = vadd.f32 %v363, %v382
        %v400 = vadd.f32 %v364, %v382
        %v401 = vadd.f32 %v365, %v382
        %v402 = vadd.f32 %v366, %v387
        %v403 = vadd.f32 %v367, %v387
        %v404 = vadd.f32 %v368, %v387
        %v405 = vadd.f32 %v369, %v392
        %v406 = vadd.f32 %v370, %v392
        %v407 = vadd.f32 %v371, %v392
        %v408 = vadd.f32 %v372, %v397
        %v409 = vadd.f32 %v373, %v397
        %v410 = vadd.f32 %v374, %v397
        %v411 = vmax.f32 %v399, 0.0
        %v412 = vmax.f32 %v400, 0.0
        %v413 = vmax.f32 %v401, 0.0
        %v414 = vmax.f32 %v402, 0.0
        %v415 = vmax.f32 %v403, 0.0
        %v416 = vmax.f32 %v404, 0.0
        %v417 = vmax.f32 %v405, 0.0
        %v418 = vmax.f32 %v406, 0.0
        %v419 = vmax.f32 %v407, 0.0
        %v420 = vmax.f32 %v408, 0.0
        %v421 = vmax.f32 %v409, 0.0
        %v422 = vmax.f32 %v410, 0.0
        %v423 = vld [vmem:[%s5] sm:$0x7]
        %v425 = vperm.slane %v423, 0
        %v426 = vperm.slane %v423, 1
        %v427 = vperm.slane %v423, 2
        %v431 = vmul.f32 %v411, %v425
        %v432 = vmul.f32 %v412, %v426
        %v433 = vmul.f32 %v413, %v427
        %v434 = vmul.f32 %v414, %v425
        %v435 = vmul.f32 %v415, %v426
        %v436 = vmul.f32 %v416, %v427
        %v437 = vmul.f32 %v417, %v425
        %v438 = vmul.f32 %v418, %v426
        %v439 = vmul.f32 %v419, %v427
        %v440 = vmul.f32 %v420, %v425
        %v441 = vmul.f32 %v421, %v426
        %v442 = vmul.f32 %v422, %v427
        %443 = vst [vmem:[#allocation2] sm:$0xff] %v431
        %444 = vst [vmem:[#allocation2 + $0x8] sm:$0xff] %v432
        %vm445 = vcmask 261120
        %446 = vst.msk [vmem:[#allocation2 + $0x10] sm:$0xff] %vm445, %v433
        %447 = vst [vmem:[#allocation2 + $0x18] sm:$0xff] %v434
        %448 = vst [vmem:[#allocation2 + $0x20] sm:$0xff] %v435
        %449 = vst.msk [vmem:[#allocation2 + $0x28] sm:$0xff] %vm445, %v436
        %450 = vst [vmem:[#allocation2 + $0x30] sm:$0xff] %v437
        %451 = vst [vmem:[#allocation2 + $0x38] sm:$0xff] %v438
        %452 = vst.msk [vmem:[#allocation2 + $0x40] sm:$0xff] %vm445, %v439
        %453 = vst [vmem:[#allocation2 + $0x48] sm:$0xff] %v440
        %454 = vst [vmem:[#allocation2 + $0x50] sm:$0xff] %v441
        %455 = vst.msk [vmem:[#allocation2 + $0x58] sm:$0xff] %vm445, %v442
        %468 = vrot.lane.b32.xlu0 %v431, 127
        %v469 = vpop.permute.xlu0 %468
        %470 = vrot.lane.b32.xlu0 %v432, 127
        %v471 = vpop.permute.xlu0 %470
        %472 = vrot.lane.b32.xlu0 %v433, 127
        %v473 = vpop.permute.xlu0 %472
        %474 = vrot.lane.b32.xlu0 %v434, 127
        %v475 = vpop.permute.xlu0 %474
        %476 = vrot.lane.b32.xlu0 %v435, 127
        %v477 = vpop.permute.xlu0 %476
        %478 = vrot.lane.b32.xlu0 %v436, 127
        %v479 = vpop.permute.xlu0 %478
        %480 = vrot.lane.b32.xlu0 %v437, 127
        %v481 = vpop.permute.xlu0 %480
        %482 = vrot.lane.b32.xlu0 %v438, 127
        %v483 = vpop.permute.xlu0 %482
        %484 = vrot.lane.b32.xlu0 %v439, 127
        %v485 = vpop.permute.xlu0 %484
        %486 = vrot.lane.b32.xlu0 %v440, 127
        %v487 = vpop.permute.xlu0 %486
        %488 = vrot.lane.b32.xlu0 %v441, 127
        %v489 = vpop.permute.xlu0 %488
        %490 = vrot.lane.b32.xlu0 %v442, 127
        %v491 = vpop.permute.xlu0 %490
        %vm492 = vcmask 1039360
        %v493 = vsel %vm492, %v469, %v471
        %v494 = vsel %vm492, %v471, %v473
        %v495 = vsel %vm492, %v475, %v477
        %v496 = vsel %vm492, %v477, %v479
        %v497 = vsel %vm492, %v481, %v483
        %v498 = vsel %vm492, %v483, %v485
        %v499 = vsel %vm492, %v487, %v489
        %v500 = vsel %vm492, %v489, %v491
        %513 = vst [vmem:[#allocation2 + $0x60] sm:$0xff] %v493
        %514 = vst [vmem:[#allocation2 + $0x68] sm:$0xff] %v494
        %515 = vst.msk [vmem:[#allocation2 + $0x70] sm:$0xff] %vm445, %v473
        %516 = vst [vmem:[#allocation2 + $0x78] sm:$0xff] %v495
        %517 = vst [vmem:[#allocation2 + $0x80] sm:$0xff] %v496
        %518 = vst.msk [vmem:[#allocation2 + $0x88] sm:$0xff] %vm445, %v479
        %519 = vst [vmem:[#allocation2 + $0x90] sm:$0xff] %v497
        %520 = vst [vmem:[#allocation2 + $0x98] sm:$0xff] %v498
        %521 = vst.msk [vmem:[#allocation2 + $0xa0] sm:$0xff] %vm445, %v485
        %522 = vst [vmem:[#allocation2 + $0xa8] sm:$0xff] %v499
        %523 = vst [vmem:[#allocation2 + $0xb0] sm:$0xff] %v500
        %524 = vst.msk [vmem:[#allocation2 + $0xb8] sm:$0xff] %vm445, %v491
        %525 = vrot.lane.b32.xlu0 %v431, 126
        %v526 = vpop.permute.xlu0 %525
        %527 = vrot.lane.b32.xlu0 %v432, 126
        %v528 = vpop.permute.xlu0 %527
        %529 = vrot.lane.b32.xlu0 %v433, 126
        %v530 = vpop.permute.xlu0 %529
        %531 = vrot.lane.b32.xlu0 %v434, 126
        %v532 = vpop.permute.xlu0 %531
        %533 = vrot.lane.b32.xlu0 %v435, 126
        %v534 = vpop.permute.xlu0 %533
        %535 = vrot.lane.b32.xlu0 %v436, 126
        %v536 = vpop.permute.xlu0 %535
        %537 = vrot.lane.b32.xlu0 %v437, 126
        %v538 = vpop.permute.xlu0 %537
        %539 = vrot.lane.b32.xlu0 %v438, 126
        %v540 = vpop.permute.xlu0 %539
        %541 = vrot.lane.b32.xlu0 %v439, 126
        %v542 = vpop.permute.xlu0 %541
        %543 = vrot.lane.b32.xlu0 %v440, 126
        %v544 = vpop.permute.xlu0 %543
        %545 = vrot.lane.b32.xlu0 %v441, 126
        %v546 = vpop.permute.xlu0 %545
        %547 = vrot.lane.b32.xlu0 %v442, 126
        %v548 = vpop.permute.xlu0 %547
        %vm549 = vcmask 1031168
        %v550 = vsel %vm549, %v526, %v528
        %v551 = vsel %vm549, %v528, %v530
        %v552 = vsel %vm549, %v532, %v534
        %v553 = vsel %vm549, %v534, %v536
        %v554 = vsel %vm549, %v538, %v540
        %v555 = vsel %vm549, %v540, %v542
        %v556 = vsel %vm549, %v544, %v546
        %v557 = vsel %vm549, %v546, %v548
        %570 = vst [vmem:[#allocation2 + $0xc0] sm:$0xff] %v550
        %571 = vst [vmem:[#allocation2 + $0xc8] sm:$0xff] %v551
        %572 = vst.msk [vmem:[#allocation2 + $0xd0] sm:$0xff] %vm445, %v530
        %573 = vst [vmem:[#allocation2 + $0xd8] sm:$0xff] %v552
        %574 = vst [vmem:[#allocation2 + $0xe0] sm:$0xff] %v553
        %575 = vst.msk [vmem:[#allocation2 + $0xe8] sm:$0xff] %vm445, %v536
        %576 = vst [vmem:[#allocation2 + $0xf0] sm:$0xff] %v554
        %577 = vst [vmem:[#allocation2 + $0xf8] sm:$0xff] %v555
        %578 = vst.msk [vmem:[#allocation2 + $0x100] sm:$0xff] %vm445, %v542
        %579 = vst [vmem:[#allocation2 + $0x108] sm:$0xff] %v556
        %580 = vst [vmem:[#allocation2 + $0x110] sm:$0xff] %v557
        %581 = vst.msk [vmem:[#allocation2 + $0x118] sm:$0xff] %vm445, %v548
        %582 = vrot.lane.b32.xlu0 %v431, 110
        %v583 = vpop.permute.xlu0 %582
        %584 = vrot.lane.b32.xlu0 %v432, 110
        %v585 = vpop.permute.xlu0 %584
        %586 = vrot.lane.b32.xlu0 %v433, 110
        %v587 = vpop.permute.xlu0 %586
        %588 = vrot.lane.b32.xlu0 %v434, 110
        %v589 = vpop.permute.xlu0 %588
        %590 = vrot.lane.b32.xlu0 %v435, 110
        %v591 = vpop.permute.xlu0 %590
        %592 = vrot.lane.b32.xlu0 %v436, 110
        %v593 = vpop.permute.xlu0 %592
        %594 = vrot.lane.b32.xlu0 %v437, 110
        %v595 = vpop.permute.xlu0 %594
        %596 = vrot.lane.b32.xlu0 %v438, 110
        %v597 = vpop.permute.xlu0 %596
        %598 = vrot.lane.b32.xlu0 %v439, 110
        %v599 = vpop.permute.xlu0 %598
        %600 = vrot.lane.b32.xlu0 %v440, 110
        %v601 = vpop.permute.xlu0 %600
        %602 = vrot.lane.b32.xlu0 %v441, 110
        %v603 = vpop.permute.xlu0 %602
        %604 = vrot.lane.b32.xlu0 %v442, 110
        %v605 = vpop.permute.xlu0 %604
        %vm606 = vcmask 900096
        %v607 = vsel %vm606, %v583, %v585
        %v608 = vsel %vm606, %v585, %v587
        %v609 = vsel %vm606, %v589, %v591
        %v610 = vsel %vm606, %v591, %v593
        %v611 = vsel %vm606, %v595, %v597
        %v612 = vsel %vm606, %v597, %v599
        %v613 = vsel %vm606, %v601, %v603
        %v614 = vsel %vm606, %v603, %v605
        %627 = vst [vmem:[#allocation2 + $0x120] sm:$0xff] %v607
        %628 = vst [vmem:[#allocation2 + $0x128] sm:$0xff] %v608
        %629 = vst.msk [vmem:[#allocation2 + $0x130] sm:$0xff] %vm445, %v587
        %630 = vst [vmem:[#allocation2 + $0x138] sm:$0xff] %v609
        %631 = vst [vmem:[#allocation2 + $0x140] sm:$0xff] %v610
        %632 = vst.msk [vmem:[#allocation2 + $0x148] sm:$0xff] %vm445, %v593
        %633 = vst [vmem:[#allocation2 + $0x150] sm:$0xff] %v611
        %634 = vst [vmem:[#allocation2 + $0x158] sm:$0xff] %v612
        %635 = vst.msk [vmem:[#allocation2 + $0x160] sm:$0xff] %vm445, %v599
        %636 = vst [vmem:[#allocation2 + $0x168] sm:$0xff] %v613
        %637 = vst [vmem:[#allocation2 + $0x170] sm:$0xff] %v614
        %638 = vst.msk [vmem:[#allocation2 + $0x178] sm:$0xff] %vm445, %v605
        %639 = vrot.lane.b32.xlu0 %v431, 109
        %v640 = vpop.permute.xlu0 %639
        %641 = vrot.lane.b32.xlu0 %v432, 109
        %v642 = vpop.permute.xlu0 %641
        %643 = vrot.lane.b32.xlu0 %v433, 109
        %v644 = vpop.permute.xlu0 %643
        %645 = vrot.lane.b32.xlu0 %v434, 109
        %v646 = vpop.permute.xlu0 %645
        %647 = vrot.lane.b32.xlu0 %v435, 109
        %v648 = vpop.permute.xlu0 %647
        %649 = vrot.lane.b32.xlu0 %v436, 109
        %v650 = vpop.permute.xlu0 %649
        %651 = vrot.lane.b32.xlu0 %v437, 109
        %v652 = vpop.permute.xlu0 %651
        %653 = vrot.lane.b32.xlu0 %v438, 109
        %v654 = vpop.permute.xlu0 %653
        %655 = vrot.lane.b32.xlu0 %v439, 109
        %v656 = vpop.permute.xlu0 %655
        %657 = vrot.lane.b32.xlu0 %v440, 109
        %v658 = vpop.permute.xlu0 %657
        %659 = vrot.lane.b32.xlu0 %v441, 109
        %v660 = vpop.permute.xlu0 %659
        %661 = vrot.lane.b32.xlu0 %v442, 109
        %v662 = vpop.permute.xlu0 %661
        %vm663 = vcmask 891904
        %v664 = vsel %vm663, %v640, %v642
        %v665 = vsel %vm663, %v642, %v644
        %v666 = vsel %vm663, %v646, %v648
        %v667 = vsel %vm663, %v648, %v650
        %v668 = vsel %vm663, %v652, %v654
        %v669 = vsel %vm663, %v654, %v656
        %v670 = vsel %vm663, %v658, %v660
        %v671 = vsel %vm663, %v660, %v662
        %684 = vst [vmem:[#allocation2 + $0x180] sm:$0xff] %v664
        %685 = vst [vmem:[#allocation2 + $0x188] sm:$0xff] %v665
        %686 = vst.msk [vmem:[#allocation2 + $0x190] sm:$0xff] %vm445, %v644
        %687 = vst [vmem:[#allocation2 + $0x198] sm:$0xff] %v666
        %688 = vst [vmem:[#allocation2 + $0x1a0] sm:$0xff] %v667
        %689 = vst.msk [vmem:[#allocation2 + $0x1a8] sm:$0xff] %vm445, %v650
        %690 = vst [vmem:[#allocation2 + $0x1b0] sm:$0xff] %v668
        %691 = vst [vmem:[#allocation2 + $0x1b8] sm:$0xff] %v669
        %692 = vst.msk [vmem:[#allocation2 + $0x1c0] sm:$0xff] %vm445, %v656
        %693 = vst [vmem:[#allocation2 + $0x1c8] sm:$0xff] %v670
        %694 = vst [vmem:[#allocation2 + $0x1d0] sm:$0xff] %v671
        %695 = vst.msk [vmem:[#allocation2 + $0x1d8] sm:$0xff] %vm445, %v662
        %696 = vrot.lane.b32.xlu0 %v431, 108
        %v697 = vpop.permute.xlu0 %696
        %698 = vrot.lane.b32.xlu0 %v432, 108
        %v699 = vpop.permute.xlu0 %698
        %700 = vrot.lane.b32.xlu0 %v433, 108
        %v701 = vpop.permute.xlu0 %700
        %702 = vrot.lane.b32.xlu0 %v434, 108
        %v703 = vpop.permute.xlu0 %702
        %704 = vrot.lane.b32.xlu0 %v435, 108
        %v705 = vpop.permute.xlu0 %704
        %706 = vrot.lane.b32.xlu0 %v436, 108
        %v707 = vpop.permute.xlu0 %706
        %708 = vrot.lane.b32.xlu0 %v437, 108
        %v709 = vpop.permute.xlu0 %708
        %710 = vrot.lane.b32.xlu0 %v438, 108
        %v711 = vpop.permute.xlu0 %710
        %712 = vrot.lane.b32.xlu0 %v439, 108
        %v713 = vpop.permute.xlu0 %712
        %714 = vrot.lane.b32.xlu0 %v440, 108
        %v715 = vpop.permute.xlu0 %714
        %716 = vrot.lane.b32.xlu0 %v441, 108
        %v717 = vpop.permute.xlu0 %716
        %718 = vrot.lane.b32.xlu0 %v442, 108
        %v719 = vpop.permute.xlu0 %718
        %vm720 = vcmask 883712
        %v721 = vsel %vm720, %v697, %v699
        %v722 = vsel %vm720, %v699, %v701
        %v723 = vsel %vm720, %v703, %v705
        %v724 = vsel %vm720, %v705, %v707
        %v725 = vsel %vm720, %v709, %v711
        %v726 = vsel %vm720, %v711, %v713
        %v727 = vsel %vm720, %v715, %v717
        %v728 = vsel %vm720, %v717, %v719
        %741 = vst [vmem:[#allocation2 + $0x1e0] sm:$0xff] %v721
        %742 = vst [vmem:[#allocation2 + $0x1e8] sm:$0xff] %v722
        %743 = vst.msk [vmem:[#allocation2 + $0x1f0] sm:$0xff] %vm445, %v701
        %744 = vst [vmem:[#allocation2 + $0x1f8] sm:$0xff] %v723
        %745 = vst [vmem:[#allocation2 + $0x200] sm:$0xff] %v724
        %746 = vst.msk [vmem:[#allocation2 + $0x208] sm:$0xff] %vm445, %v707
        %747 = vst [vmem:[#allocation2 + $0x210] sm:$0xff] %v725
        %748 = vst [vmem:[#allocation2 + $0x218] sm:$0xff] %v726
        %749 = vst.msk [vmem:[#allocation2 + $0x220] sm:$0xff] %vm445, %v713
        %750 = vst [vmem:[#allocation2 + $0x228] sm:$0xff] %v727
        %751 = vst [vmem:[#allocation2 + $0x230] sm:$0xff] %v728
        %752 = vst.msk [vmem:[#allocation2 + $0x238] sm:$0xff] %vm445, %v719
        %753 = vrot.lane.b32.xlu0 %v431, 92
        %v754 = vpop.permute.xlu0 %753
        %755 = vrot.lane.b32.xlu0 %v432, 92
        %v756 = vpop.permute.xlu0 %755
        %757 = vrot.lane.b32.xlu0 %v433, 92
        %v758 = vpop.permute.xlu0 %757
        %759 = vrot.lane.b32.xlu0 %v434, 92
        %v760 = vpop.permute.xlu0 %759
        %761 = vrot.lane.b32.xlu0 %v435, 92
        %v762 = vpop.permute.xlu0 %761
        %763 = vrot.lane.b32.xlu0 %v436, 92
        %v764 = vpop.permute.xlu0 %763
        %765 = vrot.lane.b32.xlu0 %v437, 92
        %v766 = vpop.permute.xlu0 %765
        %767 = vrot.lane.b32.xlu0 %v438, 92
        %v768 = vpop.permute.xlu0 %767
        %769 = vrot.lane.b32.xlu0 %v439, 92
        %v770 = vpop.permute.xlu0 %769
        %771 = vrot.lane.b32.xlu0 %v440, 92
        %v772 = vpop.permute.xlu0 %771
        %773 = vrot.lane.b32.xlu0 %v441, 92
        %v774 = vpop.permute.xlu0 %773
        %775 = vrot.lane.b32.xlu0 %v442, 92
        %v776 = vpop.permute.xlu0 %775
        %vm777 = vcmask 752640
        %v778 = vsel %vm777, %v754, %v756
        %v779 = vsel %vm777, %v756, %v758
        %v780 = vsel %vm777, %v760, %v762
        %v781 = vsel %vm777, %v762, %v764
        %v782 = vsel %vm777, %v766, %v768
        %v783 = vsel %vm777, %v768, %v770
        %v784 = vsel %vm777, %v772, %v774
        %v785 = vsel %vm777, %v774, %v776
        %798 = vst [vmem:[#allocation2 + $0x240] sm:$0xff] %v778
        %799 = vst [vmem:[#allocation2 + $0x248] sm:$0xff] %v779
        %800 = vst.msk [vmem:[#allocation2 + $0x250] sm:$0xff] %vm445, %v758
        %801 = vst [vmem:[#allocation2 + $0x258] sm:$0xff] %v780
        %802 = vst [vmem:[#allocation2 + $0x260] sm:$0xff] %v781
        %803 = vst.msk [vmem:[#allocation2 + $0x268] sm:$0xff] %vm445, %v764
        %804 = vst [vmem:[#allocation2 + $0x270] sm:$0xff] %v782
        %805 = vst [vmem:[#allocation2 + $0x278] sm:$0xff] %v783
        %806 = vst.msk [vmem:[#allocation2 + $0x280] sm:$0xff] %vm445, %v770
        %807 = vst [vmem:[#allocation2 + $0x288] sm:$0xff] %v784
        %808 = vst [vmem:[#allocation2 + $0x290] sm:$0xff] %v785
        %809 = vst.msk [vmem:[#allocation2 + $0x298] sm:$0xff] %vm445, %v776
        %810 = vrot.lane.b32.xlu0 %v431, 91
        %v811 = vpop.permute.xlu0 %810
        %812 = vrot.lane.b32.xlu0 %v432, 91
        %v813 = vpop.permute.xlu0 %812
        %814 = vrot.lane.b32.xlu0 %v433, 91
        %v815 = vpop.permute.xlu0 %814
        %816 = vrot.lane.b32.xlu0 %v434, 91
        %v817 = vpop.permute.xlu0 %816
        %818 = vrot.lane.b32.xlu0 %v435, 91
        %v819 = vpop.permute.xlu0 %818
        %820 = vrot.lane.b32.xlu0 %v436, 91
        %v821 = vpop.permute.xlu0 %820
        %822 = vrot.lane.b32.xlu0 %v437, 91
        %v823 = vpop.permute.xlu0 %822
        %824 = vrot.lane.b32.xlu0 %v438, 91
        %v825 = vpop.permute.xlu0 %824
        %826 = vrot.lane.b32.xlu0 %v439, 91
        %v827 = vpop.permute.xlu0 %826
        %828 = vrot.lane.b32.xlu0 %v440, 91
        %v829 = vpop.permute.xlu0 %828
        %830 = vrot.lane.b32.xlu0 %v441, 91
        %v831 = vpop.permute.xlu0 %830
        %832 = vrot.lane.b32.xlu0 %v442, 91
        %v833 = vpop.permute.xlu0 %832
        %vm834 = vcmask 744448
        %v835 = vsel %vm834, %v811, %v813
        %v836 = vsel %vm834, %v813, %v815
        %v837 = vsel %vm834, %v817, %v819
        %v838 = vsel %vm834, %v819, %v821
        %v839 = vsel %vm834, %v823, %v825
        %v840 = vsel %vm834, %v825, %v827
        %v841 = vsel %vm834, %v829, %v831
        %v842 = vsel %vm834, %v831, %v833
        %855 = vst [vmem:[#allocation2 + $0x2a0] sm:$0xff] %v835
        %856 = vst [vmem:[#allocation2 + $0x2a8] sm:$0xff] %v836
        %857 = vst.msk [vmem:[#allocation2 + $0x2b0] sm:$0xff] %vm445, %v815
        %858 = vst [vmem:[#allocation2 + $0x2b8] sm:$0xff] %v837
        %859 = vst [vmem:[#allocation2 + $0x2c0] sm:$0xff] %v838
        %860 = vst.msk [vmem:[#allocation2 + $0x2c8] sm:$0xff] %vm445, %v821
        %861 = vst [vmem:[#allocation2 + $0x2d0] sm:$0xff] %v839
        %862 = vst [vmem:[#allocation2 + $0x2d8] sm:$0xff] %v840
        %863 = vst.msk [vmem:[#allocation2 + $0x2e0] sm:$0xff] %vm445, %v827
        %864 = vst [vmem:[#allocation2 + $0x2e8] sm:$0xff] %v841
        %865 = vst [vmem:[#allocation2 + $0x2f0] sm:$0xff] %v842
        %866 = vst.msk [vmem:[#allocation2 + $0x2f8] sm:$0xff] %vm445, %v833
        %867 = vrot.lane.b32.xlu0 %v431, 90
        %v868 = vpop.permute.xlu0 %867
        %869 = vrot.lane.b32.xlu0 %v432, 90
        %v870 = vpop.permute.xlu0 %869
        %871 = vrot.lane.b32.xlu0 %v433, 90
        %v872 = vpop.permute.xlu0 %871
        %873 = vrot.lane.b32.xlu0 %v434, 90
        %v874 = vpop.permute.xlu0 %873
        %875 = vrot.lane.b32.xlu0 %v435, 90
        %v876 = vpop.permute.xlu0 %875
        %877 = vrot.lane.b32.xlu0 %v436, 90
        %v878 = vpop.permute.xlu0 %877
        %879 = vrot.lane.b32.xlu0 %v437, 90
        %v880 = vpop.permute.xlu0 %879
        %881 = vrot.lane.b32.xlu0 %v438, 90
        %v882 = vpop.permute.xlu0 %881
        %883 = vrot.lane.b32.xlu0 %v439, 90
        %v884 = vpop.permute.xlu0 %883
        %885 = vrot.lane.b32.xlu0 %v440, 90
        %v886 = vpop.permute.xlu0 %885
        %887 = vrot.lane.b32.xlu0 %v441, 90
        %v888 = vpop.permute.xlu0 %887
        %889 = vrot.lane.b32.xlu0 %v442, 90
        %v890 = vpop.permute.xlu0 %889
        %vm891 = vcmask 736256
        %v892 = vsel %vm891, %v868, %v870
        %v893 = vsel %vm891, %v870, %v872
        %v894 = vsel %vm891, %v874, %v876
        %v895 = vsel %vm891, %v876, %v878
        %v896 = vsel %vm891, %v880, %v882
        %v897 = vsel %vm891, %v882, %v884
        %v898 = vsel %vm891, %v886, %v888
        %v899 = vsel %vm891, %v888, %v890
        %912 = vst [vmem:[#allocation2 + $0x300] sm:$0xff] %v892
        %913 = vst [vmem:[#allocation2 + $0x308] sm:$0xff] %v893
        %914 = vst.msk [vmem:[#allocation2 + $0x310] sm:$0xff] %vm445, %v872
        %915 = vst [vmem:[#allocation2 + $0x318] sm:$0xff] %v894
        %916 = vst [vmem:[#allocation2 + $0x320] sm:$0xff] %v895
        %917 = vst.msk [vmem:[#allocation2 + $0x328] sm:$0xff] %vm445, %v878
        %918 = vst [vmem:[#allocation2 + $0x330] sm:$0xff] %v896
        %919 = vst [vmem:[#allocation2 + $0x338] sm:$0xff] %v897
        %920 = vst.msk [vmem:[#allocation2 + $0x340] sm:$0xff] %vm445, %v884
        %921 = vst [vmem:[#allocation2 + $0x348] sm:$0xff] %v898
        %922 = vst [vmem:[#allocation2 + $0x350] sm:$0xff] %v899
        %923 = vst.msk [vmem:[#allocation2 + $0x358] sm:$0xff] %vm445, %v890
        %v924 = vld [vmem:[%s3] sm:$0xff]
        %v925 = vld [vmem:[%s3 + $0x8] sm:$0xff]
        %v926 = vld [vmem:[%s3 + $0x10] sm:$0xff]
        %v927 = vld [vmem:[%s3 + $0x18] sm:$0xff]
        %v928 = vld [vmem:[%s3 + $0x20] sm:$0xff]
        %v929 = vld [vmem:[%s3 + $0x28] sm:$0xff]
        %v930 = vld [vmem:[%s3 + $0x30] sm:$0xff]
        %v931 = vld [vmem:[%s3 + $0x38] sm:$0xff]
        %v932 = vld [vmem:[%s3 + $0x40] sm:$0xff]
        %v933 = vld [vmem:[%s3 + $0x48] sm:$0xff]
        %v934 = vld [vmem:[%s3 + $0x50] sm:$0xff]
        %v935 = vld [vmem:[%s3 + $0x58] sm:$0xff]
        %v936 = vld [vmem:[#allocation2] sm:$0xff]
        %v937 = vld [vmem:[#allocation2 + $0x8] sm:$0xff]
        %v938 = vld [vmem:[#allocation2 + $0x10] sm:$0xff]
        %v939 = vld [vmem:[#allocation2 + $0x18] sm:$0xff]
        %v940 = vld [vmem:[#allocation2 + $0x20] sm:$0xff]
        %v941 = vld [vmem:[#allocation2 + $0x28] sm:$0xff]
        %v942 = vld [vmem:[#allocation2 + $0x30] sm:$0xff]
        %v943 = vld [vmem:[#allocation2 + $0x38] sm:$0xff]
        %v944 = vld [vmem:[#allocation2 + $0x40] sm:$0xff]
        %v945 = vld [vmem:[#allocation2 + $0x48] sm:$0xff]
        %v946 = vld [vmem:[#allocation2 + $0x50] sm:$0xff]
        %v947 = vld [vmem:[#allocation2 + $0x58] sm:$0xff]
        %v948 = vld [vmem:[#allocation2 + $0x60] sm:$0xff]
        %v949 = vld [vmem:[#allocation2 + $0x68] sm:$0xff]
        %v950 = vld [vmem:[#allocation2 + $0x70] sm:$0xff]
        %v951 = vld [vmem:[#allocation2 + $0x78] sm:$0xff]
        %v952 = vld [vmem:[#allocation2 + $0x80] sm:$0xff]
        %v953 = vld [vmem:[#allocation2 + $0x88] sm:$0xff]
        %v954 = vld [vmem:[#allocation2 + $0x90] sm:$0xff]
        %v955 = vld [vmem:[#allocation2 + $0x98] sm:$0xff]
        %v956 = vld [vmem:[#allocation2 + $0xa0] sm:$0xff]
        %v957 = vld [vmem:[#allocation2 + $0xa8] sm:$0xff]
        %v958 = vld [vmem:[#allocation2 + $0xb0] sm:$0xff]
        %v959 = vld [vmem:[#allocation2 + $0xb8] sm:$0xff]
        %v960 = vld [vmem:[#allocation2 + $0xc0] sm:$0xff]
        %v961 = vld [vmem:[#allocation2 + $0xc8] sm:$0xff]
        %v962 = vld [vmem:[#allocation2 + $0xd0] sm:$0xff]
        %v963 = vld [vmem:[#allocation2 + $0xd8] sm:$0xff]
        %v964 = vld [vmem:[#allocation2 + $0xe0] sm:$0xff]
        %v965 = vld [vmem:[#allocation2 + $0xe8] sm:$0xff]
        %v966 = vld [vmem:[#allocation2 + $0xf0] sm:$0xff]
        %v967 = vld [vmem:[#allocation2 + $0xf8] sm:$0xff]
        %v968 = vld [vmem:[#allocation2 + $0x100] sm:$0xff]
        %v969 = vld [vmem:[#allocation2 + $0x108] sm:$0xff]
        %v970 = vld [vmem:[#allocation2 + $0x110] sm:$0xff]
        %v971 = vld [vmem:[#allocation2 + $0x118] sm:$0xff]
        %v972 = vld [vmem:[#allocation2 + $0x120] sm:$0xff]
        %v973 = vld [vmem:[#allocation2 + $0x128] sm:$0xff]
        %v974 = vld [vmem:[#allocation2 + $0x130] sm:$0xff]
        %v975 = vld [vmem:[#allocation2 + $0x138] sm:$0xff]
        %v976 = vld [vmem:[#allocation2 + $0x140] sm:$0xff]
        %v977 = vld [vmem:[#allocation2 + $0x148] sm:$0xff]
        %v978 = vld [vmem:[#allocation2 + $0x150] sm:$0xff]
        %v979 = vld [vmem:[#allocation2 + $0x158] sm:$0xff]
        %v980 = vld [vmem:[#allocation2 + $0x160] sm:$0xff]
        %v981 = vld [vmem:[#allocation2 + $0x168] sm:$0xff]
        %v982 = vld [vmem:[#allocation2 + $0x170] sm:$0xff]
        %v983 = vld [vmem:[#allocation2 + $0x178] sm:$0xff]
        %v984 = vld [vmem:[#allocation2 + $0x180] sm:$0xff]
        %v985 = vld [vmem:[#allocation2 + $0x188] sm:$0xff]
        %v986 = vld [vmem:[#allocation2 + $0x190] sm:$0xff]
        %v987 = vld [vmem:[#allocation2 + $0x198] sm:$0xff]
        %v988 = vld [vmem:[#allocation2 + $0x1a0] sm:$0xff]
        %v989 = vld [vmem:[#allocation2 + $0x1a8] sm:$0xff]
        %v990 = vld [vmem:[#allocation2 + $0x1b0] sm:$0xff]
        %v991 = vld [vmem:[#allocation2 + $0x1b8] sm:$0xff]
        %v992 = vld [vmem:[#allocation2 + $0x1c0] sm:$0xff]
        %v993 = vld [vmem:[#allocation2 + $0x1c8] sm:$0xff]
        %v994 = vld [vmem:[#allocation2 + $0x1d0] sm:$0xff]
        %v995 = vld [vmem:[#allocation2 + $0x1d8] sm:$0xff]
        %v996 = vld [vmem:[#allocation2 + $0x1e0] sm:$0xff]
        %v997 = vld [vmem:[#allocation2 + $0x1e8] sm:$0xff]
        %v998 = vld [vmem:[#allocation2 + $0x1f0] sm:$0xff]
        %v999 = vld [vmem:[#allocation2 + $0x1f8] sm:$0xff]
        %v1000 = vld [vmem:[#allocation2 + $0x200] sm:$0xff]
        %v1001 = vld [vmem:[#allocation2 + $0x208] sm:$0xff]
        %v1002 = vld [vmem:[#allocation2 + $0x210] sm:$0xff]
        %v1003 = vld [vmem:[#allocation2 + $0x218] sm:$0xff]
        %v1004 = vld [vmem:[#allocation2 + $0x220] sm:$0xff]
        %v1005 = vld [vmem:[#allocation2 + $0x228] sm:$0xff]
        %v1006 = vld [vmem:[#allocation2 + $0x230] sm:$0xff]
        %v1007 = vld [vmem:[#allocation2 + $0x238] sm:$0xff]
        %v1008 = vld [vmem:[#allocation2 + $0x240] sm:$0xff]
        %v1009 = vld [vmem:[#allocation2 + $0x248] sm:$0xff]
        %v1010 = vld [vmem:[#allocation2 + $0x250] sm:$0xff]
        %v1011 = vld [vmem:[#allocation2 + $0x258] sm:$0xff]
        %v1012 = vld [vmem:[#allocation2 + $0x260] sm:$0xff]
        %v1013 = vld [vmem:[#allocation2 + $0x268] sm:$0xff]
        %v1014 = vld [vmem:[#allocation2 + $0x270] sm:$0xff]
        %v1015 = vld [vmem:[#allocation2 + $0x278] sm:$0xff]
        %v1016 = vld [vmem:[#allocation2 + $0x280] sm:$0xff]
        %v1017 = vld [vmem:[#allocation2 + $0x288] sm:$0xff]
        %v1018 = vld [vmem:[#allocation2 + $0x290] sm:$0xff]
        %v1019 = vld [vmem:[#allocation2 + $0x298] sm:$0xff]
        %v1020 = vld [vmem:[#allocation2 + $0x2a0] sm:$0xff]
        %v1021 = vld [vmem:[#allocation2 + $0x2a8] sm:$0xff]
        %v1022 = vld [vmem:[#allocation2 + $0x2b0] sm:$0xff]
        %v1023 = vld [vmem:[#allocation2 + $0x2b8] sm:$0xff]
        %v1024 = vld [vmem:[#allocation2 + $0x2c0] sm:$0xff]
        %v1025 = vld [vmem:[#allocation2 + $0x2c8] sm:$0xff]
        %v1026 = vld [vmem:[#allocation2 + $0x2d0] sm:$0xff]
        %v1027 = vld [vmem:[#allocation2 + $0x2d8] sm:$0xff]
        %v1028 = vld [vmem:[#allocation2 + $0x2e0] sm:$0xff]
        %v1029 = vld [vmem:[#allocation2 + $0x2e8] sm:$0xff]
        %v1030 = vld [vmem:[#allocation2 + $0x2f0] sm:$0xff]
        %v1031 = vld [vmem:[#allocation2 + $0x2f8] sm:$0xff]
        %v1032 = vld [vmem:[#allocation2 + $0x300] sm:$0xff]
        %v1033 = vld [vmem:[#allocation2 + $0x308] sm:$0xff]
        %v1034 = vld [vmem:[#allocation2 + $0x310] sm:$0xff]
        %v1035 = vld [vmem:[#allocation2 + $0x318] sm:$0xff]
        %v1036 = vld [vmem:[#allocation2 + $0x320] sm:$0xff]
        %v1037 = vld [vmem:[#allocation2 + $0x328] sm:$0xff]
        %v1038 = vld [vmem:[#allocation2 + $0x330] sm:$0xff]
        %v1039 = vld [vmem:[#allocation2 + $0x338] sm:$0xff]
        %v1040 = vld [vmem:[#allocation2 + $0x340] sm:$0xff]
        %v1041 = vld [vmem:[#allocation2 + $0x348] sm:$0xff]
        %v1042 = vld [vmem:[#allocation2 + $0x350] sm:$0xff]
        %v1043 = vld [vmem:[#allocation2 + $0x358] sm:$0xff]
        %v1044 = vld [vmem:[%s4] sm:$0xff]
        %v1045 = vld [vmem:[%s4 + $0x8] sm:$0xff]
        %v1046 = vld [vmem:[%s4 + $0x10] sm:$0xff]
        %v1047 = vld [vmem:[%s4 + $0x18] sm:$0xff]
        %1049 = vset.pattern.permute.xlu0 0
        %1050 = vperm.xlu0 %1049, %v1044
        %v1051 = vpop.permute.xlu0 %1050
        %1054 = vset.pattern.permute.xlu0 0
        %1055 = vperm.xlu0 %1054, %v1045
        %v1056 = vpop.permute.xlu0 %1055
        %1059 = vset.pattern.permute.xlu0 0
        %1060 = vperm.xlu0 %1059, %v1046
        %v1061 = vpop.permute.xlu0 %1060
        %1064 = vset.pattern.permute.xlu0 0
        %1065 = vperm.xlu0 %1064, %v1047
        %v1066 = vpop.permute.xlu0 %1065
        %v1069 = vsel %vm445, %v926, 0
        %v1072 = vsel %vm445, %v929, 0
        %v1075 = vsel %vm445, %v932, 0
        %v1078 = vsel %vm445, %v935, 0
        %1080 = vmatpush.msra.mxu0 %v981
        %1081 = vmatpush.msra.mxu0 %v978
        %1082 = vmatpush.msra.mxu0 %v975
        %1083 = vmatpush.msra.mxu0 %v972
        %1084 = vmatpush.msra.mxu0 %v969
        %1085 = vmatpush.msra.mxu0 %v966
        %1086 = vmatpush.msra.mxu0 %v963
        %1087 = vmatpush.msra.mxu0 %v960
        %1088 = vmatpush.msra.mxu0 %v957
        %1089 = vmatpush.msra.mxu0 %v954
        %1090 = vmatpush.msra.mxu0 %v951
        %1091 = vmatpush.msra.mxu0 %v948
        %1092 = vmatpush.msra.mxu0 %v945
        %1093 = vmatpush.msra.mxu0 %v942
        %1094 = vmatpush.msra.mxu0 %v939
        %1095 = vmatpush.msra.mxu0 %v936
        %1096 = vmatmul.f32.gmra.mxu0 %v924
        %v1097 = vpop.f32.mrf.mxu0
        %v1098 = vadd.f32 %v1051, %v1097
        %1099 = vmatmul.f32.gmra.mxu0 %v927
        %v1100 = vpop.f32.mrf.mxu0
        %v1101 = vadd.f32 %v1056, %v1100
        %1102 = vmatmul.f32.gmra.mxu0 %v930
        %v1103 = vpop.f32.mrf.mxu0
        %v1104 = vadd.f32 %v1061, %v1103
        %1105 = vmatmul.f32.gmra.mxu0 %v933
        %v1106 = vpop.f32.mrf.mxu0
        %v1107 = vadd.f32 %v1066, %v1106
        %1108 = vdwg.mxu0
        %1109 = vmatpush.msra.mxu0 %v1029
        %1110 = vmatpush.msra.mxu0 %v1026
        %1111 = vmatpush.msra.mxu0 %v1023
        %1112 = vmatpush.msra.mxu0 %v1020
        %1113 = vmatpush.msra.mxu0 %v1017
        %1114 = vmatpush.msra.mxu0 %v1014
        %1115 = vmatpush.msra.mxu0 %v1011
        %1116 = vmatpush.msra.mxu0 %v1008
        %1117 = vmatpush.msra.mxu0 %v1005
        %1118 = vmatpush.msra.mxu0 %v1002
        %1119 = vmatpush.msra.mxu0 %v999
        %1120 = vmatpush.msra.mxu0 %v996
        %1121 = vmatpush.msra.mxu0 %v993
        %1122 = vmatpush.msra.mxu0 %v990
        %1123 = vmatpush.msra.mxu0 %v987
        %1124 = vmatpush.msra.mxu0 %v984
        %1125 = vmatmul.f32.gmra.mxu0 %v925
        %v1126 = vpop.f32.mrf.mxu0
        %v1127 = vadd.f32 %v1098, %v1126
        %1128 = vmatmul.f32.gmra.mxu0 %v928
        %v1129 = vpop.f32.mrf.mxu0
        %v1130 = vadd.f32 %v1101, %v1129
        %1131 = vmatmul.f32.gmra.mxu0 %v931
        %v1132 = vpop.f32.mrf.mxu0
        %v1133 = vadd.f32 %v1104, %v1132
        %1134 = vmatmul.f32.gmra.mxu0 %v934
        %v1135 = vpop.f32.mrf.mxu0
        %v1136 = vadd.f32 %v1107, %v1135
        %1137 = vdwg.mxu0
        %1138 = vmatpush.msra.mxu0 0.0
        %1139 = vmatpush.msra.mxu0 0.0
        %1140 = vmatpush.msra.mxu0 0.0
        %1141 = vmatpush.msra.mxu0 0.0
        %1142 = vmatpush.msra.mxu0 0.0
        %1143 = vmatpush.msra.mxu0 0.0
        %1144 = vmatpush.msra.mxu0 0.0
        %1145 = vmatpush.msra.mxu0 0.0
        %1146 = vmatpush.msra.mxu0 0.0
        %1147 = vmatpush.msra.mxu0 0.0
        %1148 = vmatpush.msra.mxu0 0.0
        %1149 = vmatpush.msra.mxu0 0.0
        %1150 = vmatpush.msra.mxu0 %v1041
        %1151 = vmatpush.msra.mxu0 %v1038
        %1152 = vmatpush.msra.mxu0 %v1035
        %1153 = vmatpush.msra.mxu0 %v1032
        %1154 = vmatmul.f32.gmra.mxu0 %v1069
        %v1155 = vpop.f32.mrf.mxu0
        %v1156 = vadd.f32 %v1127, %v1155
        %1157 = vmatmul.f32.gmra.mxu0 %v1072
        %v1158 = vpop.f32.mrf.mxu0
        %v1159 = vadd.f32 %v1130, %v1158
        %1160 = vmatmul.f32.gmra.mxu0 %v1075
        %v1161 = vpop.f32.mrf.mxu0
        %v1162 = vadd.f32 %v1133, %v1161
        %1163 = vmatmul.f32.gmra.mxu0 %v1078
        %v1164 = vpop.f32.mrf.mxu0
        %v1165 = vadd.f32 %v1136, %v1164
        %1166 = vdwg.mxu0
        %1167 = vmatpush.msra.mxu0 %v982
        %1168 = vmatpush.msra.mxu0 %v979
        %1169 = vmatpush.msra.mxu0 %v976
        %1170 = vmatpush.msra.mxu0 %v973
        %1171 = vmatpush.msra.mxu0 %v970
        %1172 = vmatpush.msra.mxu0 %v967
        %1173 = vmatpush.msra.mxu0 %v964
        %1174 = vmatpush.msra.mxu0 %v961
        %1175 = vmatpush.msra.mxu0 %v958
        %1176 = vmatpush.msra.mxu0 %v955
        %1177 = vmatpush.msra.mxu0 %v952
        %1178 = vmatpush.msra.mxu0 %v949
        %1179 = vmatpush.msra.mxu0 %v946
        %1180 = vmatpush.msra.mxu0 %v943
        %1181 = vmatpush.msra.mxu0 %v940
        %1182 = vmatpush.msra.mxu0 %v937
        %1183 = vmatmul.f32.gmra.mxu0 %v924
        %v1184 = vpop.f32.mrf.mxu0
        %v1185 = vadd.f32 %v1051, %v1184
        %1186 = vmatmul.f32.gmra.mxu0 %v927
        %v1187 = vpop.f32.mrf.mxu0
        %v1188 = vadd.f32 %v1056, %v1187
        %1189 = vmatmul.f32.gmra.mxu0 %v930
        %v1190 = vpop.f32.mrf.mxu0
        %v1191 = vadd.f32 %v1061, %v1190
        %1192 = vmatmul.f32.gmra.mxu0 %v933
        %v1193 = vpop.f32.mrf.mxu0
        %v1194 = vadd.f32 %v1066, %v1193
        %1195 = vdwg.mxu0
        %1196 = vmatpush.msra.mxu0 %v1030
        %1197 = vmatpush.msra.mxu0 %v1027
        %1198 = vmatpush.msra.mxu0 %v1024
        %1199 = vmatpush.msra.mxu0 %v1021
        %1200 = vmatpush.msra.mxu0 %v1018
        %1201 = vmatpush.msra.mxu0 %v1015
        %1202 = vmatpush.msra.mxu0 %v1012
        %1203 = vmatpush.msra.mxu0 %v1009
        %1204 = vmatpush.msra.mxu0 %v1006
        %1205 = vmatpush.msra.mxu0 %v1003
        %1206 = vmatpush.msra.mxu0 %v1000
        %1207 = vmatpush.msra.mxu0 %v997
        %1208 = vmatpush.msra.mxu0 %v994
        %1209 = vmatpush.msra.mxu0 %v991
        %1210 = vmatpush.msra.mxu0 %v988
        %1211 = vmatpush.msra.mxu0 %v985
        %1212 = vmatmul.f32.gmra.mxu0 %v925
        %v1213 = vpop.f32.mrf.mxu0
        %v1214 = vadd.f32 %v1185, %v1213
        %1215 = vmatmul.f32.gmra.mxu0 %v928
        %v1216 = vpop.f32.mrf.mxu0
        %v1217 = vadd.f32 %v1188, %v1216
        %1218 = vmatmul.f32.gmra.mxu0 %v931
        %v1219 = vpop.f32.mrf.mxu0
        %v1220 = vadd.f32 %v1191, %v1219
        %1221 = vmatmul.f32.gmra.mxu0 %v934
        %v1222 = vpop.f32.mrf.mxu0
        %v1223 = vadd.f32 %v1194, %v1222
        %1224 = vdwg.mxu0
        %1225 = vmatpush.msra.mxu0 0.0
        %1226 = vmatpush.msra.mxu0 0.0
        %1227 = vmatpush.msra.mxu0 0.0
        %1228 = vmatpush.msra.mxu0 0.0
        %1229 = vmatpush.msra.mxu0 0.0
        %1230 = vmatpush.msra.mxu0 0.0
        %1231 = vmatpush.msra.mxu0 0.0
        %1232 = vmatpush.msra.mxu0 0.0
        %1233 = vmatpush.msra.mxu0 0.0
        %1234 = vmatpush.msra.mxu0 0.0
        %1235 = vmatpush.msra.mxu0 0.0
        %1236 = vmatpush.msra.mxu0 0.0
        %1237 = vmatpush.msra.mxu0 %v1042
        %1238 = vmatpush.msra.mxu0 %v1039
        %1239 = vmatpush.msra.mxu0 %v1036
        %1240 = vmatpush.msra.mxu0 %v1033
        %1241 = vmatmul.f32.gmra.mxu0 %v1069
        %v1242 = vpop.f32.mrf.mxu0
        %v1243 = vadd.f32 %v1214, %v1242
        %1244 = vmatmul.f32.gmra.mxu0 %v1072
        %v1245 = vpop.f32.mrf.mxu0
        %v1246 = vadd.f32 %v1217, %v1245
        %1247 = vmatmul.f32.gmra.mxu0 %v1075
        %v1248 = vpop.f32.mrf.mxu0
        %v1249 = vadd.f32 %v1220, %v1248
        %1250 = vmatmul.f32.gmra.mxu0 %v1078
        %v1251 = vpop.f32.mrf.mxu0
        %v1252 = vadd.f32 %v1223, %v1251
        %1253 = vdwg.mxu0
        %1254 = vmatpush.msra.mxu0 %v983
        %1255 = vmatpush.msra.mxu0 %v980
        %1256 = vmatpush.msra.mxu0 %v977
        %1257 = vmatpush.msra.mxu0 %v974
        %1258 = vmatpush.msra.mxu0 %v971
        %1259 = vmatpush.msra.mxu0 %v968
        %1260 = vmatpush.msra.mxu0 %v965
        %1261 = vmatpush.msra.mxu0 %v962
        %1262 = vmatpush.msra.mxu0 %v959
        %1263 = vmatpush.msra.mxu0 %v956
        %1264 = vmatpush.msra.mxu0 %v953
        %1265 = vmatpush.msra.mxu0 %v950
        %1266 = vmatpush.msra.mxu0 %v947
        %1267 = vmatpush.msra.mxu0 %v944
        %1268 = vmatpush.msra.mxu0 %v941
        %1269 = vmatpush.msra.mxu0 %v938
        %1270 = vmatmul.f32.gmra.mxu0 %v924
        %v1271 = vpop.f32.mrf.mxu0
        %v1272 = vadd.f32 %v1051, %v1271
        %1273 = vmatmul.f32.gmra.mxu0 %v927
        %v1274 = vpop.f32.mrf.mxu0
        %v1275 = vadd.f32 %v1056, %v1274
        %1276 = vmatmul.f32.gmra.mxu0 %v930
        %v1277 = vpop.f32.mrf.mxu0
        %v1278 = vadd.f32 %v1061, %v1277
        %1279 = vmatmul.f32.gmra.mxu0 %v933
        %v1280 = vpop.f32.mrf.mxu0
        %v1281 = vadd.f32 %v1066, %v1280
        %1282 = vdwg.mxu0
        %1283 = vmatpush.msra.mxu0 %v1031
        %1284 = vmatpush.msra.mxu0 %v1028
        %1285 = vmatpush.msra.mxu0 %v1025
        %1286 = vmatpush.msra.mxu0 %v1022
        %1287 = vmatpush.msra.mxu0 %v1019
        %1288 = vmatpush.msra.mxu0 %v1016
        %1289 = vmatpush.msra.mxu0 %v1013
        %1290 = vmatpush.msra.mxu0 %v1010
        %1291 = vmatpush.msra.mxu0 %v1007
        %1292 = vmatpush.msra.mxu0 %v1004
        %1293 = vmatpush.msra.mxu0 %v1001
        %1294 = vmatpush.msra.mxu0 %v998
        %1295 = vmatpush.msra.mxu0 %v995
        %1296 = vmatpush.msra.mxu0 %v992
        %1297 = vmatpush.msra.mxu0 %v989
        %1298 = vmatpush.msra.mxu0 %v986
        %1299 = vmatmul.f32.gmra.mxu0 %v925
        %v1300 = vpop.f32.mrf.mxu0
        %v1301 = vadd.f32 %v1272, %v1300
        %1302 = vmatmul.f32.gmra.mxu0 %v928
        %v1303 = vpop.f32.mrf.mxu0
        %v1304 = vadd.f32 %v1275, %v1303
        %1305 = vmatmul.f32.gmra.mxu0 %v931
        %v1306 = vpop.f32.mrf.mxu0
        %v1307 = vadd.f32 %v1278, %v1306
        %1308 = vmatmul.f32.gmra.mxu0 %v934
        %v1309 = vpop.f32.mrf.mxu0
        %v1310 = vadd.f32 %v1281, %v1309
        %1311 = vdwg.mxu0
        %1312 = vmatpush.msra.mxu0 0.0
        %1313 = vmatpush.msra.mxu0 0.0
        %1314 = vmatpush.msra.mxu0 0.0
        %1315 = vmatpush.msra.mxu0 0.0
        %1316 = vmatpush.msra.mxu0 0.0
        %1317 = vmatpush.msra.mxu0 0.0
        %1318 = vmatpush.msra.mxu0 0.0
        %1319 = vmatpush.msra.mxu0 0.0
        %1320 = vmatpush.msra.mxu0 0.0
        %1321 = vmatpush.msra.mxu0 0.0
        %1322 = vmatpush.msra.mxu0 0.0
        %1323 = vmatpush.msra.mxu0 0.0
        %1324 = vmatpush.msra.mxu0 %v1043
        %1325 = vmatpush.msra.mxu0 %v1040
        %1326 = vmatpush.msra.mxu0 %v1037
        %1327 = vmatpush.msra.mxu0 %v1034
        %1328 = vmatmul.f32.gmra.mxu0 %v1069
        %v1329 = vpop.f32.mrf.mxu0
        %v1330 = vadd.f32 %v1301, %v1329
        %1331 = vmatmul.f32.gmra.mxu0 %v1072
        %v1332 = vpop.f32.mrf.mxu0
        %v1333 = vadd.f32 %v1304, %v1332
        %1334 = vmatmul.f32.gmra.mxu0 %v1075
        %v1335 = vpop.f32.mrf.mxu0
        %v1336 = vadd.f32 %v1307, %v1335
        %1337 = vmatmul.f32.gmra.mxu0 %v1078
        %v1338 = vpop.f32.mrf.mxu0
        %v1339 = vadd.f32 %v1310, %v1338
        %1340 = vdwg.mxu0
        %v1341 = vld [vmem:[%s5] sm:$0x7]
        %v1343 = vperm.slane %v1341, 0
        %v1344 = vperm.slane %v1341, 1
        %v1345 = vperm.slane %v1341, 2
        %1346 = vrot.lane.b32.xlu0 %v1343, 109
        %v1347 = vpop.permute.xlu0 %1346
        %1348 = vrot.lane.b32.xlu0 %v1344, 109
        %v1349 = vpop.permute.xlu0 %1348
        %1350 = vrot.lane.b32.xlu0 %v1345, 109
        %v1351 = vpop.permute.xlu0 %1350
        %v1352 = vsel %vm663, %v1347, %v1349
        %v1353 = vsel %vm663, %v1349, %v1351
        %v1357 = vmul.f32 %v1156, %v1352
        %v1358 = vmul.f32 %v1243, %v1353
        %v1359 = vmul.f32 %v1330, %v1351
        %v1360 = vmul.f32 %v1159, %v1352
        %v1361 = vmul.f32 %v1246, %v1353
        %v1362 = vmul.f32 %v1333, %v1351
        %v1363 = vmul.f32 %v1162, %v1352
        %v1364 = vmul.f32 %v1249, %v1353
        %v1365 = vmul.f32 %v1336, %v1351
        %v1366 = vmul.f32 %v1165, %v1352
        %v1367 = vmul.f32 %v1252, %v1353
        %v1368 = vmul.f32 %v1339, %v1351
        %v1369 = vadd.f32 %v1357, %v1358
        %v1370 = vsel %vm445, %v1359, 0.0
        %v1371 = vadd.f32 %v1369, %v1370
        %1372 = vadd.xlane.f32.xlu0 %v1371
        %v1373 = vpop.xlane.xlu0 %1372
        %v1374 = vadd.f32 %v1360, %v1361
        %v1375 = vsel %vm445, %v1362, 0.0
        %v1376 = vadd.f32 %v1374, %v1375
        %1377 = vadd.xlane.f32.xlu0 %v1376
        %v1378 = vpop.xlane.xlu0 %1377
        %v1379 = vadd.f32 %v1363, %v1364
        %v1380 = vsel %vm445, %v1365, 0.0
        %v1381 = vadd.f32 %v1379, %v1380
        %1382 = vadd.xlane.f32.xlu0 %v1381
        %v1383 = vpop.xlane.xlu0 %1382
        %v1384 = vadd.f32 %v1366, %v1367
        %v1385 = vsel %vm445, %v1368, 0.0
        %v1386 = vadd.f32 %v1384, %v1385
        %1387 = vadd.xlane.f32.xlu0 %v1386
        %v1388 = vpop.xlane.xlu0 %1387
        %vm1389 = vcmask 7168
        %1390 = vst.msk [vmem:[%s309] sm:$0xff] %vm1389, %v1373
        %1391 = vst.msk [vmem:[%s309 + $0x8] sm:$0xff] %vm1389, %v1378
        %1392 = vst.msk [vmem:[%s309 + $0x10] sm:$0xff] %vm1389, %v1383
        %1393 = vst.msk [vmem:[%s309 + $0x18] sm:$0xff] %vm1389, %v1388
        %v1394 = vmul.f32 %v1357, %v1357
        %v1395 = vmul.f32 %v1358, %v1358
        %v1396 = vmul.f32 %v1359, %v1359
        %v1397 = vmul.f32 %v1360, %v1360
        %v1398 = vmul.f32 %v1361, %v1361
        %v1399 = vmul.f32 %v1362, %v1362
        %v1400 = vmul.f32 %v1363, %v1363
        %v1401 = vmul.f32 %v1364, %v1364
        %v1402 = vmul.f32 %v1365, %v1365
        %v1403 = vmul.f32 %v1366, %v1366
        %v1404 = vmul.f32 %v1367, %v1367
        %v1405 = vmul.f32 %v1368, %v1368
        %v1406 = vadd.f32 %v1394, %v1395
        %v1407 = vsel %vm445, %v1396, 0.0
        %v1408 = vadd.f32 %v1406, %v1407
        %1409 = vadd.xlane.f32.xlu0 %v1408
        %v1410 = vpop.xlane.xlu0 %1409
        %v1411 = vadd.f32 %v1397, %v1398
        %v1412 = vsel %vm445, %v1399, 0.0
        %v1413 = vadd.f32 %v1411, %v1412
        %1414 = vadd.xlane.f32.xlu0 %v1413
        %v1415 = vpop.xlane.xlu0 %1414
        %v1416 = vadd.f32 %v1400, %v1401
        %v1417 = vsel %vm445, %v1402, 0.0
        %v1418 = vadd.f32 %v1416, %v1417
        %1419 = vadd.xlane.f32.xlu0 %v1418
        %v1420 = vpop.xlane.xlu0 %1419
        %v1421 = vadd.f32 %v1403, %v1404
        %v1422 = vsel %vm445, %v1405, 0.0
        %v1423 = vadd.f32 %v1421, %v1422
        %1424 = vadd.xlane.f32.xlu0 %v1423
        %v1425 = vpop.xlane.xlu0 %1424
        %1426 = vst.msk [vmem:[%s316] sm:$0xff] %vm1389, %v1410
        %1427 = vst.msk [vmem:[%s316 + $0x8] sm:$0xff] %vm1389, %v1415
        %1428 = vst.msk [vmem:[%s316 + $0x10] sm:$0xff] %vm1389, %v1420
        %1429 = vst.msk [vmem:[%s316 + $0x18] sm:$0xff] %vm1389, %v1425
        %1430 = vst [vmem:[%s326] sm:$0xff] %v1156
        %1431 = vst [vmem:[%s326 + $0x8] sm:$0xff] %v1243
        %1432 = vst.msk [vmem:[%s326 + $0x10] sm:$0xff] %vm445, %v1330
        %1433 = vst [vmem:[%s326 + $0x18] sm:$0xff] %v1159
        %1434 = vst [vmem:[%s326 + $0x20] sm:$0xff] %v1246
        %1435 = vst.msk [vmem:[%s326 + $0x28] sm:$0xff] %vm445, %v1333
        %1436 = vst [vmem:[%s326 + $0x30] sm:$0xff] %v1162
        %1437 = vst [vmem:[%s326 + $0x38] sm:$0xff] %v1249
        %1438 = vst.msk [vmem:[%s326 + $0x40] sm:$0xff] %vm445, %v1336
        %1439 = vst [vmem:[%s326 + $0x48] sm:$0xff] %v1165
        %1440 = vst [vmem:[%s326 + $0x50] sm:$0xff] %v1252
        %1441 = vst.msk [vmem:[%s326 + $0x58] sm:$0xff] %vm445, %v1339
        %p1442 = scmp.lt.s32.totalorder %s26, 1
        %s1443 = scalar_select %p1442, %s26, 1
        %s1444 = smul.addr %s1443, 12
        %s1445 = smul.addr %s1444, 8
        %s1446 = scalar_lea.vmem %s6, %s1445
        %s1447 = sand.u32 %s191, 1
        %s1448 = scalar_lea.sflag [#allocation4], %s1447
        %s1449 = sand.u32 %s191, 1
        %s1450 = smul.addr %s1449, 32
        %s1451 = scalar_lea.vmem [#allocation3], %s1450
        %s1452 = sand.u32 %s217, 1
        %s1453 = scalar_lea.sflag [#allocation6], %s1452
        %s1454 = sand.u32 %s217, 1
        %s1455 = smul.addr %s1454, 32
        %s1456 = scalar_lea.vmem [#allocation5], %s1455
        // Predicated region
        $region45: #{resblock1_forward.6} parent=43 // pred_check
          %p1457 = pneg %p175
        $region46: #{resblock1_forward.6} parent=43 // pred_check_branch
          %1459 = sbr.rel (%p1457) target = $region48
        $region47: #{resblock1_forward.6} parent=43 // pred_region
          _
        $region48: #{resblock1_forward.6} parent=43 // pred_fallthru
          _
        // Predicated region
        $region49: #{resblock1_forward.6} parent=43 // pred_check
          %p1460 = pneg %p201
        $region50: #{resblock1_forward.6} parent=43 // pred_check_branch
          %1462 = sbr.rel (%p1460) target = $region52
        $region51: #{resblock1_forward.6} parent=43 // pred_region
          %1464 = vsyncadd %s1448, 0
          %s1465 = smul.addr %s26, 4
          %s1466 = smul.addr %s1465, 8
          %s1467 = scalar_lea.hbm %s7, %s1466
          %s1468 = sshll.u32 %s1451, 4
          %s1469 = int_to_ptr.vmem [resolvable:$true] %s1468
          %s1470 = sshll.u32 %s1467, 4
          %s1471 = int_to_ptr.hbm [resolvable:$true] %s1470
          %1476 = dma.vmem_to_hbm [thread:$0]  %s1469, 512, %s1471, %s1448, 128, 128, 8
        $region52: #{resblock1_forward.6} parent=43 // pred_fallthru
          _
        // Predicated region
        $region53: #{resblock1_forward.6} parent=43 // pred_check
          %p1477 = pneg %p227
        $region54: #{resblock1_forward.6} parent=43 // pred_check_branch
          %1479 = sbr.rel (%p1477) target = $region56
        $region55: #{resblock1_forward.6} parent=43 // pred_region
          %1481 = vsyncadd %s1453, 0
          %s1482 = smul.addr %s26, 4
          %s1483 = smul.addr %s1482, 8
          %s1484 = scalar_lea.hbm %s8, %s1483
          %s1485 = sshll.u32 %s1456, 4
          %s1486 = int_to_ptr.vmem [resolvable:$true] %s1485
          %s1487 = sshll.u32 %s1484, 4
          %s1488 = int_to_ptr.hbm [resolvable:$true] %s1487
          %1493 = dma.vmem_to_hbm [thread:$0]  %s1486, 512, %s1488, %s1453, 128, 128, 8
        $region56: #{resblock1_forward.6} parent=43 // pred_fallthru
          _
      $region44: #{resblock1_forward.6} parent=5 // pred_fallthru
        _
      %p1494 = scmp.le.s32.totalorder 2, %s21
      // Predicated region
      $region57: #{resblock1_forward.6} parent=5 // pred_check
        %p1495 = pneg %p1494
      $region58: #{resblock1_forward.6} parent=5 // pred_check_branch
        %1497 = sbr.rel (%p1495) target = $region60
      $region59: #{resblock1_forward.6} parent=5 // pred_region
        %s1498 = ssub.s32 %s21, 2
        // Predicated region
        $region61: #{resblock1_forward.6} parent=59 // pred_check
          %p1499 = pneg %p181
        $region62: #{resblock1_forward.6} parent=59 // pred_check_branch
          %1501 = sbr.rel (%p1499) target = $region64
        $region63: #{resblock1_forward.6} parent=59 // pred_region
          %p1502 = scmp.lt.s32.totalorder %s27, 1
          %s1503 = scalar_select %p1502, %s27, 1
          %s1504 = smul.addr %s1503, 12
          %s1505 = smul.addr %s1504, 8
          %s1506 = scalar_lea.vmem %s6, %s1505
        $region64: #{resblock1_forward.6} parent=59 // pred_fallthru
          _
        // Predicated region
        $region65: #{resblock1_forward.6} parent=59 // pred_check
          %p1507 = pneg %p207
        $region66: #{resblock1_forward.6} parent=59 // pred_check_branch
          %1509 = sbr.rel (%p1507) target = $region68
        $region67: #{resblock1_forward.6} parent=59 // pred_region
          %s1510 = sand.u32 %s192, 1
          %s1511 = scalar_lea.sflag [#allocation4], %s1510
          %s1512 = sand.u32 %s192, 1
          %s1513 = smul.addr %s1512, 32
          %s1514 = scalar_lea.vmem [#allocation3], %s1513
          %1516 = dma.done %s1511, 512
        $region68: #{resblock1_forward.6} parent=59 // pred_fallthru
          _
        // Predicated region
        $region69: #{resblock1_forward.6} parent=59 // pred_check
          %p1517 = pneg %p233
        $region70: #{resblock1_forward.6} parent=59 // pred_check_branch
          %1519 = sbr.rel (%p1517) target = $region72
        $region71: #{resblock1_forward.6} parent=59 // pred_region
          %s1520 = sand.u32 %s218, 1
          %s1521 = scalar_lea.sflag [#allocation6], %s1520
          %s1522 = sand.u32 %s218, 1
          %s1523 = smul.addr %s1522, 32
          %s1524 = scalar_lea.vmem [#allocation5], %s1523
          %1526 = dma.done %s1521, 512
        $region72: #{resblock1_forward.6} parent=59 // pred_fallthru
          _
      $region60: #{resblock1_forward.6} parent=5 // pred_fallthru
        _
    $region6: #{resblock1_forward.6} parent=1 // loop_footer
      %s25 = sadd.s32 1, %s21
    $region7: #{resblock1_forward.6} parent=1 // loop_footer_branch
      %20 = sbr.rel target = $region3
    $region8: #{resblock1_forward.6} parent=1 // loop_exit
      _
    %1527 = vsyncpa [#allocation4], 1
    %s1528 = scalar_lea.sflag [#allocation4], 1
    %1529 = vsyncpa %s1528, 1
    %1530 = vsyncpa [#allocation6], 1
    %s1531 = scalar_lea.sflag [#allocation6], 1
    %1532 = vsyncpa %s1531, 1

</llo_original>
